<compile_context>
chip_gen: v7x
topology: tpu7x:2x2x1
jax: 0.10.0
libtpu: 0.0.40
codegen_flags: <defaults>
</compile_context>

<pallas_src>
import functools

import jax
import jax.numpy as jnp
from jax.experimental import pallas as pl
from jax.experimental.pallas import tpu as pltpu

_EPS = 1e-3
_LANE = 128


def _round_up(v, m):
    return (v + m - 1) // m * m


# ----------------------------- fused kernel ---------------------------------
def _basic_block_kernel(x_ref, s1_ref, b1_ref, w1_ref,
                        s2_ref, b2_ref, w2_ref,
                        s3_ref, b3_ref, w3_ref,
                        o_ref, pad_ref,
                        *, H, W, Ho, Wo, stride, row_chunk):
    """Fused (BN+ReLU+1x1) -> (BN+ReLU+kxk grouped, stride) -> (BN+ReLU+1x1).

    x_ref:   (H*W, Cin)          one image, channels lane-padded to 128
    s*/b*:   (1, C)              folded BN scale / shift (f32)
    w1_ref:  (Cin, C1)           bf16
    w2_ref:  (KH, KW, C1, C1)    bf16, block-diagonal dense (groups folded in)
    w3_ref:  (C1, C2)            bf16
    o_ref:   (Ho*Wo, C2)         f32
    pad_ref: (H+2p, W+2p, C1)    bf16 (stride==1) / f32 (stride>1) VMEM scratch
    """
    KH, KW, C1, _ = w2_ref.shape
    p = (KH - 1) // 2
    Wp = W + 2 * p
    f32 = jnp.float32
    bf16 = jnp.bfloat16
    pdt = pad_ref.dtype

    # ---- stage 1: BN + ReLU + 1x1 conv (single lane-dense matmul) ----------
    a1 = jnp.maximum(x_ref[...] * s1_ref[...] + b1_ref[...], 0.0)
    y1 = jnp.dot(a1.astype(bf16), w1_ref[...], preferred_element_type=f32)

    # ---- stage 2 pre-activation: BN + ReLU, write padded activation --------
    a2 = jnp.maximum(y1 * s2_ref[...] + b2_ref[...], 0.0).astype(pdt)
    a2 = a2.reshape(H, W, C1)
    if p > 0:
        # column halo folded into one full-width row store (no narrow stores)
        zcol = jnp.zeros((H, p, C1), pdt)
        a2 = jnp.concatenate([zcol, a2, zcol], axis=1)          # (H, Wp, C1)
        # top/bottom halo rows zeroed every iteration (safe under "parallel")
        zrow = jnp.zeros((p, Wp, C1), pdt)
        pad_ref[0:p, :, :] = zrow
        pad_ref[p + H:p + H + p, :, :] = zrow
    pad_ref[p:p + H, :, :] = a2

    # ---- stages 2+3: kxk conv + BN + ReLU + 1x1, per row chunk -------------
    for r0 in range(0, Ho, row_chunk):
        ch = min(row_chunk, Ho - r0)
        acc = jnp.zeros((ch * Wo, C1), f32)
        for kh in range(KH):
            for kw in range(KW):
                if stride == 1:
                    tap = pad_ref[pl.ds(r0 + kh, ch), pl.ds(kw, Wo), :]
                else:  # only the kept (strided) outputs are ever computed
                    tap = pad_ref[pl.ds(r0 * stride + kh, ch, stride=stride),
                                  pl.ds(kw, Wo, stride=stride), :]
                acc = acc + jnp.dot(tap.reshape(ch * Wo, C1).astype(bf16),
                                    w2_ref[kh, kw],
                                    preferred_element_type=f32)
        a3 = jnp.maximum(acc * s3_ref[...] + b3_ref[...], 0.0)
        y3 = jnp.dot(a3.astype(bf16), w3_ref[...], preferred_element_type=f32)
        o_ref[pl.ds(r0 * Wo, ch * Wo), :] = y3.astype(o_ref.dtype)


# ------------------------------ host wrapper ---------------------------------
def _fold_bn(stage, cpad):
    """Fold inference BatchNorm into per-channel scale/shift, lane-padded."""
    scale = stage["gamma"] * jax.lax.rsqrt(stage["var"] + _EPS)
    shift = stage["beta"] - stage["mean"] * scale
    c = scale.shape[0]
    s = jnp.zeros((1, cpad), jnp.float32).at[0, :c].set(scale.astype(jnp.float32))
    b = jnp.zeros((1, cpad), jnp.float32).at[0, :c].set(shift.astype(jnp.float32))
    return s, b


def _expand_grouped_weight(w_hwio, groups):
    """(KH,KW,Cin_g,Cout) grouped -> (KH,KW,Cin,Cout) dense block-diagonal.

    For DPN, Cin_g = Cout/groups < 128, so per-group contractions would badly
    underfill the MXU; a single block-diagonal matmul is the better layout.
    """
    KH, KW, cin_g, cout = w_hwio.shape
    cout_g = cout // groups
    full = jnp.zeros((KH, KW, cin_g * groups, cout), w_hwio.dtype)
    for g in range(groups):
        full = full.at[:, :, g * cin_g:(g + 1) * cin_g,
                       g * cout_g:(g + 1) * cout_g].set(
                           w_hwio[:, :, :, g * cout_g:(g + 1) * cout_g])
    return full


def basic_block_forward(x, params):
    """Forward pass of _BasicBlock. x: NCHW array or tuple of NCHW arrays."""
    if isinstance(x, tuple):
        x = jnp.concatenate(x, axis=1)              # torch.cat(x, dim=1)
    x_nhwc = jnp.transpose(x, (0, 2, 3, 1)).astype(jnp.float32)
    N, H, W, Cin = x_nhwc.shape

    p1, p2, p3 = params
    C1 = p1["w"].shape[-1]
    C2 = p3["w"].shape[-1]
    k = p2["k"]
    stride = p2["stride"]
    assert k % 2 == 1, "symmetric 'same' padding assumes odd kernel_size"
    halo = (k - 1) // 2
    Ho = (H - 1) // stride + 1
    Wo = (W - 1) // stride + 1

    # ---- lane padding: every channel axis becomes a multiple of 128 --------
    Cin_p = _round_up(Cin, _LANE)
    C1_p = _round_up(C1, _LANE)
    C2_p = _round_up(C2, _LANE)

    s1, b1 = _fold_bn(p1, Cin_p)
    s2, b2 = _fold_bn(p2, C1_p)
    s3, b3 = _fold_bn(p3, C1_p)

    w1 = (jnp.zeros((Cin_p, C1_p), jnp.float32)
          .at[:Cin, :C1].set(p1["w"].reshape(Cin, C1))).astype(jnp.bfloat16)
    w2_blk = _expand_grouped_weight(p2["w"], p2["groups"])       # (k,k,C1,C1)
    w2 = (jnp.zeros((k, k, C1_p, C1_p), jnp.float32)
          .at[:, :, :C1, :C1].set(w2_blk)).astype(jnp.bfloat16)
    w3 = (jnp.zeros((C1_p, C2_p), jnp.float32)
          .at[:C1, :C2].set(p3["w"].reshape(C1, C2))).astype(jnp.bfloat16)

    if Cin_p != Cin:
        x_nhwc = jnp.pad(x_nhwc, ((0, 0), (0, 0), (0, 0), (0, Cin_p - Cin)))
    x2d = x_nhwc.reshape(N, H * W, Cin_p)           # layout plumbing host-side

    # bf16 scratch for the unit-stride case; f32 when tap reads are strided.
    pad_dtype = jnp.bfloat16 if stride == 1 else jnp.float32
    row_chunk = max(1, min(Ho, 512 // max(1, Wo)))  # ~512 M rows per chunk

    # ---- scoped-VMEM budget sized to the real working set ------------------
    itemsize = jnp.dtype(pad_dtype).itemsize
    need = (2 * (H * W * Cin_p * 4                      # input block (x2)
                 + Ho * Wo * C2_p * 4                   # output block (x2)
                 + 2 * (Cin_p * C1_p + k * k * C1_p * C1_p + C1_p * C2_p)
                 + 4 * (2 * Cin_p + 4 * C1_p))
            + (H + 2 * halo) * (W + 2 * halo) * C1_p * itemsize)
    vmem_limit = int(min(100 * 1024 * 1024,
                         max(32 * 1024 * 1024, int(need * 1.5) + (8 << 20))))

    kernel = functools.partial(_basic_block_kernel, H=H, W=W, Ho=Ho, Wo=Wo,
                               stride=stride, row_chunk=row_chunk)
    out2d = pl.pallas_call(
        kernel,
        out_shape=jax.ShapeDtypeStruct((N, Ho * Wo, C2_p), jnp.float32),
        grid=(N,),
        in_specs=[
            pl.BlockSpec((None, H * W, Cin_p), lambda n: (n, 0, 0)),
            pl.BlockSpec((1, Cin_p), lambda n: (0, 0)),
            pl.BlockSpec((1, Cin_p), lambda n: (0, 0)),
            pl.BlockSpec((Cin_p, C1_p), lambda n: (0, 0)),
            pl.BlockSpec((1, C1_p), lambda n: (0, 0)),
            pl.BlockSpec((1, C1_p), lambda n: (0, 0)),
            pl.BlockSpec((k, k, C1_p, C1_p), lambda n: (0, 0, 0, 0)),
            pl.BlockSpec((1, C1_p), lambda n: (0, 0)),
            pl.BlockSpec((1, C1_p), lambda n: (0, 0)),
            pl.BlockSpec((C1_p, C2_p), lambda n: (0, 0)),
        ],
        out_specs=pl.BlockSpec((None, Ho * Wo, C2_p), lambda n: (n, 0, 0)),
        scratch_shapes=[
            pltpu.VMEM((H + 2 * halo, W + 2 * halo, C1_p), pad_dtype)],
        compiler_params=pltpu.CompilerParams(
            dimension_semantics=("parallel",),
            vmem_limit_bytes=vmem_limit),
    )(x2d, s1, b1, w1, s2, b2, w2, s3, b3, w3)

    out_nhwc = out2d.reshape(N, Ho, Wo, C2_p)
    return jnp.transpose(out_nhwc, (0, 3, 1, 2))[:, :C2, :, :]   # NCHW, unpad


# ------------------------------ parameter init -------------------------------
def init_stage_params(key, cin, cout, k, groups):
    """Deterministic synthetic params for one _BnActConvo (BN + conv weight)."""
    k1, k2, k3, k4, k5 = jax.random.split(key, 5)
    cin_g = cin // groups
    return dict(
        gamma=jax.random.uniform(k1, (cin,), jnp.float32, 0.5, 1.5),
        beta=jax.random.normal(k2, (cin,), jnp.float32) * 0.1,
        mean=jax.random.normal(k3, (cin,), jnp.float32) * 0.1,
        var=jax.random.uniform(k4, (cin,), jnp.float32, 0.5, 1.5),
        w=jax.random.normal(k5, (k, k, cin_g, cout), jnp.float32)
        * (1.0 / (k * k * cin_g) ** 0.5),
        k=k, groups=groups)


def init_basic_block_params(key, input_features, output_features,
                            interpolation_features, kernel_size, groups,
                            stride):
    k1, k2, k3 = jax.random.split(key, 3)
    return [
        dict(init_stage_params(k1, input_features, output_features, 1, 1),
             stride=1),
        dict(init_stage_params(k2, output_features, output_features,
                               kernel_size, groups), stride=stride),
        dict(init_stage_params(k3, output_features, interpolation_features,
                               1, 1), stride=1),
    ]


# ----------------------------- pure-JAX reference ---------------------------
def _ref_stage(x_nchw, p):
    scale = p["gamma"] * jax.lax.rsqrt(p["var"] + _EPS)
    shift = p["beta"] - p["mean"] * scale
    a = jnp.maximum(
        x_nchw * scale[None, :, None, None] + shift[None, :, None, None], 0.0)
    w_oihw = jnp.transpose(p["w"], (3, 2, 0, 1))
    pad = (p["k"] - 1) // 2
    # Same precision policy as the kernel: bf16 matmul operands, f32 accum.
    return jax.lax.conv_general_dilated(
        a.astype(jnp.bfloat16), w_oihw.astype(jnp.bfloat16),
        window_strides=(p["stride"], p["stride"]),
        padding=((pad, pad), (pad, pad)),
        dimension_numbers=("NCHW", "OIHW", "NCHW"),
        feature_group_count=p["groups"],
        preferred_element_type=jnp.float32)


def basic_block_reference(x, params):
    if isinstance(x, tuple):
        x = jnp.concatenate(x, axis=1)
    for p in params:
        x = _ref_stage(x, p)
    return x


if __name__ == "__main__":
    key = jax.random.PRNGKey(0)
    kx, kp = jax.random.split(key)

    N, H, W = 2, 16, 16
    input_features, output_features, interpolation_features = 8, 16, 32
    kernel_size, groups = 3, 2

    x = jax.random.normal(kx, (N, input_features, H, W), jnp.float32)

    for stride in (1, 2):
        params = init_basic_block_params(
            kp, input_features, output_features, interpolation_features,
            kernel_size, groups, stride)
        out = jax.block_until_ready(basic_block_forward(x, params))
        ref = jax.block_until_ready(basic_block_reference(x, params))
        Ho = (H - 1) // stride + 1
        assert out.shape == ref.shape == (N, interpolation_features, Ho, Ho), (
            out.shape, ref.shape)
        err = float(jnp.max(jnp.abs(out - ref)))
        assert jnp.allclose(out, ref, atol=3e-3, rtol=3e-3), (stride, err)

    # tuple-input path (torch.cat(x, dim=1)) must match the plain-array path
    params = init_basic_block_params(
        kp, input_features, output_features, interpolation_features,
        kernel_size, groups, 1)
    out_full = jax.block_until_ready(basic_block_forward(x, params))
    out_tup = jax.block_until_ready(
        basic_block_forward((x[:, :3], x[:, 3:]), params))
    assert jnp.allclose(out_full, out_tup)

    print("KERNEL_OK")
</pallas_src>

<mosaic_0001>
module attributes {stable_mosaic.version = 11 : i64} {
  func.func @_basic_block_kernel(%arg0: i32, %arg1: memref<1x256x128xf32, #tpu.memory_space<vmem>>, %arg2: memref<1x128xf32, #tpu.memory_space<vmem>>, %arg3: memref<1x128xf32, #tpu.memory_space<vmem>>, %arg4: memref<128x128xbf16, #tpu.memory_space<vmem>>, %arg5: memref<1x128xf32, #tpu.memory_space<vmem>>, %arg6: memref<1x128xf32, #tpu.memory_space<vmem>>, %arg7: memref<3x3x128x128xbf16, #tpu.memory_space<vmem>>, %arg8: memref<1x128xf32, #tpu.memory_space<vmem>>, %arg9: memref<1x128xf32, #tpu.memory_space<vmem>>, %arg10: memref<128x128xbf16, #tpu.memory_space<vmem>>, %arg11: memref<1x256x128xf32, #tpu.memory_space<vmem>>, %arg12: memref<18x18x128xbf16, #tpu.memory_space<vmem>>) attributes {dimension_semantics = [#tpu.dimension_semantics<parallel>], iteration_bounds = array<i64: 2>, scalar_prefetch = 0 : i64, scratch_operands = 1 : i64, tpu.core_type = #tpu.core_type<tc>, window_params = [{transform_indices = @transform_0, window_bounds = array<i64: 1, 256, 128>}, {pipeline_mode = #tpu.pipeline_mode<synchronous>, transform_indices = @transform_1, window_bounds = array<i64: 1, 128>}, {pipeline_mode = #tpu.pipeline_mode<synchronous>, transform_indices = @transform_2, window_bounds = array<i64: 1, 128>}, {pipeline_mode = #tpu.pipeline_mode<synchronous>, transform_indices = @transform_3, window_bounds = array<i64: 128, 128>}, {pipeline_mode = #tpu.pipeline_mode<synchronous>, transform_indices = @transform_4, window_bounds = array<i64: 1, 128>}, {pipeline_mode = #tpu.pipeline_mode<synchronous>, transform_indices = @transform_5, window_bounds = array<i64: 1, 128>}, {pipeline_mode = #tpu.pipeline_mode<synchronous>, transform_indices = @transform_6, window_bounds = array<i64: 3, 3, 128, 128>}, {pipeline_mode = #tpu.pipeline_mode<synchronous>, transform_indices = @transform_7, window_bounds = array<i64: 1, 128>}, {pipeline_mode = #tpu.pipeline_mode<synchronous>, transform_indices = @transform_8, window_bounds = array<i64: 1, 128>}, {pipeline_mode = #tpu.pipeline_mode<synchronous>, transform_indices = @transform_9, window_bounds = array<i64: 128, 128>}, {transform_indices = @transform_10, window_bounds = array<i64: 1, 256, 128>}]} {
    %c0 = arith.constant 0 : index
    %c0_0 = arith.constant 0 : index
    %c0_1 = arith.constant 0 : index
    %0 = vector.load %arg1[%c0, %c0_0, %c0_1] : memref<1x256x128xf32, #tpu.memory_space<vmem>>, vector<1x256x128xf32>
    %1 = vector.shape_cast %0 : vector<1x256x128xf32> to vector<256x128xf32>
    %c0_2 = arith.constant 0 : index
    %c0_3 = arith.constant 0 : index
    %2 = vector.load %arg2[%c0_2, %c0_3] : memref<1x128xf32, #tpu.memory_space<vmem>>, vector<1x128xf32>
    %3 = vector.broadcast %2 : vector<1x128xf32> to vector<256x128xf32>
    %4 = arith.mulf %1, %3 : vector<256x128xf32>
    %c0_4 = arith.constant 0 : index
    %c0_5 = arith.constant 0 : index
    %5 = vector.load %arg3[%c0_4, %c0_5] : memref<1x128xf32, #tpu.memory_space<vmem>>, vector<1x128xf32>
    %6 = vector.broadcast %5 : vector<1x128xf32> to vector<256x128xf32>
    %7 = arith.addf %4, %6 : vector<256x128xf32>
    %cst = arith.constant 0.000000e+00 : f32
    %8 = vector.broadcast %cst : f32 to vector<256x128xf32>
    %9 = arith.maximumf %7, %8 : vector<256x128xf32>
    %10 = arith.truncf %9 : vector<256x128xf32> to vector<256x128xbf16>
    %c0_6 = arith.constant 0 : index
    %c0_7 = arith.constant 0 : index
    %11 = vector.load %arg4[%c0_6, %c0_7] : memref<128x128xbf16, #tpu.memory_space<vmem>>, vector<128x128xbf16>
    %cst_8 = arith.constant dense<0.000000e+00> : vector<256x128xf32>
    %12 = tpu.matmul %10, %11, %cst_8 {dimension_numbers = #tpu.dot_dimension_numbers<[1], [0], [0], [1], [0, 0, 1, 1], [], []>} : vector<256x128xbf16>, vector<128x128xbf16>, vector<256x128xf32> -> vector<256x128xf32>
    %c0_9 = arith.constant 0 : index
    %c0_10 = arith.constant 0 : index
    %13 = vector.load %arg5[%c0_9, %c0_10] : memref<1x128xf32, #tpu.memory_space<vmem>>, vector<1x128xf32>
    %14 = vector.broadcast %13 : vector<1x128xf32> to vector<256x128xf32>
    %15 = arith.mulf %12, %14 : vector<256x128xf32>
    %c0_11 = arith.constant 0 : index
    %c0_12 = arith.constant 0 : index
    %16 = vector.load %arg6[%c0_11, %c0_12] : memref<1x128xf32, #tpu.memory_space<vmem>>, vector<1x128xf32>
    %17 = vector.broadcast %16 : vector<1x128xf32> to vector<256x128xf32>
    %18 = arith.addf %15, %17 : vector<256x128xf32>
    %cst_13 = arith.constant 0.000000e+00 : f32
    %19 = vector.broadcast %cst_13 : f32 to vector<256x128xf32>
    %20 = arith.maximumf %18, %19 : vector<256x128xf32>
    %21 = arith.truncf %20 : vector<256x128xf32> to vector<256x128xbf16>
    %22 = vector.shape_cast %21 : vector<256x128xbf16> to vector<16x16x128xbf16>
    %cst_14 = arith.constant 0.000000e+00 : bf16
    %23 = vector.broadcast %cst_14 : bf16 to vector<16x1x128xbf16>
    %24 = tpu.concatenate %23, %22, %23 in 1 : vector<16x1x128xbf16>, vector<16x16x128xbf16>, vector<16x1x128xbf16> -> vector<16x18x128xbf16>
    %cst_15 = arith.constant 0.000000e+00 : bf16
    %25 = vector.broadcast %cst_15 : bf16 to vector<1x18x128xbf16>
    %c0_16 = arith.constant 0 : index
    %c0_17 = arith.constant 0 : index
    %c0_18 = arith.constant 0 : index
    %26 = vector.load %arg12[%c0_16, %c0_17, %c0_18] : memref<18x18x128xbf16, #tpu.memory_space<vmem>>, vector<1x18x128xbf16>
    tpu.vector_store %arg12[%c0_16, %c0_17, %c0_18], %25 {strides = array<i32>} : memref<18x18x128xbf16, #tpu.memory_space<vmem>>, vector<1x18x128xbf16>,
    %c17 = arith.constant 17 : index
    %c0_19 = arith.constant 0 : index
    %c0_20 = arith.constant 0 : index
    %27 = vector.load %arg12[%c17, %c0_19, %c0_20] : memref<18x18x128xbf16, #tpu.memory_space<vmem>>, vector<1x18x128xbf16>
    tpu.vector_store %arg12[%c17, %c0_19, %c0_20], %25 {strides = array<i32>} : memref<18x18x128xbf16, #tpu.memory_space<vmem>>, vector<1x18x128xbf16>,
    %c1 = arith.constant 1 : index
    %c0_21 = arith.constant 0 : index
    %c0_22 = arith.constant 0 : index
    %28 = vector.load %arg12[%c1, %c0_21, %c0_22] : memref<18x18x128xbf16, #tpu.memory_space<vmem>>, vector<16x18x128xbf16>
    tpu.vector_store %arg12[%c1, %c0_21, %c0_22], %24 {strides = array<i32>} : memref<18x18x128xbf16, #tpu.memory_space<vmem>>, vector<16x18x128xbf16>,
    %cst_23 = arith.constant 0.000000e+00 : f32
    %29 = vector.broadcast %cst_23 : f32 to vector<256x128xf32>
    %c0_24 = arith.constant 0 : index
    %c0_25 = arith.constant 0 : index
    %c0_26 = arith.constant 0 : index
    %30 = vector.load %arg12[%c0_24, %c0_25, %c0_26] : memref<18x18x128xbf16, #tpu.memory_space<vmem>>, vector<16x16x128xbf16>
    %31 = vector.shape_cast %30 : vector<16x16x128xbf16> to vector<256x128xbf16>
    %c0_27 = arith.constant 0 : index
    %c0_28 = arith.constant 0 : index
    %c0_29 = arith.constant 0 : index
    %c0_30 = arith.constant 0 : index
    %32 = vector.load %arg7[%c0_27, %c0_28, %c0_29, %c0_30] : memref<3x3x128x128xbf16, #tpu.memory_space<vmem>>, vector<1x1x128x128xbf16>
    %33 = vector.shape_cast %32 : vector<1x1x128x128xbf16> to vector<128x128xbf16>
    %cst_31 = arith.constant dense<0.000000e+00> : vector<256x128xf32>
    %34 = tpu.matmul %31, %33, %cst_31 {dimension_numbers = #tpu.dot_dimension_numbers<[1], [0], [0], [1], [0, 0, 1, 1], [], []>} : vector<256x128xbf16>, vector<128x128xbf16>, vector<256x128xf32> -> vector<256x128xf32>
    %35 = arith.addf %29, %34 : vector<256x128xf32>
    %c0_32 = arith.constant 0 : index
    %c1_33 = arith.constant 1 : index
    %c0_34 = arith.constant 0 : index
    %36 = vector.load %arg12[%c0_32, %c1_33, %c0_34] : memref<18x18x128xbf16, #tpu.memory_space<vmem>>, vector<16x16x128xbf16>
    %37 = vector.shape_cast %36 : vector<16x16x128xbf16> to vector<256x128xbf16>
    %c0_35 = arith.constant 0 : index
    %c1_36 = arith.constant 1 : index
    %c0_37 = arith.constant 0 : index
    %c0_38 = arith.constant 0 : index
    %38 = vector.load %arg7[%c0_35, %c1_36, %c0_37, %c0_38] : memref<3x3x128x128xbf16, #tpu.memory_space<vmem>>, vector<1x1x128x128xbf16>
    %39 = vector.shape_cast %38 : vector<1x1x128x128xbf16> to vector<128x128xbf16>
    %cst_39 = arith.constant dense<0.000000e+00> : vector<256x128xf32>
    %40 = tpu.matmul %37, %39, %cst_39 {dimension_numbers = #tpu.dot_dimension_numbers<[1], [0], [0], [1], [0, 0, 1, 1], [], []>} : vector<256x128xbf16>, vector<128x128xbf16>, vector<256x128xf32> -> vector<256x128xf32>
    %41 = arith.addf %35, %40 : vector<256x128xf32>
    %c0_40 = arith.constant 0 : index
    %c2 = arith.constant 2 : index
    %c0_41 = arith.constant 0 : index
    %42 = vector.load %arg12[%c0_40, %c2, %c0_41] : memref<18x18x128xbf16, #tpu.memory_space<vmem>>, vector<16x16x128xbf16>
    %43 = vector.shape_cast %42 : vector<16x16x128xbf16> to vector<256x128xbf16>
    %c0_42 = arith.constant 0 : index
    %c2_43 = arith.constant 2 : index
    %c0_44 = arith.constant 0 : index
    %c0_45 = arith.constant 0 : index
    %44 = vector.load %arg7[%c0_42, %c2_43, %c0_44, %c0_45] : memref<3x3x128x128xbf16, #tpu.memory_space<vmem>>, vector<1x1x128x128xbf16>
    %45 = vector.shape_cast %44 : vector<1x1x128x128xbf16> to vector<128x128xbf16>
    %cst_46 = arith.constant dense<0.000000e+00> : vector<256x128xf32>
    %46 = tpu.matmul %43, %45, %cst_46 {dimension_numbers = #tpu.dot_dimension_numbers<[1], [0], [0], [1], [0, 0, 1, 1], [], []>} : vector<256x128xbf16>, vector<128x128xbf16>, vector<256x128xf32> -> vector<256x128xf32>
    %47 = arith.addf %41, %46 : vector<256x128xf32>
    %c1_47 = arith.constant 1 : index
    %c0_48 = arith.constant 0 : index
    %c0_49 = arith.constant 0 : index
    %48 = vector.load %arg12[%c1_47, %c0_48, %c0_49] : memref<18x18x128xbf16, #tpu.memory_space<vmem>>, vector<16x16x128xbf16>
    %49 = vector.shape_cast %48 : vector<16x16x128xbf16> to vector<256x128xbf16>
    %c1_50 = arith.constant 1 : index
    %c0_51 = arith.constant 0 : index
    %c0_52 = arith.constant 0 : index
    %c0_53 = arith.constant 0 : index
    %50 = vector.load %arg7[%c1_50, %c0_51, %c0_52, %c0_53] : memref<3x3x128x128xbf16, #tpu.memory_space<vmem>>, vector<1x1x128x128xbf16>
    %51 = vector.shape_cast %50 : vector<1x1x128x128xbf16> to vector<128x128xbf16>
    %cst_54 = arith.constant dense<0.000000e+00> : vector<256x128xf32>
    %52 = tpu.matmul %49, %51, %cst_54 {dimension_numbers = #tpu.dot_dimension_numbers<[1], [0], [0], [1], [0, 0, 1, 1], [], []>} : vector<256x128xbf16>, vector<128x128xbf16>, vector<256x128xf32> -> vector<256x128xf32>
    %53 = arith.addf %47, %52 : vector<256x128xf32>
    %c1_55 = arith.constant 1 : index
    %c1_56 = arith.constant 1 : index
    %c0_57 = arith.constant 0 : index
    %54 = vector.load %arg12[%c1_55, %c1_56, %c0_57] : memref<18x18x128xbf16, #tpu.memory_space<vmem>>, vector<16x16x128xbf16>
    %55 = vector.shape_cast %54 : vector<16x16x128xbf16> to vector<256x128xbf16>
    %c1_58 = arith.constant 1 : index
    %c1_59 = arith.constant 1 : index
    %c0_60 = arith.constant 0 : index
    %c0_61 = arith.constant 0 : index
    %56 = vector.load %arg7[%c1_58, %c1_59, %c0_60, %c0_61] : memref<3x3x128x128xbf16, #tpu.memory_space<vmem>>, vector<1x1x128x128xbf16>
    %57 = vector.shape_cast %56 : vector<1x1x128x128xbf16> to vector<128x128xbf16>
    %cst_62 = arith.constant dense<0.000000e+00> : vector<256x128xf32>
    %58 = tpu.matmul %55, %57, %cst_62 {dimension_numbers = #tpu.dot_dimension_numbers<[1], [0], [0], [1], [0, 0, 1, 1], [], []>} : vector<256x128xbf16>, vector<128x128xbf16>, vector<256x128xf32> -> vector<256x128xf32>
    %59 = arith.addf %53, %58 : vector<256x128xf32>
    %c1_63 = arith.constant 1 : index
    %c2_64 = arith.constant 2 : index
    %c0_65 = arith.constant 0 : index
    %60 = vector.load %arg12[%c1_63, %c2_64, %c0_65] : memref<18x18x128xbf16, #tpu.memory_space<vmem>>, vector<16x16x128xbf16>
    %61 = vector.shape_cast %60 : vector<16x16x128xbf16> to vector<256x128xbf16>
    %c1_66 = arith.constant 1 : index
    %c2_67 = arith.constant 2 : index
    %c0_68 = arith.constant 0 : index
    %c0_69 = arith.constant 0 : index
    %62 = vector.load %arg7[%c1_66, %c2_67, %c0_68, %c0_69] : memref<3x3x128x128xbf16, #tpu.memory_space<vmem>>, vector<1x1x128x128xbf16>
    %63 = vector.shape_cast %62 : vector<1x1x128x128xbf16> to vector<128x128xbf16>
    %cst_70 = arith.constant dense<0.000000e+00> : vector<256x128xf32>
    %64 = tpu.matmul %61, %63, %cst_70 {dimension_numbers = #tpu.dot_dimension_numbers<[1], [0], [0], [1], [0, 0, 1, 1], [], []>} : vector<256x128xbf16>, vector<128x128xbf16>, vector<256x128xf32> -> vector<256x128xf32>
    %65 = arith.addf %59, %64 : vector<256x128xf32>
    %c2_71 = arith.constant 2 : index
    %c0_72 = arith.constant 0 : index
    %c0_73 = arith.constant 0 : index
    %66 = vector.load %arg12[%c2_71, %c0_72, %c0_73] : memref<18x18x128xbf16, #tpu.memory_space<vmem>>, vector<16x16x128xbf16>
    %67 = vector.shape_cast %66 : vector<16x16x128xbf16> to vector<256x128xbf16>
    %c2_74 = arith.constant 2 : index
    %c0_75 = arith.constant 0 : index
    %c0_76 = arith.constant 0 : index
    %c0_77 = arith.constant 0 : index
    %68 = vector.load %arg7[%c2_74, %c0_75, %c0_76, %c0_77] : memref<3x3x128x128xbf16, #tpu.memory_space<vmem>>, vector<1x1x128x128xbf16>
    %69 = vector.shape_cast %68 : vector<1x1x128x128xbf16> to vector<128x128xbf16>
    %cst_78 = arith.constant dense<0.000000e+00> : vector<256x128xf32>
    %70 = tpu.matmul %67, %69, %cst_78 {dimension_numbers = #tpu.dot_dimension_numbers<[1], [0], [0], [1], [0, 0, 1, 1], [], []>} : vector<256x128xbf16>, vector<128x128xbf16>, vector<256x128xf32> -> vector<256x128xf32>
    %71 = arith.addf %65, %70 : vector<256x128xf32>
    %c2_79 = arith.constant 2 : index
    %c1_80 = arith.constant 1 : index
    %c0_81 = arith.constant 0 : index
    %72 = vector.load %arg12[%c2_79, %c1_80, %c0_81] : memref<18x18x128xbf16, #tpu.memory_space<vmem>>, vector<16x16x128xbf16>
    %73 = vector.shape_cast %72 : vector<16x16x128xbf16> to vector<256x128xbf16>
    %c2_82 = arith.constant 2 : index
    %c1_83 = arith.constant 1 : index
    %c0_84 = arith.constant 0 : index
    %c0_85 = arith.constant 0 : index
    %74 = vector.load %arg7[%c2_82, %c1_83, %c0_84, %c0_85] : memref<3x3x128x128xbf16, #tpu.memory_space<vmem>>, vector<1x1x128x128xbf16>
    %75 = vector.shape_cast %74 : vector<1x1x128x128xbf16> to vector<128x128xbf16>
    %cst_86 = arith.constant dense<0.000000e+00> : vector<256x128xf32>
    %76 = tpu.matmul %73, %75, %cst_86 {dimension_numbers = #tpu.dot_dimension_numbers<[1], [0], [0], [1], [0, 0, 1, 1], [], []>} : vector<256x128xbf16>, vector<128x128xbf16>, vector<256x128xf32> -> vector<256x128xf32>
    %77 = arith.addf %71, %76 : vector<256x128xf32>
    %c2_87 = arith.constant 2 : index
    %c2_88 = arith.constant 2 : index
    %c0_89 = arith.constant 0 : index
    %78 = vector.load %arg12[%c2_87, %c2_88, %c0_89] : memref<18x18x128xbf16, #tpu.memory_space<vmem>>, vector<16x16x128xbf16>
    %79 = vector.shape_cast %78 : vector<16x16x128xbf16> to vector<256x128xbf16>
    %c2_90 = arith.constant 2 : index
    %c2_91 = arith.constant 2 : index
    %c0_92 = arith.constant 0 : index
    %c0_93 = arith.constant 0 : index
    %80 = vector.load %arg7[%c2_90, %c2_91, %c0_92, %c0_93] : memref<3x3x128x128xbf16, #tpu.memory_space<vmem>>, vector<1x1x128x128xbf16>
    %81 = vector.shape_cast %80 : vector<1x1x128x128xbf16> to vector<128x128xbf16>
    %cst_94 = arith.constant dense<0.000000e+00> : vector<256x128xf32>
    %82 = tpu.matmul %79, %81, %cst_94 {dimension_numbers = #tpu.dot_dimension_numbers<[1], [0], [0], [1], [0, 0, 1, 1], [], []>} : vector<256x128xbf16>, vector<128x128xbf16>, vector<256x128xf32> -> vector<256x128xf32>
    %83 = arith.addf %77, %82 : vector<256x128xf32>
    %c0_95 = arith.constant 0 : index
    %c0_96 = arith.constant 0 : index
    %84 = vector.load %arg8[%c0_95, %c0_96] : memref<1x128xf32, #tpu.memory_space<vmem>>, vector<1x128xf32>
    %85 = vector.broadcast %84 : vector<1x128xf32> to vector<256x128xf32>
    %86 = arith.mulf %83, %85 : vector<256x128xf32>
    %c0_97 = arith.constant 0 : index
    %c0_98 = arith.constant 0 : index
    %87 = vector.load %arg9[%c0_97, %c0_98] : memref<1x128xf32, #tpu.memory_space<vmem>>, vector<1x128xf32>
    %88 = vector.broadcast %87 : vector<1x128xf32> to vector<256x128xf32>
    %89 = arith.addf %86, %88 : vector<256x128xf32>
    %cst_99 = arith.constant 0.000000e+00 : f32
    %90 = vector.broadcast %cst_99 : f32 to vector<256x128xf32>
    %91 = arith.maximumf %89, %90 : vector<256x128xf32>
    %92 = arith.truncf %91 : vector<256x128xf32> to vector<256x128xbf16>
    %c0_100 = arith.constant 0 : index
    %c0_101 = arith.constant 0 : index
    %93 = vector.load %arg10[%c0_100, %c0_101] : memref<128x128xbf16, #tpu.memory_space<vmem>>, vector<128x128xbf16>
    %cst_102 = arith.constant dense<0.000000e+00> : vector<256x128xf32>
    %94 = tpu.matmul %92, %93, %cst_102 {dimension_numbers = #tpu.dot_dimension_numbers<[1], [0], [0], [1], [0, 0, 1, 1], [], []>} : vector<256x128xbf16>, vector<128x128xbf16>, vector<256x128xf32> -> vector<256x128xf32>
    %c0_103 = arith.constant 0 : index
    %c0_104 = arith.constant 0 : index
    %c0_105 = arith.constant 0 : index
    %95 = vector.load %arg11[%c0_103, %c0_104, %c0_105] : memref<1x256x128xf32, #tpu.memory_space<vmem>>, vector<1x256x128xf32>
    %96 = vector.shape_cast %95 : vector<1x256x128xf32> to vector<256x128xf32>
    %97 = vector.shape_cast %94 : vector<256x128xf32> to vector<1x256x128xf32>
    tpu.vector_store %arg11[%c0_103, %c0_104, %c0_105], %97 {strides = array<i32>} : memref<1x256x128xf32, #tpu.memory_space<vmem>>, vector<1x256x128xf32>,
    return
  }
  func.func @transform_0(%arg0: i32) -> (i32, i32, i32) {
    %c0_i32 = arith.constant 0 : i32
    %c0_i32_0 = arith.constant 0 : i32
    %c0_i32_1 = arith.constant 0 : i32
    return %arg0, %c0_i32, %c0_i32_0 : i32, i32, i32
  }
  func.func @transform_1(%arg0: i32) -> (i32, i32) {
    %c0_i32 = arith.constant 0 : i32
    %c0_i32_0 = arith.constant 0 : i32
    %c0_i32_1 = arith.constant 0 : i32
    return %c0_i32, %c0_i32_0 : i32, i32
  }
  func.func @transform_2(%arg0: i32) -> (i32, i32) {
    %c0_i32 = arith.constant 0 : i32
    %c0_i32_0 = arith.constant 0 : i32
    %c0_i32_1 = arith.constant 0 : i32
    return %c0_i32, %c0_i32_0 : i32, i32
  }
  func.func @transform_3(%arg0: i32) -> (i32, i32) {
    %c0_i32 = arith.constant 0 : i32
    %c0_i32_0 = arith.constant 0 : i32
    %c0_i32_1 = arith.constant 0 : i32
    return %c0_i32, %c0_i32_0 : i32, i32
  }
  func.func @transform_4(%arg0: i32) -> (i32, i32) {
    %c0_i32 = arith.constant 0 : i32
    %c0_i32_0 = arith.constant 0 : i32
    %c0_i32_1 = arith.constant 0 : i32
    return %c0_i32, %c0_i32_0 : i32, i32
  }
  func.func @transform_5(%arg0: i32) -> (i32, i32) {
    %c0_i32 = arith.constant 0 : i32
    %c0_i32_0 = arith.constant 0 : i32
    %c0_i32_1 = arith.constant 0 : i32
    return %c0_i32, %c0_i32_0 : i32, i32
  }
  func.func @transform_6(%arg0: i32) -> (i32, i32, i32, i32) {
    %c0_i32 = arith.constant 0 : i32
    %c0_i32_0 = arith.constant 0 : i32
    %c0_i32_1 = arith.constant 0 : i32
    %c0_i32_2 = arith.constant 0 : i32
    %c0_i32_3 = arith.constant 0 : i32
    return %c0_i32, %c0_i32_0, %c0_i32_1, %c0_i32_2 : i32, i32, i32, i32
  }
  func.func @transform_7(%arg0: i32) -> (i32, i32) {
    %c0_i32 = arith.constant 0 : i32
    %c0_i32_0 = arith.constant 0 : i32
    %c0_i32_1 = arith.constant 0 : i32
    return %c0_i32, %c0_i32_0 : i32, i32
  }
  func.func @transform_8(%arg0: i32) -> (i32, i32) {
    %c0_i32 = arith.constant 0 : i32
    %c0_i32_0 = arith.constant 0 : i32
    %c0_i32_1 = arith.constant 0 : i32
    return %c0_i32, %c0_i32_0 : i32, i32
  }
  func.func @transform_9(%arg0: i32) -> (i32, i32) {
    %c0_i32 = arith.constant 0 : i32
    %c0_i32_0 = arith.constant 0 : i32
    %c0_i32_1 = arith.constant 0 : i32
    return %c0_i32, %c0_i32_0 : i32, i32
  }
  func.func @transform_10(%arg0: i32) -> (i32, i32, i32) {
    %c0_i32 = arith.constant 0 : i32
    %c0_i32_0 = arith.constant 0 : i32
    %c0_i32_1 = arith.constant 0 : i32
    return %arg0, %c0_i32, %c0_i32_0 : i32, i32, i32
  }
}

</mosaic_0001>

<llo_original>
// kernel: tpu_custom_call.1
$region0: #{tpu_custom_call.1}
  #allocation0 [shape = 'u32[]', space=smem, size = 0x4, offset = 0x4, fixed_abs, tag = 'smem constant byte address 0x4 - core index']
  #allocation1 [shape = 'u32[144,128]{1,0:T(1,128)}', space=vmem, size = 0x12000, scoped, tag = 'internal scratch']
  #allocation2 [shape = 'bf16[18,18,128]{2,1,0:T(8,128)(2,1)}', space=vmem, size = 0x1b000, scoped, tag = 'scratch operand']
  %s0 = inlined_call_operand.hbm [shape: f32[2,256,128], index: 0, kind: input, shape index: {}]
  %s1 = inlined_call_operand.vmem [shape: f32[1,128], index: 1, kind: input, shape index: {}]
  %s2 = inlined_call_operand.vmem [shape: f32[1,128], index: 2, kind: input, shape index: {}]
  %s3 = inlined_call_operand.hbm [shape: bf16[128,128], index: 3, kind: input, shape index: {}]
  %s4 = inlined_call_operand.vmem [shape: f32[1,128], index: 4, kind: input, shape index: {}]
  %s5 = inlined_call_operand.vmem [shape: f32[1,128], index: 5, kind: input, shape index: {}]
  %s6 = inlined_call_operand.hbm [shape: bf16[3,3,128,128], index: 6, kind: input, shape index: {}]
  %s7 = inlined_call_operand.vmem [shape: f32[1,128], index: 7, kind: input, shape index: {}]
  %s8 = inlined_call_operand.vmem [shape: f32[1,128], index: 8, kind: input, shape index: {}]
  %s9 = inlined_call_operand.hbm [shape: bf16[128,128], index: 9, kind: input, shape index: {}]
  %s10 = inlined_call_operand.hbm [shape: f32[2,256,128], index: 10, kind: output, shape index: {}]
  %s11 = sld [smem:[#allocation0]]
  $region89: #{tpu_custom_call.1} parent=0
    _
  %s13 = ssub.s32 1, %s11
  %s14 = scalar_select 0, %s13, %s11
  $region1: #{tpu_custom_call.1} parent=0
    #allocation3 [shape = 'u8[262144]{0}', space=vmem, size = 0x40000, scoped, tag = 'input window, operand 0']
    #allocation4 [shape = 's32[2]{0}', space=sflag, size = 0x8, scoped, tag = 'scoped memory for tpu_custom_call.1']
    #allocation5 [shape = 's32[2]{0}', space=sflag, size = 0x8, scoped, tag = 'scoped memory for tpu_custom_call.1']
    #allocation6 [shape = 'u8[32768]{0}', space=vmem, size = 0x8000, scoped, tag = 'input window, operand 3, single buffered']
    #allocation7 [shape = 's32[1]{0}', space=sflag, size = 0x4, scoped, tag = 'scoped memory for tpu_custom_call.1']
    #allocation8 [shape = 'u8[294912]{0}', space=vmem, size = 0x48000, scoped, tag = 'input window, operand 6, single buffered']
    #allocation9 [shape = 'u8[32768]{0}', space=vmem, size = 0x8000, scoped, tag = 'input window, operand 9, single buffered']
    #allocation10 [shape = 's32[1]{0}', space=sflag, size = 0x4, scoped, tag = 'scoped memory for tpu_custom_call.1']
    #allocation11 [shape = 'u8[262144]{0}', space=vmem, size = 0x40000, scoped, tag = 'output window, operand 0']
    %15 = vsyncpa [#allocation4], 0
    %s16 = scalar_lea.sflag [#allocation4], 1
    %17 = vsyncpa %s16, 0
    %18 = vsyncpa [#allocation7], 0
    %19 = vsyncpa [#allocation10], 0
    %20 = vsyncpa [#allocation5], 0
    %s21 = scalar_lea.sflag [#allocation5], 1
    %22 = vsyncpa %s21, 0
    loop: start=0, step=1, limit=4
    $region2: #{tpu_custom_call.1} parent=1 // loop_pre_header
      _
    $region3: #{tpu_custom_call.1} parent=1 // loop_header
      %s24 = sphi 0, %s28
      %p25 = scmp.ge.s32.totalorder %s24, 4
      %s34 = sphi 0, %s36
      %s37 = sphi 0, %s34
      %s38 = sphi 0, %s37
      %s54 = sphi 0, %s38
      %s58 = sphi 0, %s58
      %s60 = sphi 0, %s58
      %s61 = sphi 0, %s60
      %s75 = sphi 0, %s61
      %s79 = sphi 0, %s79
      %s81 = sphi 0, %s79
      %s82 = sphi 0, %s81
      %s96 = sphi 0, %s82
      %s100 = sphi 0, %s100
      %s102 = sphi 0, %s100
      %s103 = sphi 0, %s102
      %s117 = sphi 0, %s103
      %s121 = sphi 0, %s121
      %s123 = sphi 0, %s121
      %s124 = sphi 0, %s123
      %s138 = sphi 0, %s124
      %s142 = sphi 0, %s142
      %s144 = sphi 0, %s142
      %s145 = sphi 0, %s144
      %s159 = sphi 0, %s145
      %s163 = sphi 0, %s163
      %s165 = sphi 0, %s163
      %s166 = sphi 0, %s165
      %s180 = sphi 0, %s166
      %s184 = sphi 0, %s184
      %s186 = sphi 0, %s184
      %s187 = sphi 0, %s186
      %s201 = sphi 0, %s187
      %s205 = sphi 0, %s205
      %s207 = sphi 0, %s205
      %s208 = sphi 0, %s207
      %s222 = sphi 0, %s208
      %s226 = sphi 0, %s226
      %s228 = sphi 0, %s226
      %s229 = sphi 0, %s228
      %s243 = sphi 0, %s229
      %s249 = sphi 0, %s251
      %s252 = sphi 0, %s249
      %s253 = sphi 0, %s252
      %s269 = sphi 0, %s253
    $region4: #{tpu_custom_call.1} parent=1 // loop_header_branch
      %27 = sbr.rel (%p25) target = $region8
    $region5: #{tpu_custom_call.1} parent=1 // loop_body
      %s29 = ssub.s32 %s24, 1
      %s30 = ssub.s32 %s24, 2
      %s31 = sadd.s32 %s24, 1
      %s32 = ssub.s32 %s24, %s31
      %p33 = scmp.eq.s32.totalorder %s32, 0
      %s35 = sadd.s32 %s34, 1
      %s36 = scalar_select %p33, %s34, %s35
      %p39 = pneg %p33
      %p40 = scmp.eq.s32.totalorder %s24, 1
      %p41 = por %p39, %p40
      %p42 = scmp.ne.s32.totalorder %s34, %s37
      %p43 = scmp.eq.s32.totalorder %s24, 0
      %p44 = por %p42, %p43
      %p45 = scmp.ne.s32.totalorder %s34, %s37
      %p46 = scmp.eq.s32.totalorder %s29, 1
      %p47 = por %p45, %p46
      %p48 = scmp.ne.s32.totalorder %s37, %s38
      %p49 = scmp.eq.s32.totalorder %s29, 0
      %p50 = por %p48, %p49
      %p51 = scmp.ne.s32.totalorder %s37, %s38
      %p52 = scmp.eq.s32.totalorder %s30, 1
      %p53 = por %p51, %p52
      %p55 = scmp.ne.s32.totalorder %s38, %s54
      %p56 = scmp.eq.s32.totalorder %s30, 0
      %p57 = por %p55, %p56
      %s59 = sadd.s32 %s58, 1
      %p62 = scmp.eq.s32.totalorder %s24, 1
      %p63 = scmp.ne.s32.totalorder %s58, %s60
      %p64 = scmp.eq.s32.totalorder %s24, 0
      %p65 = por %p63, %p64
      %p66 = scmp.ne.s32.totalorder %s58, %s60
      %p67 = scmp.eq.s32.totalorder %s29, 1
      %p68 = por %p66, %p67
      %p69 = scmp.ne.s32.totalorder %s60, %s61
      %p70 = scmp.eq.s32.totalorder %s29, 0
      %p71 = por %p69, %p70
      %p72 = scmp.ne.s32.totalorder %s60, %s61
      %p73 = scmp.eq.s32.totalorder %s30, 1
      %p74 = por %p72, %p73
      %p76 = scmp.ne.s32.totalorder %s61, %s75
      %p77 = scmp.eq.s32.totalorder %s30, 0
      %p78 = por %p76, %p77
      %s80 = sadd.s32 %s79, 1
      %p83 = scmp.eq.s32.totalorder %s24, 1
      %p84 = scmp.ne.s32.totalorder %s79, %s81
      %p85 = scmp.eq.s32.totalorder %s24, 0
      %p86 = por %p84, %p85
      %p87 = scmp.ne.s32.totalorder %s79, %s81
      %p88 = scmp.eq.s32.totalorder %s29, 1
      %p89 = por %p87, %p88
      %p90 = scmp.ne.s32.totalorder %s81, %s82
      %p91 = scmp.eq.s32.totalorder %s29, 0
      %p92 = por %p90, %p91
      %p93 = scmp.ne.s32.totalorder %s81, %s82
      %p94 = scmp.eq.s32.totalorder %s30, 1
      %p95 = por %p93, %p94
      %p97 = scmp.ne.s32.totalorder %s82, %s96
      %p98 = scmp.eq.s32.totalorder %s30, 0
      %p99 = por %p97, %p98
      %s101 = sadd.s32 %s100, 1
      %p104 = scmp.eq.s32.totalorder %s24, 1
      %p105 = scmp.ne.s32.totalorder %s100, %s102
      %p106 = scmp.eq.s32.totalorder %s24, 0
      %p107 = por %p105, %p106
      %p108 = scmp.ne.s32.totalorder %s100, %s102
      %p109 = scmp.eq.s32.totalorder %s29, 1
      %p110 = por %p108, %p109
      %p111 = scmp.ne.s32.totalorder %s102, %s103
      %p112 = scmp.eq.s32.totalorder %s29, 0
      %p113 = por %p111, %p112
      %p114 = scmp.ne.s32.totalorder %s102, %s103
      %p115 = scmp.eq.s32.totalorder %s30, 1
      %p116 = por %p114, %p115
      %p118 = scmp.ne.s32.totalorder %s103, %s117
      %p119 = scmp.eq.s32.totalorder %s30, 0
      %p120 = por %p118, %p119
      %s122 = sadd.s32 %s121, 1
      %p125 = scmp.eq.s32.totalorder %s24, 1
      %p126 = scmp.ne.s32.totalorder %s121, %s123
      %p127 = scmp.eq.s32.totalorder %s24, 0
      %p128 = por %p126, %p127
      %p129 = scmp.ne.s32.totalorder %s121, %s123
      %p130 = scmp.eq.s32.totalorder %s29, 1
      %p131 = por %p129, %p130
      %p132 = scmp.ne.s32.totalorder %s123, %s124
      %p133 = scmp.eq.s32.totalorder %s29, 0
      %p134 = por %p132, %p133
      %p135 = scmp.ne.s32.totalorder %s123, %s124
      %p136 = scmp.eq.s32.totalorder %s30, 1
      %p137 = por %p135, %p136
      %p139 = scmp.ne.s32.totalorder %s124, %s138
      %p140 = scmp.eq.s32.totalorder %s30, 0
      %p141 = por %p139, %p140
      %s143 = sadd.s32 %s142, 1
      %p146 = scmp.eq.s32.totalorder %s24, 1
      %p147 = scmp.ne.s32.totalorder %s142, %s144
      %p148 = scmp.eq.s32.totalorder %s24, 0
      %p149 = por %p147, %p148
      %p150 = scmp.ne.s32.totalorder %s142, %s144
      %p151 = scmp.eq.s32.totalorder %s29, 1
      %p152 = por %p150, %p151
      %p153 = scmp.ne.s32.totalorder %s144, %s145
      %p154 = scmp.eq.s32.totalorder %s29, 0
      %p155 = por %p153, %p154
      %p156 = scmp.ne.s32.totalorder %s144, %s145
      %p157 = scmp.eq.s32.totalorder %s30, 1
      %p158 = por %p156, %p157
      %p160 = scmp.ne.s32.totalorder %s145, %s159
      %p161 = scmp.eq.s32.totalorder %s30, 0
      %p162 = por %p160, %p161
      %s164 = sadd.s32 %s163, 1
      %p167 = scmp.eq.s32.totalorder %s24, 1
      %p168 = scmp.ne.s32.totalorder %s163, %s165
      %p169 = scmp.eq.s32.totalorder %s24, 0
      %p170 = por %p168, %p169
      %p171 = scmp.ne.s32.totalorder %s163, %s165
      %p172 = scmp.eq.s32.totalorder %s29, 1
      %p173 = por %p171, %p172
      %p174 = scmp.ne.s32.totalorder %s165, %s166
      %p175 = scmp.eq.s32.totalorder %s29, 0
      %p176 = por %p174, %p175
      %p177 = scmp.ne.s32.totalorder %s165, %s166
      %p178 = scmp.eq.s32.totalorder %s30, 1
      %p179 = por %p177, %p178
      %p181 = scmp.ne.s32.totalorder %s166, %s180
      %p182 = scmp.eq.s32.totalorder %s30, 0
      %p183 = por %p181, %p182
      %s185 = sadd.s32 %s184, 1
      %p188 = scmp.eq.s32.totalorder %s24, 1
      %p189 = scmp.ne.s32.totalorder %s184, %s186
      %p190 = scmp.eq.s32.totalorder %s24, 0
      %p191 = por %p189, %p190
      %p192 = scmp.ne.s32.totalorder %s184, %s186
      %p193 = scmp.eq.s32.totalorder %s29, 1
      %p194 = por %p192, %p193
      %p195 = scmp.ne.s32.totalorder %s186, %s187
      %p196 = scmp.eq.s32.totalorder %s29, 0
      %p197 = por %p195, %p196
      %p198 = scmp.ne.s32.totalorder %s186, %s187
      %p199 = scmp.eq.s32.totalorder %s30, 1
      %p200 = por %p198, %p199
      %p202 = scmp.ne.s32.totalorder %s187, %s201
      %p203 = scmp.eq.s32.totalorder %s30, 0
      %p204 = por %p202, %p203
      %s206 = sadd.s32 %s205, 1
      %p209 = scmp.eq.s32.totalorder %s24, 1
      %p210 = scmp.ne.s32.totalorder %s205, %s207
      %p211 = scmp.eq.s32.totalorder %s24, 0
      %p212 = por %p210, %p211
      %p213 = scmp.ne.s32.totalorder %s205, %s207
      %p214 = scmp.eq.s32.totalorder %s29, 1
      %p215 = por %p213, %p214
      %p216 = scmp.ne.s32.totalorder %s207, %s208
      %p217 = scmp.eq.s32.totalorder %s29, 0
      %p218 = por %p216, %p217
      %p219 = scmp.ne.s32.totalorder %s207, %s208
      %p220 = scmp.eq.s32.totalorder %s30, 1
      %p221 = por %p219, %p220
      %p223 = scmp.ne.s32.totalorder %s208, %s222
      %p224 = scmp.eq.s32.totalorder %s30, 0
      %p225 = por %p223, %p224
      %s227 = sadd.s32 %s226, 1
      %p230 = scmp.eq.s32.totalorder %s24, 1
      %p231 = scmp.ne.s32.totalorder %s226, %s228
      %p232 = scmp.eq.s32.totalorder %s24, 0
      %p233 = por %p231, %p232
      %p234 = scmp.ne.s32.totalorder %s226, %s228
      %p235 = scmp.eq.s32.totalorder %s29, 1
      %p236 = por %p234, %p235
      %p237 = scmp.ne.s32.totalorder %s228, %s229
      %p238 = scmp.eq.s32.totalorder %s29, 0
      %p239 = por %p237, %p238
      %p240 = scmp.ne.s32.totalorder %s228, %s229
      %p241 = scmp.eq.s32.totalorder %s30, 1
      %p242 = por %p240, %p241
      %p244 = scmp.ne.s32.totalorder %s229, %s243
      %p245 = scmp.eq.s32.totalorder %s30, 0
      %p246 = por %p244, %p245
      %s247 = ssub.s32 %s24, %s31
      %p248 = scmp.eq.s32.totalorder %s247, 0
      %s250 = sadd.s32 %s249, 1
      %s251 = scalar_select %p248, %s249, %s250
      %p254 = pneg %p248
      %p255 = scmp.eq.s32.totalorder %s24, 1
      %p256 = por %p254, %p255
      %p257 = scmp.ne.s32.totalorder %s249, %s252
      %p258 = scmp.eq.s32.totalorder %s24, 0
      %p259 = por %p257, %p258
      %p260 = scmp.ne.s32.totalorder %s249, %s252
      %p261 = scmp.eq.s32.totalorder %s29, 1
      %p262 = por %p260, %p261
      %p263 = scmp.ne.s32.totalorder %s252, %s253
      %p264 = scmp.eq.s32.totalorder %s29, 0
      %p265 = por %p263, %p264
      %p266 = scmp.ne.s32.totalorder %s252, %s253
      %p267 = scmp.eq.s32.totalorder %s30, 1
      %p268 = por %p266, %p267
      %p270 = scmp.ne.s32.totalorder %s253, %s269
      %p271 = scmp.eq.s32.totalorder %s30, 0
      %p272 = por %p270, %p271
      %p273 = scmp.le.s32.totalorder 1, %s24
      %p274 = scmp.lt.s32.totalorder %s24, 3
      %p275 = pnand %p273, %p274
      %p276 = pneg %p275
      // Predicated region
      $region9: #{tpu_custom_call.1} parent=5 // pred_check
        _
      $region10: #{tpu_custom_call.1} parent=5 // pred_check_branch
        %278 = sbr.rel (%p275) target = $region12
      $region11: #{tpu_custom_call.1} parent=5 // pred_region
        %s279 = ssub.s32 %s24, 1
        // Predicated region
        $region13: #{tpu_custom_call.1} parent=11 // pred_check
          %p280 = pneg %p71
        $region14: #{tpu_custom_call.1} parent=11 // pred_check_branch
          %282 = sbr.rel (%p280) target = $region16
        $region15: #{tpu_custom_call.1} parent=11 // pred_region
          _
        $region16: #{tpu_custom_call.1} parent=11 // pred_fallthru
          _
        // Predicated region
        $region17: #{tpu_custom_call.1} parent=11 // pred_check
          %p283 = pneg %p92
        $region18: #{tpu_custom_call.1} parent=11 // pred_check_branch
          %285 = sbr.rel (%p283) target = $region20
        $region19: #{tpu_custom_call.1} parent=11 // pred_region
          _
        $region20: #{tpu_custom_call.1} parent=11 // pred_fallthru
          _
        // Predicated region
        $region21: #{tpu_custom_call.1} parent=11 // pred_check
          %p286 = pneg %p113
        $region22: #{tpu_custom_call.1} parent=11 // pred_check_branch
          %288 = sbr.rel (%p286) target = $region24
        $region23: #{tpu_custom_call.1} parent=11 // pred_region
          %s290 = ssub.s32 1024, 1024
          %291 = vsyncadd [#allocation7], %s290
          %s292 = sshll.u32 [#allocation6], 4
          %s293 = int_to_ptr.vmem [resolvable:$true] %s292
          %298 = dma.hbm_to_vmem [thread:$0]  %s3, 1024, %s293, [#allocation7], 64, 64, 4
        $region24: #{tpu_custom_call.1} parent=11 // pred_fallthru
          _
        // Predicated region
        $region25: #{tpu_custom_call.1} parent=11 // pred_check
          %p299 = pneg %p134
        $region26: #{tpu_custom_call.1} parent=11 // pred_check_branch
          %301 = sbr.rel (%p299) target = $region28
        $region27: #{tpu_custom_call.1} parent=11 // pred_region
          _
        $region28: #{tpu_custom_call.1} parent=11 // pred_fallthru
          _
        // Predicated region
        $region29: #{tpu_custom_call.1} parent=11 // pred_check
          %p302 = pneg %p155
        $region30: #{tpu_custom_call.1} parent=11 // pred_check_branch
          %304 = sbr.rel (%p302) target = $region32
        $region31: #{tpu_custom_call.1} parent=11 // pred_region
          _
        $region32: #{tpu_custom_call.1} parent=11 // pred_fallthru
          _
        // Predicated region
        $region33: #{tpu_custom_call.1} parent=11 // pred_check
          %p305 = pneg %p176
        $region34: #{tpu_custom_call.1} parent=11 // pred_check_branch
          %307 = sbr.rel (%p305) target = $region36
        $region35: #{tpu_custom_call.1} parent=11 // pred_region
          %s309 = ssub.s32 9216, 9216
          %310 = vsyncadd [#allocation7], %s309
          %s311 = sshll.u32 [#allocation8], 4
          %s312 = int_to_ptr.vmem [resolvable:$true] %s311
          %317 = dma.hbm_to_vmem [thread:$0]  %s6, 9216, %s312, [#allocation7], 64, 64, 4
        $region36: #{tpu_custom_call.1} parent=11 // pred_fallthru
          _
        // Predicated region
        $region37: #{tpu_custom_call.1} parent=11 // pred_check
          %p318 = pneg %p197
        $region38: #{tpu_custom_call.1} parent=11 // pred_check_branch
          %320 = sbr.rel (%p318) target = $region40
        $region39: #{tpu_custom_call.1} parent=11 // pred_region
          _
        $region40: #{tpu_custom_call.1} parent=11 // pred_fallthru
          _
        // Predicated region
        $region41: #{tpu_custom_call.1} parent=11 // pred_check
          %p321 = pneg %p218
        $region42: #{tpu_custom_call.1} parent=11 // pred_check_branch
          %323 = sbr.rel (%p321) target = $region44
        $region43: #{tpu_custom_call.1} parent=11 // pred_region
          _
        $region44: #{tpu_custom_call.1} parent=11 // pred_fallthru
          _
        // Predicated region
        $region45: #{tpu_custom_call.1} parent=11 // pred_check
          %p324 = pneg %p239
        $region46: #{tpu_custom_call.1} parent=11 // pred_check_branch
          %326 = sbr.rel (%p324) target = $region48
        $region47: #{tpu_custom_call.1} parent=11 // pred_region
          %s328 = ssub.s32 1024, 1024
          %329 = vsyncadd [#allocation10], %s328
          %s330 = sshll.u32 [#allocation9], 4
          %s331 = int_to_ptr.vmem [resolvable:$true] %s330
          %336 = dma.hbm_to_vmem [thread:$0]  %s9, 1024, %s331, [#allocation10], 64, 64, 4
        $region48: #{tpu_custom_call.1} parent=11 // pred_fallthru
          _
      $region12: #{tpu_custom_call.1} parent=5 // pred_fallthru
        _
      %p337 = scmp.lt.s32.totalorder %s24, 2
      // Predicated region
      $region49: #{tpu_custom_call.1} parent=5 // pred_check
        %p338 = pneg %p337
      $region50: #{tpu_custom_call.1} parent=5 // pred_check_branch
        %340 = sbr.rel (%p338) target = $region52
      $region51: #{tpu_custom_call.1} parent=5 // pred_region
        // Predicated region
        $region53: #{tpu_custom_call.1} parent=51 // pred_check
          %p341 = pneg %p44
        $region54: #{tpu_custom_call.1} parent=51 // pred_check_branch
          %343 = sbr.rel (%p341) target = $region56
        $region55: #{tpu_custom_call.1} parent=51 // pred_region
          %s344 = sand.u32 %s34, 1
          %s345 = scalar_lea.sflag [#allocation4], %s344
          %s346 = sand.u32 %s34, 1
          %s347 = smul.addr %s346, 256
          %s348 = scalar_lea.vmem [#allocation3], %s347
          %s350 = ssub.s32 4096, 4096
          %351 = vsyncadd %s345, %s350
          %s352 = smul.addr %s24, 32
          %s353 = smul.addr %s352, 128
          %s354 = scalar_lea.hbm %s0, %s353
          %s355 = sshll.u32 %s348, 4
          %s356 = int_to_ptr.vmem [resolvable:$true] %s355
          %361 = dma.hbm_to_vmem [thread:$0]  %s354, 4096, %s356, %s345, 128, 128, 8
        $region56: #{tpu_custom_call.1} parent=51 // pred_fallthru
          _
      $region52: #{tpu_custom_call.1} parent=5 // pred_fallthru
        _
      %p362 = scmp.le.s32.totalorder 1, %s24
      %p363 = scmp.lt.s32.totalorder %s24, 3
      %p364 = pnand %p362, %p363
      %p365 = pneg %p364
      // Predicated region
      $region57: #{tpu_custom_call.1} parent=5 // pred_check
        _
      $region58: #{tpu_custom_call.1} parent=5 // pred_check_branch
        %367 = sbr.rel (%p364) target = $region60
      $region59: #{tpu_custom_call.1} parent=5 // pred_region
        %s368 = ssub.s32 %s24, 1
        %s369 = sand.u32 %s37, 1
        %s370 = scalar_lea.sflag [#allocation4], %s369
        %s371 = sand.u32 %s37, 1
        %s372 = smul.addr %s371, 256
        %s373 = scalar_lea.vmem [#allocation3], %s372
        // Predicated region
        $region61: #{tpu_custom_call.1} parent=59 // pred_check
          %p374 = pneg %p50
        $region62: #{tpu_custom_call.1} parent=59 // pred_check_branch
          %376 = sbr.rel (%p374) target = $region64
        $region63: #{tpu_custom_call.1} parent=59 // pred_region
          %377 = dma.done %s370, 4096
        $region64: #{tpu_custom_call.1} parent=59 // pred_fallthru
          _
        // Predicated region
        $region65: #{tpu_custom_call.1} parent=59 // pred_check
          %p378 = pneg %p113
        $region66: #{tpu_custom_call.1} parent=59 // pred_check_branch
          %380 = sbr.rel (%p378) target = $region68
        $region67: #{tpu_custom_call.1} parent=59 // pred_region
          %381 = dma.done [#allocation7], 1024
        $region68: #{tpu_custom_call.1} parent=59 // pred_fallthru
          _
        // Predicated region
        $region69: #{tpu_custom_call.1} parent=59 // pred_check
          %p382 = pneg %p176
        $region70: #{tpu_custom_call.1} parent=59 // pred_check_branch
          %384 = sbr.rel (%p382) target = $region72
        $region71: #{tpu_custom_call.1} parent=59 // pred_region
          %385 = dma.done [#allocation7], 9216
        $region72: #{tpu_custom_call.1} parent=59 // pred_fallthru
          _
        // Predicated region
        $region73: #{tpu_custom_call.1} parent=59 // pred_check
          %p386 = pneg %p239
        $region74: #{tpu_custom_call.1} parent=59 // pred_check_branch
          %388 = sbr.rel (%p386) target = $region76
        $region75: #{tpu_custom_call.1} parent=59 // pred_region
          %389 = dma.done [#allocation10], 1024
        $region76: #{tpu_custom_call.1} parent=59 // pred_fallthru
          _
        %s390 = sand.u32 %s37, 1
        %s391 = scalar_lea.sflag [#allocation4], %s390
        %s392 = sand.u32 %s37, 1
        %s393 = smul.addr %s392, 256
        %s394 = scalar_lea.vmem [#allocation3], %s393
        %p395 = pneg %p50
        %p396 = pneg %p47
        %p397 = pneg %p71
        %p398 = pneg %p68
        %p399 = pneg %p92
        %p400 = pneg %p89
        %p401 = pneg %p113
        %p402 = pneg %p110
        %p403 = pneg %p134
        %p404 = pneg %p131
        %p405 = pneg %p155
        %p406 = pneg %p152
        %p407 = pneg %p176
        %p408 = pneg %p173
        %p409 = pneg %p197
        %p410 = pneg %p194
        %p411 = pneg %p218
        %p412 = pneg %p215
        %p413 = pneg %p239
        %p414 = pneg %p236
        %p415 = pneg %p265
        %p416 = pneg %p262
        %s417 = sand.u32 %s252, 1
        %s418 = scalar_lea.sflag [#allocation5], %s417
        %s419 = sand.u32 %s252, 1
        %s420 = smul.addr %s419, 256
        %s421 = scalar_lea.vmem [#allocation11], %s420
        %v423 = vld [vmem:[%s373] sm:$0xff]
        %v424 = vld [vmem:[%s373 + $0x8] sm:$0xff]
        %v425 = vld [vmem:[%s373 + $0x10] sm:$0xff]
        %v426 = vld [vmem:[%s373 + $0x18] sm:$0xff]
        %v427 = vld [vmem:[%s373 + $0x20] sm:$0xff]
        %v428 = vld [vmem:[%s373 + $0x28] sm:$0xff]
        %v429 = vld [vmem:[%s373 + $0x30] sm:$0xff]
        %v430 = vld [vmem:[%s373 + $0x38] sm:$0xff]
        %v431 = vld [vmem:[%s373 + $0x40] sm:$0xff]
        %v432 = vld [vmem:[%s373 + $0x48] sm:$0xff]
        %v433 = vld [vmem:[%s373 + $0x50] sm:$0xff]
        %v434 = vld [vmem:[%s373 + $0x58] sm:$0xff]
        %v435 = vld [vmem:[%s373 + $0x60] sm:$0xff]
        %v436 = vld [vmem:[%s373 + $0x68] sm:$0xff]
        %v437 = vld [vmem:[%s373 + $0x70] sm:$0xff]
        %v438 = vld [vmem:[%s373 + $0x78] sm:$0xff]
        %v439 = vld [vmem:[%s373 + $0x80] sm:$0xff]
        %v440 = vld [vmem:[%s373 + $0x88] sm:$0xff]
        %v441 = vld [vmem:[%s373 + $0x90] sm:$0xff]
        %v442 = vld [vmem:[%s373 + $0x98] sm:$0xff]
        %v443 = vld [vmem:[%s373 + $0xa0] sm:$0xff]
        %v444 = vld [vmem:[%s373 + $0xa8] sm:$0xff]
        %v445 = vld [vmem:[%s373 + $0xb0] sm:$0xff]
        %v446 = vld [vmem:[%s373 + $0xb8] sm:$0xff]
        %v447 = vld [vmem:[%s373 + $0xc0] sm:$0xff]
        %v448 = vld [vmem:[%s373 + $0xc8] sm:$0xff]
        %v449 = vld [vmem:[%s373 + $0xd0] sm:$0xff]
        %v450 = vld [vmem:[%s373 + $0xd8] sm:$0xff]
        %v451 = vld [vmem:[%s373 + $0xe0] sm:$0xff]
        %v452 = vld [vmem:[%s373 + $0xe8] sm:$0xff]
        %v453 = vld [vmem:[%s373 + $0xf0] sm:$0xff]
        %v454 = vld [vmem:[%s373 + $0xf8] sm:$0xff]
        %v455 = vld [vmem:[%s1] sm:$0x1]
        %v457 = vlaneseq
        %v458 = vshrl.u32 %v457, 7
        %v459 = vsub.s32 0, %v458
        %v460 = vrot.slane %v455, %v459
        %v462 = vmul.f32 %v423, %v460
        %v463 = vmul.f32 %v424, %v460
        %v464 = vmul.f32 %v425, %v460
        %v465 = vmul.f32 %v426, %v460
        %v466 = vmul.f32 %v427, %v460
        %v467 = vmul.f32 %v428, %v460
        %v468 = vmul.f32 %v429, %v460
        %v469 = vmul.f32 %v430, %v460
        %v470 = vmul.f32 %v431, %v460
        %v471 = vmul.f32 %v432, %v460
        %v472 = vmul.f32 %v433, %v460
        %v473 = vmul.f32 %v434, %v460
        %v474 = vmul.f32 %v435, %v460
        %v475 = vmul.f32 %v436, %v460
        %v476 = vmul.f32 %v437, %v460
        %v477 = vmul.f32 %v438, %v460
        %v478 = vmul.f32 %v439, %v460
        %v479 = vmul.f32 %v440, %v460
        %v480 = vmul.f32 %v441, %v460
        %v481 = vmul.f32 %v442, %v460
        %v482 = vmul.f32 %v443, %v460
        %v483 = vmul.f32 %v444, %v460
        %v484 = vmul.f32 %v445, %v460
        %v485 = vmul.f32 %v446, %v460
        %v486 = vmul.f32 %v447, %v460
        %v487 = vmul.f32 %v448, %v460
        %v488 = vmul.f32 %v449, %v460
        %v489 = vmul.f32 %v450, %v460
        %v490 = vmul.f32 %v451, %v460
        %v491 = vmul.f32 %v452, %v460
        %v492 = vmul.f32 %v453, %v460
        %v493 = vmul.f32 %v454, %v460
        %v494 = vld [vmem:[%s2] sm:$0x1]
        %v496 = vlaneseq
        %v497 = vshrl.u32 %v496, 7
        %v498 = vsub.s32 0, %v497
        %v499 = vrot.slane %v494, %v498
        %v501 = vadd.f32 %v462, %v499
        %v502 = vadd.f32 %v463, %v499
        %v503 = vadd.f32 %v464, %v499
        %v504 = vadd.f32 %v465, %v499
        %v505 = vadd.f32 %v466, %v499
        %v506 = vadd.f32 %v467, %v499
        %v507 = vadd.f32 %v468, %v499
        %v508 = vadd.f32 %v469, %v499
        %v509 = vadd.f32 %v470, %v499
        %v510 = vadd.f32 %v471, %v499
        %v511 = vadd.f32 %v472, %v499
        %v512 = vadd.f32 %v473, %v499
        %v513 = vadd.f32 %v474, %v499
        %v514 = vadd.f32 %v475, %v499
        %v515 = vadd.f32 %v476, %v499
        %v516 = vadd.f32 %v477, %v499
        %v517 = vadd.f32 %v478, %v499
        %v518 = vadd.f32 %v479, %v499
        %v519 = vadd.f32 %v480, %v499
        %v520 = vadd.f32 %v481, %v499
        %v521 = vadd.f32 %v482, %v499
        %v522 = vadd.f32 %v483, %v499
        %v523 = vadd.f32 %v484, %v499
        %v524 = vadd.f32 %v485, %v499
        %v525 = vadd.f32 %v486, %v499
        %v526 = vadd.f32 %v487, %v499
        %v527 = vadd.f32 %v488, %v499
        %v528 = vadd.f32 %v489, %v499
        %v529 = vadd.f32 %v490, %v499
        %v530 = vadd.f32 %v491, %v499
        %v531 = vadd.f32 %v492, %v499
        %v532 = vadd.f32 %v493, %v499
        %v533 = vmax.f32 %v501, 0.0
        %v534 = vmax.f32 %v502, 0.0
        %v535 = vmax.f32 %v503, 0.0
        %v536 = vmax.f32 %v504, 0.0
        %v537 = vmax.f32 %v505, 0.0
        %v538 = vmax.f32 %v506, 0.0
        %v539 = vmax.f32 %v507, 0.0
        %v540 = vmax.f32 %v508, 0.0
        %v541 = vmax.f32 %v509, 0.0
        %v542 = vmax.f32 %v510, 0.0
        %v543 = vmax.f32 %v511, 0.0
        %v544 = vmax.f32 %v512, 0.0
        %v545 = vmax.f32 %v513, 0.0
        %v546 = vmax.f32 %v514, 0.0
        %v547 = vmax.f32 %v515, 0.0
        %v548 = vmax.f32 %v516, 0.0
        %v549 = vmax.f32 %v517, 0.0
        %v550 = vmax.f32 %v518, 0.0
        %v551 = vmax.f32 %v519, 0.0
        %v552 = vmax.f32 %v520, 0.0
        %v553 = vmax.f32 %v521, 0.0
        %v554 = vmax.f32 %v522, 0.0
        %v555 = vmax.f32 %v523, 0.0
        %v556 = vmax.f32 %v524, 0.0
        %v557 = vmax.f32 %v525, 0.0
        %v558 = vmax.f32 %v526, 0.0
        %v559 = vmax.f32 %v527, 0.0
        %v560 = vmax.f32 %v528, 0.0
        %v561 = vmax.f32 %v529, 0.0
        %v562 = vmax.f32 %v530, 0.0
        %v563 = vmax.f32 %v531, 0.0
        %v564 = vmax.f32 %v532, 0.0
        %v565 = vpack.c.bf16 %v534, %v533
        %v566 = vpack.c.bf16 %v536, %v535
        %v567 = vpack.c.bf16 %v538, %v537
        %v568 = vpack.c.bf16 %v540, %v539
        %v569 = vpack.c.bf16 %v542, %v541
        %v570 = vpack.c.bf16 %v544, %v543
        %v571 = vpack.c.bf16 %v546, %v545
        %v572 = vpack.c.bf16 %v548, %v547
        %v573 = vpack.c.bf16 %v550, %v549
        %v574 = vpack.c.bf16 %v552, %v551
        %v575 = vpack.c.bf16 %v554, %v553
        %v576 = vpack.c.bf16 %v556, %v555
        %v577 = vpack.c.bf16 %v558, %v557
        %v578 = vpack.c.bf16 %v560, %v559
        %v579 = vpack.c.bf16 %v562, %v561
        %v580 = vpack.c.bf16 %v564, %v563
        %v581 = vld [vmem:[#allocation6] sm:$0xf]
        %v582 = vld [vmem:[#allocation6 + $0x4] sm:$0xf]
        %v583 = vld [vmem:[#allocation6 + $0x8] sm:$0xf]
        %v584 = vld [vmem:[#allocation6 + $0xc] sm:$0xf]
        %v585 = vld [vmem:[#allocation6 + $0x10] sm:$0xf]
        %v586 = vld [vmem:[#allocation6 + $0x14] sm:$0xf]
        %v587 = vld [vmem:[#allocation6 + $0x18] sm:$0xf]
        %v588 = vld [vmem:[#allocation6 + $0x1c] sm:$0xf]
        %v589 = vld [vmem:[#allocation6 + $0x20] sm:$0xf]
        %v590 = vld [vmem:[#allocation6 + $0x24] sm:$0xf]
        %v591 = vld [vmem:[#allocation6 + $0x28] sm:$0xf]
        %v592 = vld [vmem:[#allocation6 + $0x2c] sm:$0xf]
        %v593 = vld [vmem:[#allocation6 + $0x30] sm:$0xf]
        %v594 = vld [vmem:[#allocation6 + $0x34] sm:$0xf]
        %v595 = vld [vmem:[#allocation6 + $0x38] sm:$0xf]
        %v596 = vld [vmem:[#allocation6 + $0x3c] sm:$0xf]
        %v613 = vunpack.c.l.b16 %v581
        %v614 = vunpack.c.l.b16 %v582
        %v615 = vunpack.c.l.b16 %v583
        %v616 = vunpack.c.l.b16 %v584
        %v617 = vunpack.c.l.b16 %v585
        %v618 = vunpack.c.l.b16 %v586
        %v619 = vunpack.c.l.b16 %v587
        %v620 = vunpack.c.l.b16 %v588
        %v621 = vunpack.c.l.b16 %v589
        %v622 = vunpack.c.l.b16 %v590
        %v623 = vunpack.c.l.b16 %v591
        %v624 = vunpack.c.l.b16 %v592
        %v625 = vunpack.c.l.b16 %v593
        %v626 = vunpack.c.l.b16 %v594
        %v627 = vunpack.c.l.b16 %v595
        %v628 = vunpack.c.l.b16 %v596
        %v629 = vpack.c.b16 %v614, %v613
        %v630 = vpack.c.b16 %v616, %v615
        %v631 = vpack.c.b16 %v618, %v617
        %v632 = vpack.c.b16 %v620, %v619
        %v633 = vpack.c.b16 %v622, %v621
        %v634 = vpack.c.b16 %v624, %v623
        %v635 = vpack.c.b16 %v626, %v625
        %v636 = vpack.c.b16 %v628, %v627
        %645 = vmatprep.subr.bf16.mxu0 0
        %646 = vmatpush1.bf16.msra.mxu0 %v629
        %647 = vmatprep.subr.bf16.mxu0 0
        %648 = vmatpush1.bf16.msra.mxu0 %v630
        %649 = vmatprep.subr.bf16.mxu0 0
        %650 = vmatpush1.bf16.msra.mxu0 %v631
        %651 = vmatprep.subr.bf16.mxu0 0
        %652 = vmatpush1.bf16.msra.mxu0 %v632
        %653 = vmatprep.subr.bf16.mxu0 0
        %654 = vmatpush1.bf16.msra.mxu0 %v633
        %655 = vmatprep.subr.bf16.mxu0 0
        %656 = vmatpush1.bf16.msra.mxu0 %v634
        %657 = vmatprep.subr.bf16.mxu0 0
        %658 = vmatpush1.bf16.msra.mxu0 %v635
        %659 = vmatprep.subr.bf16.mxu0 0
        %660 = vmatpush1.bf16.msra.mxu0 %v636
        %661 = vmatprep.subr.bf16.mxu0 0
        %662 = vmatpush1.bf16.msra.mxu0 0
        %663 = vmatprep.subr.bf16.mxu0 0
        %664 = vmatpush1.bf16.msra.mxu0 0
        %665 = vmatprep.subr.bf16.mxu0 0
        %666 = vmatpush1.bf16.msra.mxu0 0
        %667 = vmatprep.subr.bf16.mxu0 0
        %668 = vmatpush1.bf16.msra.mxu0 0
        %669 = vmatprep.subr.bf16.mxu0 0
        %670 = vmatpush1.bf16.msra.mxu0 0
        %671 = vmatprep.subr.bf16.mxu0 0
        %672 = vmatpush1.bf16.msra.mxu0 0
        %673 = vmatprep.subr.bf16.mxu0 0
        %674 = vmatpush1.bf16.msra.mxu0 0
        %675 = vmatprep.subr.bf16.mxu0 0
        %676 = vmatpush1.bf16.msra.mxu0 0
        %677 = vmatprep.mubr.bf16.mxu0 0
        %678 = vmatmul.mubr.bf16.gmra.mrb[0].mxu0 %v565
        %v679 = vpop.f32.mrb[0].mxu0
        %v680 = vadd.f32 0.0, %v679
        %v681 = vpop.f32.mrb[0].mxu0
        %v682 = vpop.f32.mrb[0].mxu0
        %v683 = vadd.f32 0.0, %v682
        %v684 = vpop.f32.mrb[0].mxu0
        %685 = vmatprep.mubr.bf16.mxu0 0
        %686 = vmatmul.mubr.bf16.gmra.mrb[0].mxu0 %v566
        %v687 = vpop.f32.mrb[0].mxu0
        %v688 = vadd.f32 0.0, %v687
        %v689 = vpop.f32.mrb[0].mxu0
        %v690 = vpop.f32.mrb[0].mxu0
        %v691 = vadd.f32 0.0, %v690
        %v692 = vpop.f32.mrb[0].mxu0
        %693 = vmatprep.mubr.bf16.mxu0 0
        %694 = vmatmul.mubr.bf16.gmra.mrb[0].mxu0 %v567
        %v695 = vpop.f32.mrb[0].mxu0
        %v696 = vadd.f32 0.0, %v695
        %v697 = vpop.f32.mrb[0].mxu0
        %v698 = vpop.f32.mrb[0].mxu0
        %v699 = vadd.f32 0.0, %v698
        %v700 = vpop.f32.mrb[0].mxu0
        %701 = vmatprep.mubr.bf16.mxu0 0
        %702 = vmatmul.mubr.bf16.gmra.mrb[0].mxu0 %v568
        %v703 = vpop.f32.mrb[0].mxu0
        %v704 = vadd.f32 0.0, %v703
        %v705 = vpop.f32.mrb[0].mxu0
        %v706 = vpop.f32.mrb[0].mxu0
        %v707 = vadd.f32 0.0, %v706
        %v708 = vpop.f32.mrb[0].mxu0
        %709 = vmatprep.mubr.bf16.mxu0 0
        %710 = vmatmul.mubr.bf16.gmra.mrb[0].mxu0 %v569
        %v711 = vpop.f32.mrb[0].mxu0
        %v712 = vadd.f32 0.0, %v711
        %v713 = vpop.f32.mrb[0].mxu0
        %v714 = vpop.f32.mrb[0].mxu0
        %v715 = vadd.f32 0.0, %v714
        %v716 = vpop.f32.mrb[0].mxu0
        %717 = vmatprep.mubr.bf16.mxu0 0
        %718 = vmatmul.mubr.bf16.gmra.mrb[0].mxu0 %v570
        %v719 = vpop.f32.mrb[0].mxu0
        %v720 = vadd.f32 0.0, %v719
        %v721 = vpop.f32.mrb[0].mxu0
        %v722 = vpop.f32.mrb[0].mxu0
        %v723 = vadd.f32 0.0, %v722
        %v724 = vpop.f32.mrb[0].mxu0
        %725 = vmatprep.mubr.bf16.mxu0 0
        %726 = vmatmul.mubr.bf16.gmra.mrb[0].mxu0 %v571
        %v727 = vpop.f32.mrb[0].mxu0
        %v728 = vadd.f32 0.0, %v727
        %v729 = vpop.f32.mrb[0].mxu0
        %v730 = vpop.f32.mrb[0].mxu0
        %v731 = vadd.f32 0.0, %v730
        %v732 = vpop.f32.mrb[0].mxu0
        %733 = vmatprep.mubr.bf16.mxu0 0
        %734 = vmatmul.mubr.bf16.gmra.mrb[0].mxu0 %v572
        %v735 = vpop.f32.mrb[0].mxu0
        %v736 = vadd.f32 0.0, %v735
        %v737 = vpop.f32.mrb[0].mxu0
        %v738 = vpop.f32.mrb[0].mxu0
        %v739 = vadd.f32 0.0, %v738
        %v740 = vpop.f32.mrb[0].mxu0
        %741 = vmatprep.mubr.bf16.mxu0 0
        %742 = vmatmul.mubr.bf16.gmra.mrb[0].mxu0 %v573
        %v743 = vpop.f32.mrb[0].mxu0
        %v744 = vadd.f32 0.0, %v743
        %v745 = vpop.f32.mrb[0].mxu0
        %v746 = vpop.f32.mrb[0].mxu0
        %v747 = vadd.f32 0.0, %v746
        %v748 = vpop.f32.mrb[0].mxu0
        %749 = vmatprep.mubr.bf16.mxu0 0
        %750 = vmatmul.mubr.bf16.gmra.mrb[0].mxu0 %v574
        %v751 = vpop.f32.mrb[0].mxu0
        %v752 = vadd.f32 0.0, %v751
        %v753 = vpop.f32.mrb[0].mxu0
        %v754 = vpop.f32.mrb[0].mxu0
        %v755 = vadd.f32 0.0, %v754
        %v756 = vpop.f32.mrb[0].mxu0
        %757 = vmatprep.mubr.bf16.mxu0 0
        %758 = vmatmul.mubr.bf16.gmra.mrb[0].mxu0 %v575
        %v759 = vpop.f32.mrb[0].mxu0
        %v760 = vadd.f32 0.0, %v759
        %v761 = vpop.f32.mrb[0].mxu0
        %v762 = vpop.f32.mrb[0].mxu0
        %v763 = vadd.f32 0.0, %v762
        %v764 = vpop.f32.mrb[0].mxu0
        %765 = vmatprep.mubr.bf16.mxu0 0
        %766 = vmatmul.mubr.bf16.gmra.mrb[0].mxu0 %v576
        %v767 = vpop.f32.mrb[0].mxu0
        %v768 = vadd.f32 0.0, %v767
        %v769 = vpop.f32.mrb[0].mxu0
        %v770 = vpop.f32.mrb[0].mxu0
        %v771 = vadd.f32 0.0, %v770
        %v772 = vpop.f32.mrb[0].mxu0
        %773 = vmatprep.mubr.bf16.mxu0 0
        %774 = vmatmul.mubr.bf16.gmra.mrb[0].mxu0 %v577
        %v775 = vpop.f32.mrb[0].mxu0
        %v776 = vadd.f32 0.0, %v775
        %v777 = vpop.f32.mrb[0].mxu0
        %v778 = vpop.f32.mrb[0].mxu0
        %v779 = vadd.f32 0.0, %v778
        %v780 = vpop.f32.mrb[0].mxu0
        %781 = vmatprep.mubr.bf16.mxu0 0
        %782 = vmatmul.mubr.bf16.gmra.mrb[0].mxu0 %v578
        %v783 = vpop.f32.mrb[0].mxu0
        %v784 = vadd.f32 0.0, %v783
        %v785 = vpop.f32.mrb[0].mxu0
        %v786 = vpop.f32.mrb[0].mxu0
        %v787 = vadd.f32 0.0, %v786
        %v788 = vpop.f32.mrb[0].mxu0
        %789 = vmatprep.mubr.bf16.mxu0 0
        %790 = vmatmul.mubr.bf16.gmra.mrb[0].mxu0 %v579
        %v791 = vpop.f32.mrb[0].mxu0
        %v792 = vadd.f32 0.0, %v791
        %v793 = vpop.f32.mrb[0].mxu0
        %v794 = vpop.f32.mrb[0].mxu0
        %v795 = vadd.f32 0.0, %v794
        %v796 = vpop.f32.mrb[0].mxu0
        %797 = vmatprep.mubr.bf16.mxu0 0
        %798 = vmatmul.mubr.bf16.gmra.mrb[0].mxu0 %v580
        %v799 = vpop.f32.mrb[0].mxu0
        %v800 = vadd.f32 0.0, %v799
        %v801 = vpop.f32.mrb[0].mxu0
        %v802 = vpop.f32.mrb[0].mxu0
        %v803 = vadd.f32 0.0, %v802
        %v804 = vpop.f32.mrb[0].mxu0
        %805 = vdwg.mxu0
        %v806 = vld [vmem:[%s4] sm:$0x1]
        %v808 = vlaneseq
        %v809 = vshrl.u32 %v808, 7
        %v810 = vsub.s32 0, %v809
        %v811 = vrot.slane %v806, %v810
        %v813 = vmul.f32 %v680, %v811
        %v814 = vmul.f32 %v683, %v811
        %v815 = vmul.f32 %v688, %v811
        %v816 = vmul.f32 %v691, %v811
        %v817 = vmul.f32 %v696, %v811
        %v818 = vmul.f32 %v699, %v811
        %v819 = vmul.f32 %v704, %v811
        %v820 = vmul.f32 %v707, %v811
        %v821 = vmul.f32 %v712, %v811
        %v822 = vmul.f32 %v715, %v811
        %v823 = vmul.f32 %v720, %v811
        %v824 = vmul.f32 %v723, %v811
        %v825 = vmul.f32 %v728, %v811
        %v826 = vmul.f32 %v731, %v811
        %v827 = vmul.f32 %v736, %v811
        %v828 = vmul.f32 %v739, %v811
        %v829 = vmul.f32 %v744, %v811
        %v830 = vmul.f32 %v747, %v811
        %v831 = vmul.f32 %v752, %v811
        %v832 = vmul.f32 %v755, %v811
        %v833 = vmul.f32 %v760, %v811
        %v834 = vmul.f32 %v763, %v811
        %v835 = vmul.f32 %v768, %v811
        %v836 = vmul.f32 %v771, %v811
        %v837 = vmul.f32 %v776, %v811
        %v838 = vmul.f32 %v779, %v811
        %v839 = vmul.f32 %v784, %v811
        %v840 = vmul.f32 %v787, %v811
        %v841 = vmul.f32 %v792, %v811
        %v842 = vmul.f32 %v795, %v811
        %v843 = vmul.f32 %v800, %v811
        %v844 = vmul.f32 %v803, %v811
        %v845 = vld [vmem:[%s5] sm:$0x1]
        %v847 = vlaneseq
        %v848 = vshrl.u32 %v847, 7
        %v849 = vsub.s32 0, %v848
        %v850 = vrot.slane %v845, %v849
        %v852 = vadd.f32 %v813, %v850
        %v853 = vadd.f32 %v814, %v850
        %v854 = vadd.f32 %v815, %v850
        %v855 = vadd.f32 %v816, %v850
        %v856 = vadd.f32 %v817, %v850
        %v857 = vadd.f32 %v818, %v850
        %v858 = vadd.f32 %v819, %v850
        %v859 = vadd.f32 %v820, %v850
        %v860 = vadd.f32 %v821, %v850
        %v861 = vadd.f32 %v822, %v850
        %v862 = vadd.f32 %v823, %v850
        %v863 = vadd.f32 %v824, %v850
        %v864 = vadd.f32 %v825, %v850
        %v865 = vadd.f32 %v826, %v850
        %v866 = vadd.f32 %v827, %v850
        %v867 = vadd.f32 %v828, %v850
        %v868 = vadd.f32 %v829, %v850
        %v869 = vadd.f32 %v830, %v850
        %v870 = vadd.f32 %v831, %v850
        %v871 = vadd.f32 %v832, %v850
        %v872 = vadd.f32 %v833, %v850
        %v873 = vadd.f32 %v834, %v850
        %v874 = vadd.f32 %v835, %v850
        %v875 = vadd.f32 %v836, %v850
        %v876 = vadd.f32 %v837, %v850
        %v877 = vadd.f32 %v838, %v850
        %v878 = vadd.f32 %v839, %v850
        %v879 = vadd.f32 %v840, %v850
        %v880 = vadd.f32 %v841, %v850
        %v881 = vadd.f32 %v842, %v850
        %v882 = vadd.f32 %v843, %v850
        %v883 = vadd.f32 %v844, %v850
        %v884 = vmax.f32 %v852, 0.0
        %v885 = vmax.f32 %v853, 0.0
        %v886 = vmax.f32 %v854, 0.0
        %v887 = vmax.f32 %v855, 0.0
        %v888 = vmax.f32 %v856, 0.0
        %v889 = vmax.f32 %v857, 0.0
        %v890 = vmax.f32 %v858, 0.0
        %v891 = vmax.f32 %v859, 0.0
        %v892 = vmax.f32 %v860, 0.0
        %v893 = vmax.f32 %v861, 0.0
        %v894 = vmax.f32 %v862, 0.0
        %v895 = vmax.f32 %v863, 0.0
        %v896 = vmax.f32 %v864, 0.0
        %v897 = vmax.f32 %v865, 0.0
        %v898 = vmax.f32 %v866, 0.0
        %v899 = vmax.f32 %v867, 0.0
        %v900 = vmax.f32 %v868, 0.0
        %v901 = vmax.f32 %v869, 0.0
        %v902 = vmax.f32 %v870, 0.0
        %v903 = vmax.f32 %v871, 0.0
        %v904 = vmax.f32 %v872, 0.0
        %v905 = vmax.f32 %v873, 0.0
        %v906 = vmax.f32 %v874, 0.0
        %v907 = vmax.f32 %v875, 0.0
        %v908 = vmax.f32 %v876, 0.0
        %v909 = vmax.f32 %v877, 0.0
        %v910 = vmax.f32 %v878, 0.0
        %v911 = vmax.f32 %v879, 0.0
        %v912 = vmax.f32 %v880, 0.0
        %v913 = vmax.f32 %v881, 0.0
        %v914 = vmax.f32 %v882, 0.0
        %v915 = vmax.f32 %v883, 0.0
        %v916 = vpack.c.bf16 %v885, %v884
        %v917 = vpack.c.bf16 %v887, %v886
        %v918 = vpack.c.bf16 %v889, %v888
        %v919 = vpack.c.bf16 %v891, %v890
        %v920 = vpack.c.bf16 %v893, %v892
        %v921 = vpack.c.bf16 %v895, %v894
        %v922 = vpack.c.bf16 %v897, %v896
        %v923 = vpack.c.bf16 %v899, %v898
        %v924 = vpack.c.bf16 %v901, %v900
        %v925 = vpack.c.bf16 %v903, %v902
        %v926 = vpack.c.bf16 %v905, %v904
        %v927 = vpack.c.bf16 %v907, %v906
        %v928 = vpack.c.bf16 %v909, %v908
        %v929 = vpack.c.bf16 %v911, %v910
        %v930 = vpack.c.bf16 %v913, %v912
        %v931 = vpack.c.bf16 %v915, %v914
        %v933 = vshrl.u32 %v916, 16
        %v935 = vrot.slane %v933, 7
        %v936 = vshll.u32 %v916, 16
        %v938 = vor.u32 %v935, %v936
        %v940 = vshrl.u32 %v917, 16
        %v942 = vrot.slane %v940, 7
        %v943 = vshll.u32 %v917, 16
        %v945 = vor.u32 %v942, %v943
        %v947 = vshrl.u32 %v918, 16
        %v949 = vrot.slane %v947, 7
        %v950 = vshll.u32 %v918, 16
        %v952 = vor.u32 %v949, %v950
        %v954 = vshrl.u32 %v919, 16
        %v956 = vrot.slane %v954, 7
        %v957 = vshll.u32 %v919, 16
        %v959 = vor.u32 %v956, %v957
        %v961 = vshrl.u32 %v920, 16
        %v963 = vrot.slane %v961, 7
        %v964 = vshll.u32 %v920, 16
        %v966 = vor.u32 %v963, %v964
        %v968 = vshrl.u32 %v921, 16
        %v970 = vrot.slane %v968, 7
        %v971 = vshll.u32 %v921, 16
        %v973 = vor.u32 %v970, %v971
        %v975 = vshrl.u32 %v922, 16
        %v977 = vrot.slane %v975, 7
        %v978 = vshll.u32 %v922, 16
        %v980 = vor.u32 %v977, %v978
        %v982 = vshrl.u32 %v923, 16
        %v984 = vrot.slane %v982, 7
        %v985 = vshll.u32 %v923, 16
        %v987 = vor.u32 %v984, %v985
        %v989 = vshrl.u32 %v924, 16
        %v991 = vrot.slane %v989, 7
        %v992 = vshll.u32 %v924, 16
        %v994 = vor.u32 %v991, %v992
        %v996 = vshrl.u32 %v925, 16
        %v998 = vrot.slane %v996, 7
        %v999 = vshll.u32 %v925, 16
        %v1001 = vor.u32 %v998, %v999
        %v1003 = vshrl.u32 %v926, 16
        %v1005 = vrot.slane %v1003, 7
        %v1006 = vshll.u32 %v926, 16
        %v1008 = vor.u32 %v1005, %v1006
        %v1010 = vshrl.u32 %v927, 16
        %v1012 = vrot.slane %v1010, 7
        %v1013 = vshll.u32 %v927, 16
        %v1015 = vor.u32 %v1012, %v1013
        %v1017 = vshrl.u32 %v928, 16
        %v1019 = vrot.slane %v1017, 7
        %v1020 = vshll.u32 %v928, 16
        %v1022 = vor.u32 %v1019, %v1020
        %v1024 = vshrl.u32 %v929, 16
        %v1026 = vrot.slane %v1024, 7
        %v1027 = vshll.u32 %v929, 16
        %v1029 = vor.u32 %v1026, %v1027
        %v1031 = vshrl.u32 %v930, 16
        %v1033 = vrot.slane %v1031, 7
        %v1034 = vshll.u32 %v930, 16
        %v1036 = vor.u32 %v1033, %v1034
        %v1038 = vshrl.u32 %v931, 16
        %v1040 = vrot.slane %v1038, 7
        %v1041 = vshll.u32 %v931, 16
        %v1043 = vor.u32 %v1040, %v1041
        %vm1076 = vcmask 1040384
        %vm1077 = vsmask.f32 256
        %vm1078 = vmand %vm1076, %vm1077
        %v1079 = vsel %vm1078, 0, %v938
        %v1080 = vsel %vm1078, 0, %v945
        %v1081 = vsel %vm1078, 0, %v952
        %v1082 = vsel %vm1078, 0, %v959
        %v1083 = vsel %vm1078, 0, %v966
        %v1084 = vsel %vm1078, 0, %v973
        %v1085 = vsel %vm1078, 0, %v980
        %v1086 = vsel %vm1078, 0, %v987
        %v1087 = vsel %vm1078, 0, %v994
        %v1088 = vsel %vm1078, 0, %v1001
        %v1089 = vsel %vm1078, 0, %v1008
        %v1090 = vsel %vm1078, 0, %v1015
        %v1091 = vsel %vm1078, 0, %v1022
        %v1092 = vsel %vm1078, 0, %v1029
        %v1093 = vsel %vm1078, 0, %v1036
        %v1094 = vsel %vm1078, 0, %v1043
        %v1095 = vsel %vm1078, %v935, 0
        %v1096 = vsel %vm1078, %v942, 0
        %v1097 = vsel %vm1078, %v949, 0
        %v1098 = vsel %vm1078, %v956, 0
        %v1099 = vsel %vm1078, %v963, 0
        %v1100 = vsel %vm1078, %v970, 0
        %v1101 = vsel %vm1078, %v977, 0
        %v1102 = vsel %vm1078, %v984, 0
        %v1103 = vsel %vm1078, %v991, 0
        %v1104 = vsel %vm1078, %v998, 0
        %v1105 = vsel %vm1078, %v1005, 0
        %v1106 = vsel %vm1078, %v1012, 0
        %v1107 = vsel %vm1078, %v1019, 0
        %v1108 = vsel %vm1078, %v1026, 0
        %v1109 = vsel %vm1078, %v1033, 0
        %v1110 = vsel %vm1078, %v1040, 0
        %1111 = vst [vmem:[#allocation2] sm:$0xf] 0
        %1112 = vst [vmem:[#allocation2 + $0x4] sm:$0xf] 0
        %1113 = vst [vmem:[#allocation2 + $0x8] sm:$0x1] 0
        %s1114 = scalar_lea.vmem [#allocation2], 204
        %1115 = vst [vmem:[%s1114] sm:$0xf] 0
        %1116 = vst [vmem:[%s1114 + $0x4] sm:$0xf] 0
        %1117 = vst [vmem:[%s1114 + $0x8] sm:$0x1] 0
        %v1150 = vunpack.c.l.b16 %v1079
        %v1151 = vunpack.c.h.b16 %v1079
        %v1152 = vunpack.c.l.b16 %v1095
        %v1153 = vunpack.c.l.b16 %v1080
        %v1154 = vunpack.c.h.b16 %v1080
        %v1155 = vunpack.c.l.b16 %v1096
        %v1156 = vunpack.c.l.b16 %v1081
        %v1157 = vunpack.c.h.b16 %v1081
        %v1158 = vunpack.c.l.b16 %v1097
        %v1159 = vunpack.c.l.b16 %v1082
        %v1160 = vunpack.c.h.b16 %v1082
        %v1161 = vunpack.c.l.b16 %v1098
        %v1162 = vunpack.c.l.b16 %v1083
        %v1163 = vunpack.c.h.b16 %v1083
        %v1164 = vunpack.c.l.b16 %v1099
        %v1165 = vunpack.c.l.b16 %v1084
        %v1166 = vunpack.c.h.b16 %v1084
        %v1167 = vunpack.c.l.b16 %v1100
        %v1168 = vunpack.c.l.b16 %v1085
        %v1169 = vunpack.c.h.b16 %v1085
        %v1170 = vunpack.c.l.b16 %v1101
        %v1171 = vunpack.c.l.b16 %v1086
        %v1172 = vunpack.c.h.b16 %v1086
        %v1173 = vunpack.c.l.b16 %v1102
        %v1174 = vunpack.c.l.b16 %v1087
        %v1175 = vunpack.c.h.b16 %v1087
        %v1176 = vunpack.c.l.b16 %v1103
        %v1177 = vunpack.c.l.b16 %v1088
        %v1178 = vunpack.c.h.b16 %v1088
        %v1179 = vunpack.c.l.b16 %v1104
        %v1180 = vunpack.c.l.b16 %v1089
        %v1181 = vunpack.c.h.b16 %v1089
        %v1182 = vunpack.c.l.b16 %v1105
        %v1183 = vunpack.c.l.b16 %v1090
        %v1184 = vunpack.c.h.b16 %v1090
        %v1185 = vunpack.c.l.b16 %v1106
        %v1186 = vunpack.c.l.b16 %v1091
        %v1187 = vunpack.c.h.b16 %v1091
        %v1188 = vunpack.c.l.b16 %v1107
        %v1189 = vunpack.c.l.b16 %v1092
        %v1190 = vunpack.c.h.b16 %v1092
        %v1191 = vunpack.c.l.b16 %v1108
        %v1192 = vunpack.c.l.b16 %v1093
        %v1193 = vunpack.c.h.b16 %v1093
        %v1194 = vunpack.c.l.b16 %v1109
        %v1195 = vunpack.c.l.b16 %v1094
        %v1196 = vunpack.c.h.b16 %v1094
        %v1197 = vunpack.c.l.b16 %v1110
        %v1198 = vpack.c.b16 %v1150, %v1150
        %v1199 = vpack.c.b16 %v1151, %v1151
        %v1200 = vpack.c.b16 %v1152, %v1152
        %v1201 = vpack.c.b16 %v1153, %v1153
        %v1202 = vpack.c.b16 %v1154, %v1154
        %v1203 = vpack.c.b16 %v1155, %v1155
        %v1204 = vpack.c.b16 %v1156, %v1156
        %v1205 = vpack.c.b16 %v1157, %v1157
        %v1206 = vpack.c.b16 %v1158, %v1158
        %v1207 = vpack.c.b16 %v1159, %v1159
        %v1208 = vpack.c.b16 %v1160, %v1160
        %v1209 = vpack.c.b16 %v1161, %v1161
        %v1210 = vpack.c.b16 %v1162, %v1162
        %v1211 = vpack.c.b16 %v1163, %v1163
        %v1212 = vpack.c.b16 %v1164, %v1164
        %v1213 = vpack.c.b16 %v1165, %v1165
        %v1214 = vpack.c.b16 %v1166, %v1166
        %v1215 = vpack.c.b16 %v1167, %v1167
        %v1216 = vpack.c.b16 %v1168, %v1168
        %v1217 = vpack.c.b16 %v1169, %v1169
        %v1218 = vpack.c.b16 %v1170, %v1170
        %v1219 = vpack.c.b16 %v1171, %v1171
        %v1220 = vpack.c.b16 %v1172, %v1172
        %v1221 = vpack.c.b16 %v1173, %v1173
        %v1222 = vpack.c.b16 %v1174, %v1174
        %v1223 = vpack.c.b16 %v1175, %v1175
        %v1224 = vpack.c.b16 %v1176, %v1176
        %v1225 = vpack.c.b16 %v1177, %v1177
        %v1226 = vpack.c.b16 %v1178, %v1178
        %v1227 = vpack.c.b16 %v1179, %v1179
        %v1228 = vpack.c.b16 %v1180, %v1180
        %v1229 = vpack.c.b16 %v1181, %v1181
        %v1230 = vpack.c.b16 %v1182, %v1182
        %v1231 = vpack.c.b16 %v1183, %v1183
        %v1232 = vpack.c.b16 %v1184, %v1184
        %v1233 = vpack.c.b16 %v1185, %v1185
        %v1234 = vpack.c.b16 %v1186, %v1186
        %v1235 = vpack.c.b16 %v1187, %v1187
        %v1236 = vpack.c.b16 %v1188, %v1188
        %v1237 = vpack.c.b16 %v1189, %v1189
        %v1238 = vpack.c.b16 %v1190, %v1190
        %v1239 = vpack.c.b16 %v1191, %v1191
        %v1240 = vpack.c.b16 %v1192, %v1192
        %v1241 = vpack.c.b16 %v1193, %v1193
        %v1242 = vpack.c.b16 %v1194, %v1194
        %v1243 = vpack.c.b16 %v1195, %v1195
        %v1244 = vpack.c.b16 %v1196, %v1196
        %v1245 = vpack.c.b16 %v1197, %v1197
        %s1294 = scalar_lea.vmem [#allocation2], 12
        %1295 = vst [vmem:[%s1294] sm:$0xf] %v1198
        %1296 = vst [vmem:[%s1294 + $0x4] sm:$0xf] %v1199
        %1297 = vst [vmem:[%s1294 + $0x8] sm:$0x1] %v1200
        %1298 = vst [vmem:[%s1294 + $0xc] sm:$0xf] %v1201
        %1299 = vst [vmem:[%s1294 + $0x10] sm:$0xf] %v1202
        %1300 = vst [vmem:[%s1294 + $0x14] sm:$0x1] %v1203
        %1301 = vst [vmem:[%s1294 + $0x18] sm:$0xf] %v1204
        %1302 = vst [vmem:[%s1294 + $0x1c] sm:$0xf] %v1205
        %1303 = vst [vmem:[%s1294 + $0x20] sm:$0x1] %v1206
        %1304 = vst [vmem:[%s1294 + $0x24] sm:$0xf] %v1207
        %1305 = vst [vmem:[%s1294 + $0x28] sm:$0xf] %v1208
        %1306 = vst [vmem:[%s1294 + $0x2c] sm:$0x1] %v1209
        %1307 = vst [vmem:[%s1294 + $0x30] sm:$0xf] %v1210
        %1308 = vst [vmem:[%s1294 + $0x34] sm:$0xf] %v1211
        %1309 = vst [vmem:[%s1294 + $0x38] sm:$0x1] %v1212
        %1310 = vst [vmem:[%s1294 + $0x3c] sm:$0xf] %v1213
        %1311 = vst [vmem:[%s1294 + $0x40] sm:$0xf] %v1214
        %1312 = vst [vmem:[%s1294 + $0x44] sm:$0x1] %v1215
        %1313 = vst [vmem:[%s1294 + $0x48] sm:$0xf] %v1216
        %1314 = vst [vmem:[%s1294 + $0x4c] sm:$0xf] %v1217
        %1315 = vst [vmem:[%s1294 + $0x50] sm:$0x1] %v1218
        %1316 = vst [vmem:[%s1294 + $0x54] sm:$0xf] %v1219
        %1317 = vst [vmem:[%s1294 + $0x58] sm:$0xf] %v1220
        %1318 = vst [vmem:[%s1294 + $0x5c] sm:$0x1] %v1221
        %1319 = vst [vmem:[%s1294 + $0x60] sm:$0xf] %v1222
        %1320 = vst [vmem:[%s1294 + $0x64] sm:$0xf] %v1223
        %1321 = vst [vmem:[%s1294 + $0x68] sm:$0x1] %v1224
        %1322 = vst [vmem:[%s1294 + $0x6c] sm:$0xf] %v1225
        %1323 = vst [vmem:[%s1294 + $0x70] sm:$0xf] %v1226
        %1324 = vst [vmem:[%s1294 + $0x74] sm:$0x1] %v1227
        %1325 = vst [vmem:[%s1294 + $0x78] sm:$0xf] %v1228
        %1326 = vst [vmem:[%s1294 + $0x7c] sm:$0xf] %v1229
        %1327 = vst [vmem:[%s1294 + $0x80] sm:$0x1] %v1230
        %1328 = vst [vmem:[%s1294 + $0x84] sm:$0xf] %v1231
        %1329 = vst [vmem:[%s1294 + $0x88] sm:$0xf] %v1232
        %1330 = vst [vmem:[%s1294 + $0x8c] sm:$0x1] %v1233
        %1331 = vst [vmem:[%s1294 + $0x90] sm:$0xf] %v1234
        %1332 = vst [vmem:[%s1294 + $0x94] sm:$0xf] %v1235
        %1333 = vst [vmem:[%s1294 + $0x98] sm:$0x1] %v1236
        %1334 = vst [vmem:[%s1294 + $0x9c] sm:$0xf] %v1237
        %1335 = vst [vmem:[%s1294 + $0xa0] sm:$0xf] %v1238
        %1336 = vst [vmem:[%s1294 + $0xa4] sm:$0x1] %v1239
        %1337 = vst [vmem:[%s1294 + $0xa8] sm:$0xf] %v1240
        %1338 = vst [vmem:[%s1294 + $0xac] sm:$0xf] %v1241
        %1339 = vst [vmem:[%s1294 + $0xb0] sm:$0x1] %v1242
        %1340 = vst [vmem:[%s1294 + $0xb4] sm:$0xf] %v1243
        %1341 = vst [vmem:[%s1294 + $0xb8] sm:$0xf] %v1244
        %1342 = vst [vmem:[%s1294 + $0xbc] sm:$0x1] %v1245
        %v1343 = vld [vmem:[#allocation2] sm:$0xf]
        %v1344 = vld [vmem:[#allocation2 + $0x4] sm:$0xf]
        %v1345 = vld [vmem:[#allocation2 + $0xc] sm:$0xf]
        %v1346 = vld [vmem:[#allocation2 + $0x10] sm:$0xf]
        %v1347 = vld [vmem:[#allocation2 + $0x18] sm:$0xf]
        %v1348 = vld [vmem:[#allocation2 + $0x1c] sm:$0xf]
        %v1349 = vld [vmem:[#allocation2 + $0x24] sm:$0xf]
        %v1350 = vld [vmem:[#allocation2 + $0x28] sm:$0xf]
        %v1351 = vld [vmem:[#allocation2 + $0x30] sm:$0xf]
        %v1352 = vld [vmem:[#allocation2 + $0x34] sm:$0xf]
        %v1353 = vld [vmem:[#allocation2 + $0x3c] sm:$0xf]
        %v1354 = vld [vmem:[#allocation2 + $0x40] sm:$0xf]
        %v1355 = vld [vmem:[#allocation2 + $0x48] sm:$0xf]
        %v1356 = vld [vmem:[#allocation2 + $0x4c] sm:$0xf]
        %v1357 = vld [vmem:[#allocation2 + $0x54] sm:$0xf]
        %v1358 = vld [vmem:[#allocation2 + $0x58] sm:$0xf]
        %v1359 = vld [vmem:[#allocation2 + $0x60] sm:$0xf]
        %v1360 = vld [vmem:[#allocation2 + $0x64] sm:$0xf]
        %v1361 = vld [vmem:[#allocation2 + $0x6c] sm:$0xf]
        %v1362 = vld [vmem:[#allocation2 + $0x70] sm:$0xf]
        %v1363 = vld [vmem:[#allocation2 + $0x78] sm:$0xf]
        %v1364 = vld [vmem:[#allocation2 + $0x7c] sm:$0xf]
        %v1365 = vld [vmem:[#allocation2 + $0x84] sm:$0xf]
        %v1366 = vld [vmem:[#allocation2 + $0x88] sm:$0xf]
        %v1367 = vld [vmem:[#allocation2 + $0x90] sm:$0xf]
        %v1368 = vld [vmem:[#allocation2 + $0x94] sm:$0xf]
        %v1369 = vld [vmem:[#allocation2 + $0x9c] sm:$0xf]
        %v1370 = vld [vmem:[#allocation2 + $0xa0] sm:$0xf]
        %v1371 = vld [vmem:[#allocation2 + $0xa8] sm:$0xf]
        %v1372 = vld [vmem:[#allocation2 + $0xac] sm:$0xf]
        %v1373 = vld [vmem:[#allocation2 + $0xb4] sm:$0xf]
        %v1374 = vld [vmem:[#allocation2 + $0xb8] sm:$0xf]
        %v1375 = vld [vmem:[#allocation8] sm:$0xf]
        %v1376 = vld [vmem:[#allocation8 + $0x4] sm:$0xf]
        %v1377 = vld [vmem:[#allocation8 + $0x8] sm:$0xf]
        %v1378 = vld [vmem:[#allocation8 + $0xc] sm:$0xf]
        %v1379 = vld [vmem:[#allocation8 + $0x10] sm:$0xf]
        %v1380 = vld [vmem:[#allocation8 + $0x14] sm:$0xf]
        %v1381 = vld [vmem:[#allocation8 + $0x18] sm:$0xf]
        %v1382 = vld [vmem:[#allocation8 + $0x1c] sm:$0xf]
        %v1383 = vld [vmem:[#allocation8 + $0x20] sm:$0xf]
        %v1384 = vld [vmem:[#allocation8 + $0x24] sm:$0xf]
        %v1385 = vld [vmem:[#allocation8 + $0x28] sm:$0xf]
        %v1386 = vld [vmem:[#allocation8 + $0x2c] sm:$0xf]
        %v1387 = vld [vmem:[#allocation8 + $0x30] sm:$0xf]
        %v1388 = vld [vmem:[#allocation8 + $0x34] sm:$0xf]
        %v1389 = vld [vmem:[#allocation8 + $0x38] sm:$0xf]
        %v1390 = vld [vmem:[#allocation8 + $0x3c] sm:$0xf]
        %v1391 = vld [vmem:[#allocation2 + $0x8] sm:$0x1]
        %v1392 = vld [vmem:[#allocation2 + $0x14] sm:$0x1]
        %v1393 = vld [vmem:[#allocation2 + $0x20] sm:$0x1]
        %v1394 = vld [vmem:[#allocation2 + $0x2c] sm:$0x1]
        %v1395 = vld [vmem:[#allocation2 + $0x38] sm:$0x1]
        %v1396 = vld [vmem:[#allocation2 + $0x44] sm:$0x1]
        %v1397 = vld [vmem:[#allocation2 + $0x50] sm:$0x1]
        %v1398 = vld [vmem:[#allocation2 + $0x5c] sm:$0x1]
        %v1399 = vld [vmem:[#allocation2 + $0x68] sm:$0x1]
        %v1400 = vld [vmem:[#allocation2 + $0x74] sm:$0x1]
        %v1401 = vld [vmem:[#allocation2 + $0x80] sm:$0x1]
        %v1402 = vld [vmem:[#allocation2 + $0x8c] sm:$0x1]
        %v1403 = vld [vmem:[#allocation2 + $0x98] sm:$0x1]
        %v1404 = vld [vmem:[#allocation2 + $0xa4] sm:$0x1]
        %v1405 = vld [vmem:[#allocation2 + $0xb0] sm:$0x1]
        %v1406 = vld [vmem:[#allocation2 + $0xbc] sm:$0x1]
        %vm1407 = vsmask.f32 3328
        %vm1408 = vsmask.f32 7440
        %vm1409 = vmor %vm1407, %vm1408
        %v1411 = vshrl.u32 %v1343, 16
        %v1413 = vrot.slane %v1411, 4
        %v1414 = vshll.u32 %v1343, 16
        %v1416 = vrot.slane %v1414, 5
        %v1417 = vor.u32 %v1413, %v1416
        %v1418 = vrot.slane %v1417, 4
        %v1420 = vshll.u32 %v1344, 16
        %v1422 = vrot.slane %v1420, 5
        %v1423 = vsel %vm1409, %v1418, %v1422
        %v1424 = vshrl.u32 %v1344, 16
        %v1426 = vrot.slane %v1424, 4
        %v1427 = vor.u32 %v1426, %v1422
        %v1428 = vrot.slane %v1427, 4
        %v1430 = vshll.u32 %v1391, 16
        %v1432 = vrot.slane %v1430, 5
        %v1433 = vsel %vm1409, %v1428, %v1432
        %v1435 = vshrl.u32 %v1345, 16
        %v1437 = vrot.slane %v1435, 4
        %v1438 = vshll.u32 %v1345, 16
        %v1440 = vrot.slane %v1438, 5
        %v1441 = vor.u32 %v1437, %v1440
        %v1442 = vrot.slane %v1441, 4
        %v1444 = vshll.u32 %v1346, 16
        %v1446 = vrot.slane %v1444, 5
        %v1447 = vsel %vm1409, %v1442, %v1446
        %v1448 = vshrl.u32 %v1346, 16
        %v1450 = vrot.slane %v1448, 4
        %v1451 = vor.u32 %v1450, %v1446
        %v1452 = vrot.slane %v1451, 4
        %v1454 = vshll.u32 %v1392, 16
        %v1456 = vrot.slane %v1454, 5
        %v1457 = vsel %vm1409, %v1452, %v1456
        %v1459 = vshrl.u32 %v1347, 16
        %v1461 = vrot.slane %v1459, 4
        %v1462 = vshll.u32 %v1347, 16
        %v1464 = vrot.slane %v1462, 5
        %v1465 = vor.u32 %v1461, %v1464
        %v1466 = vrot.slane %v1465, 4
        %v1468 = vshll.u32 %v1348, 16
        %v1470 = vrot.slane %v1468, 5
        %v1471 = vsel %vm1409, %v1466, %v1470
        %v1472 = vshrl.u32 %v1348, 16
        %v1474 = vrot.slane %v1472, 4
        %v1475 = vor.u32 %v1474, %v1470
        %v1476 = vrot.slane %v1475, 4
        %v1478 = vshll.u32 %v1393, 16
        %v1480 = vrot.slane %v1478, 5
        %v1481 = vsel %vm1409, %v1476, %v1480
        %v1483 = vshrl.u32 %v1349, 16
        %v1485 = vrot.slane %v1483, 4
        %v1486 = vshll.u32 %v1349, 16
        %v1488 = vrot.slane %v1486, 5
        %v1489 = vor.u32 %v1485, %v1488
        %v1490 = vrot.slane %v1489, 4
        %v1492 = vshll.u32 %v1350, 16
        %v1494 = vrot.slane %v1492, 5
        %v1495 = vsel %vm1409, %v1490, %v1494
        %v1496 = vshrl.u32 %v1350, 16
        %v1498 = vrot.slane %v1496, 4
        %v1499 = vor.u32 %v1498, %v1494
        %v1500 = vrot.slane %v1499, 4
        %v1502 = vshll.u32 %v1394, 16
        %v1504 = vrot.slane %v1502, 5
        %v1505 = vsel %vm1409, %v1500, %v1504
        %v1507 = vshrl.u32 %v1351, 16
        %v1509 = vrot.slane %v1507, 4
        %v1510 = vshll.u32 %v1351, 16
        %v1512 = vrot.slane %v1510, 5
        %v1513 = vor.u32 %v1509, %v1512
        %v1514 = vrot.slane %v1513, 4
        %v1516 = vshll.u32 %v1352, 16
        %v1518 = vrot.slane %v1516, 5
        %v1519 = vsel %vm1409, %v1514, %v1518
        %v1520 = vshrl.u32 %v1352, 16
        %v1522 = vrot.slane %v1520, 4
        %v1523 = vor.u32 %v1522, %v1518
        %v1524 = vrot.slane %v1523, 4
        %v1526 = vshll.u32 %v1395, 16
        %v1528 = vrot.slane %v1526, 5
        %v1529 = vsel %vm1409, %v1524, %v1528
        %v1531 = vshrl.u32 %v1353, 16
        %v1533 = vrot.slane %v1531, 4
        %v1534 = vshll.u32 %v1353, 16
        %v1536 = vrot.slane %v1534, 5
        %v1537 = vor.u32 %v1533, %v1536
        %v1538 = vrot.slane %v1537, 4
        %v1540 = vshll.u32 %v1354, 16
        %v1542 = vrot.slane %v1540, 5
        %v1543 = vsel %vm1409, %v1538, %v1542
        %v1544 = vshrl.u32 %v1354, 16
        %v1546 = vrot.slane %v1544, 4
        %v1547 = vor.u32 %v1546, %v1542
        %v1548 = vrot.slane %v1547, 4
        %v1550 = vshll.u32 %v1396, 16
        %v1552 = vrot.slane %v1550, 5
        %v1553 = vsel %vm1409, %v1548, %v1552
        %v1555 = vshrl.u32 %v1355, 16
        %v1557 = vrot.slane %v1555, 4
        %v1558 = vshll.u32 %v1355, 16
        %v1560 = vrot.slane %v1558, 5
        %v1561 = vor.u32 %v1557, %v1560
        %v1562 = vrot.slane %v1561, 4
        %v1564 = vshll.u32 %v1356, 16
        %v1566 = vrot.slane %v1564, 5
        %v1567 = vsel %vm1409, %v1562, %v1566
        %v1568 = vshrl.u32 %v1356, 16
        %v1570 = vrot.slane %v1568, 4
        %v1571 = vor.u32 %v1570, %v1566
        %v1572 = vrot.slane %v1571, 4
        %v1574 = vshll.u32 %v1397, 16
        %v1576 = vrot.slane %v1574, 5
        %v1577 = vsel %vm1409, %v1572, %v1576
        %v1579 = vshrl.u32 %v1357, 16
        %v1581 = vrot.slane %v1579, 4
        %v1582 = vshll.u32 %v1357, 16
        %v1584 = vrot.slane %v1582, 5
        %v1585 = vor.u32 %v1581, %v1584
        %v1586 = vrot.slane %v1585, 4
        %v1588 = vshll.u32 %v1358, 16
        %v1590 = vrot.slane %v1588, 5
        %v1591 = vsel %vm1409, %v1586, %v1590
        %v1592 = vshrl.u32 %v1358, 16
        %v1594 = vrot.slane %v1592, 4
        %v1595 = vor.u32 %v1594, %v1590
        %v1596 = vrot.slane %v1595, 4
        %v1598 = vshll.u32 %v1398, 16
        %v1600 = vrot.slane %v1598, 5
        %v1601 = vsel %vm1409, %v1596, %v1600
        %v1603 = vshrl.u32 %v1359, 16
        %v1605 = vrot.slane %v1603, 4
        %v1606 = vshll.u32 %v1359, 16
        %v1608 = vrot.slane %v1606, 5
        %v1609 = vor.u32 %v1605, %v1608
        %v1610 = vrot.slane %v1609, 4
        %v1612 = vshll.u32 %v1360, 16
        %v1614 = vrot.slane %v1612, 5
        %v1615 = vsel %vm1409, %v1610, %v1614
        %v1616 = vshrl.u32 %v1360, 16
        %v1618 = vrot.slane %v1616, 4
        %v1619 = vor.u32 %v1618, %v1614
        %v1620 = vrot.slane %v1619, 4
        %v1622 = vshll.u32 %v1399, 16
        %v1624 = vrot.slane %v1622, 5
        %v1625 = vsel %vm1409, %v1620, %v1624
        %v1627 = vshrl.u32 %v1361, 16
        %v1629 = vrot.slane %v1627, 4
        %v1630 = vshll.u32 %v1361, 16
        %v1632 = vrot.slane %v1630, 5
        %v1633 = vor.u32 %v1629, %v1632
        %v1634 = vrot.slane %v1633, 4
        %v1636 = vshll.u32 %v1362, 16
        %v1638 = vrot.slane %v1636, 5
        %v1639 = vsel %vm1409, %v1634, %v1638
        %v1640 = vshrl.u32 %v1362, 16
        %v1642 = vrot.slane %v1640, 4
        %v1643 = vor.u32 %v1642, %v1638
        %v1644 = vrot.slane %v1643, 4
        %v1646 = vshll.u32 %v1400, 16
        %v1648 = vrot.slane %v1646, 5
        %v1649 = vsel %vm1409, %v1644, %v1648
        %v1651 = vshrl.u32 %v1363, 16
        %v1653 = vrot.slane %v1651, 4
        %v1654 = vshll.u32 %v1363, 16
        %v1656 = vrot.slane %v1654, 5
        %v1657 = vor.u32 %v1653, %v1656
        %v1658 = vrot.slane %v1657, 4
        %v1660 = vshll.u32 %v1364, 16
        %v1662 = vrot.slane %v1660, 5
        %v1663 = vsel %vm1409, %v1658, %v1662
        %v1664 = vshrl.u32 %v1364, 16
        %v1666 = vrot.slane %v1664, 4
        %v1667 = vor.u32 %v1666, %v1662
        %v1668 = vrot.slane %v1667, 4
        %v1670 = vshll.u32 %v1401, 16
        %v1672 = vrot.slane %v1670, 5
        %v1673 = vsel %vm1409, %v1668, %v1672
        %v1675 = vshrl.u32 %v1365, 16
        %v1677 = vrot.slane %v1675, 4
        %v1678 = vshll.u32 %v1365, 16
        %v1680 = vrot.slane %v1678, 5
        %v1681 = vor.u32 %v1677, %v1680
        %v1682 = vrot.slane %v1681, 4
        %v1684 = vshll.u32 %v1366, 16
        %v1686 = vrot.slane %v1684, 5
        %v1687 = vsel %vm1409, %v1682, %v1686
        %v1688 = vshrl.u32 %v1366, 16
        %v1690 = vrot.slane %v1688, 4
        %v1691 = vor.u32 %v1690, %v1686
        %v1692 = vrot.slane %v1691, 4
        %v1694 = vshll.u32 %v1402, 16
        %v1696 = vrot.slane %v1694, 5
        %v1697 = vsel %vm1409, %v1692, %v1696
        %v1699 = vshrl.u32 %v1367, 16
        %v1701 = vrot.slane %v1699, 4
        %v1702 = vshll.u32 %v1367, 16
        %v1704 = vrot.slane %v1702, 5
        %v1705 = vor.u32 %v1701, %v1704
        %v1706 = vrot.slane %v1705, 4
        %v1708 = vshll.u32 %v1368, 16
        %v1710 = vrot.slane %v1708, 5
        %v1711 = vsel %vm1409, %v1706, %v1710
        %v1712 = vshrl.u32 %v1368, 16
        %v1714 = vrot.slane %v1712, 4
        %v1715 = vor.u32 %v1714, %v1710
        %v1716 = vrot.slane %v1715, 4
        %v1718 = vshll.u32 %v1403, 16
        %v1720 = vrot.slane %v1718, 5
        %v1721 = vsel %vm1409, %v1716, %v1720
        %v1723 = vshrl.u32 %v1369, 16
        %v1725 = vrot.slane %v1723, 4
        %v1726 = vshll.u32 %v1369, 16
        %v1728 = vrot.slane %v1726, 5
        %v1729 = vor.u32 %v1725, %v1728
        %v1730 = vrot.slane %v1729, 4
        %v1732 = vshll.u32 %v1370, 16
        %v1734 = vrot.slane %v1732, 5
        %v1735 = vsel %vm1409, %v1730, %v1734
        %v1736 = vshrl.u32 %v1370, 16
        %v1738 = vrot.slane %v1736, 4
        %v1739 = vor.u32 %v1738, %v1734
        %v1740 = vrot.slane %v1739, 4
        %v1742 = vshll.u32 %v1404, 16
        %v1744 = vrot.slane %v1742, 5
        %v1745 = vsel %vm1409, %v1740, %v1744
        %v1747 = vshrl.u32 %v1371, 16
        %v1749 = vrot.slane %v1747, 4
        %v1750 = vshll.u32 %v1371, 16
        %v1752 = vrot.slane %v1750, 5
        %v1753 = vor.u32 %v1749, %v1752
        %v1754 = vrot.slane %v1753, 4
        %v1756 = vshll.u32 %v1372, 16
        %v1758 = vrot.slane %v1756, 5
        %v1759 = vsel %vm1409, %v1754, %v1758
        %v1760 = vshrl.u32 %v1372, 16
        %v1762 = vrot.slane %v1760, 4
        %v1763 = vor.u32 %v1762, %v1758
        %v1764 = vrot.slane %v1763, 4
        %v1766 = vshll.u32 %v1405, 16
        %v1768 = vrot.slane %v1766, 5
        %v1769 = vsel %vm1409, %v1764, %v1768
        %v1771 = vshrl.u32 %v1373, 16
        %v1773 = vrot.slane %v1771, 4
        %v1774 = vshll.u32 %v1373, 16
        %v1776 = vrot.slane %v1774, 5
        %v1777 = vor.u32 %v1773, %v1776
        %v1778 = vrot.slane %v1777, 4
        %v1780 = vshll.u32 %v1374, 16
        %v1782 = vrot.slane %v1780, 5
        %v1783 = vsel %vm1409, %v1778, %v1782
        %v1784 = vshrl.u32 %v1374, 16
        %v1786 = vrot.slane %v1784, 4
        %v1787 = vor.u32 %v1786, %v1782
        %v1788 = vrot.slane %v1787, 4
        %v1790 = vshll.u32 %v1406, 16
        %v1792 = vrot.slane %v1790, 5
        %v1793 = vsel %vm1409, %v1788, %v1792
        %s1794 = scalar_lea.vmem [#allocation8], 64
        %v1795 = vld [vmem:[%s1794] sm:$0xf]
        %v1796 = vld [vmem:[%s1794 + $0x4] sm:$0xf]
        %v1797 = vld [vmem:[%s1794 + $0x8] sm:$0xf]
        %v1798 = vld [vmem:[%s1794 + $0xc] sm:$0xf]
        %v1799 = vld [vmem:[%s1794 + $0x10] sm:$0xf]
        %v1800 = vld [vmem:[%s1794 + $0x14] sm:$0xf]
        %v1801 = vld [vmem:[%s1794 + $0x18] sm:$0xf]
        %v1802 = vld [vmem:[%s1794 + $0x1c] sm:$0xf]
        %v1803 = vld [vmem:[%s1794 + $0x20] sm:$0xf]
        %v1804 = vld [vmem:[%s1794 + $0x24] sm:$0xf]
        %v1805 = vld [vmem:[%s1794 + $0x28] sm:$0xf]
        %v1806 = vld [vmem:[%s1794 + $0x2c] sm:$0xf]
        %v1807 = vld [vmem:[%s1794 + $0x30] sm:$0xf]
        %v1808 = vld [vmem:[%s1794 + $0x34] sm:$0xf]
        %v1809 = vld [vmem:[%s1794 + $0x38] sm:$0xf]
        %v1810 = vld [vmem:[%s1794 + $0x3c] sm:$0xf]
        %v1811 = vunpack.c.l.b16 %v1423
        %v1812 = vunpack.c.l.b16 %v1433
        %v1813 = vunpack.c.l.b16 %v1447
        %v1814 = vunpack.c.l.b16 %v1457
        %v1815 = vunpack.c.l.b16 %v1471
        %v1816 = vunpack.c.l.b16 %v1481
        %v1817 = vunpack.c.l.b16 %v1495
        %v1818 = vunpack.c.l.b16 %v1505
        %v1819 = vunpack.c.l.b16 %v1519
        %v1820 = vunpack.c.l.b16 %v1529
        %v1821 = vunpack.c.l.b16 %v1543
        %v1822 = vunpack.c.l.b16 %v1553
        %v1823 = vunpack.c.l.b16 %v1567
        %v1824 = vunpack.c.l.b16 %v1577
        %v1825 = vunpack.c.l.b16 %v1591
        %v1826 = vunpack.c.l.b16 %v1601
        %v1827 = vunpack.c.l.b16 %v1615
        %v1828 = vunpack.c.l.b16 %v1625
        %v1829 = vunpack.c.l.b16 %v1639
        %v1830 = vunpack.c.l.b16 %v1649
        %v1831 = vunpack.c.l.b16 %v1663
        %v1832 = vunpack.c.l.b16 %v1673
        %v1833 = vunpack.c.l.b16 %v1687
        %v1834 = vunpack.c.l.b16 %v1697
        %v1835 = vunpack.c.l.b16 %v1711
        %v1836 = vunpack.c.l.b16 %v1721
        %v1837 = vunpack.c.l.b16 %v1735
        %v1838 = vunpack.c.l.b16 %v1745
        %v1839 = vunpack.c.l.b16 %v1759
        %v1840 = vunpack.c.l.b16 %v1769
        %v1841 = vunpack.c.l.b16 %v1783
        %v1842 = vunpack.c.l.b16 %v1793
        %v1843 = vpack.c.b16 %v1812, %v1811
        %v1844 = vpack.c.b16 %v1814, %v1813
        %v1845 = vpack.c.b16 %v1816, %v1815
        %v1846 = vpack.c.b16 %v1818, %v1817
        %v1847 = vpack.c.b16 %v1820, %v1819
        %v1848 = vpack.c.b16 %v1822, %v1821
        %v1849 = vpack.c.b16 %v1824, %v1823
        %v1850 = vpack.c.b16 %v1826, %v1825
        %v1851 = vpack.c.b16 %v1828, %v1827
        %v1852 = vpack.c.b16 %v1830, %v1829
        %v1853 = vpack.c.b16 %v1832, %v1831
        %v1854 = vpack.c.b16 %v1834, %v1833
        %v1855 = vpack.c.b16 %v1836, %v1835
        %v1856 = vpack.c.b16 %v1838, %v1837
        %v1857 = vpack.c.b16 %v1840, %v1839
        %v1858 = vpack.c.b16 %v1842, %v1841
        %v1891 = vunpack.c.l.b16 %v1795
        %v1892 = vunpack.c.l.b16 %v1796
        %v1893 = vunpack.c.l.b16 %v1797
        %v1894 = vunpack.c.l.b16 %v1798
        %v1895 = vunpack.c.l.b16 %v1799
        %v1896 = vunpack.c.l.b16 %v1800
        %v1897 = vunpack.c.l.b16 %v1801
        %v1898 = vunpack.c.l.b16 %v1802
        %v1899 = vunpack.c.l.b16 %v1803
        %v1900 = vunpack.c.l.b16 %v1804
        %v1901 = vunpack.c.l.b16 %v1805
        %v1902 = vunpack.c.l.b16 %v1806
        %v1903 = vunpack.c.l.b16 %v1807
        %v1904 = vunpack.c.l.b16 %v1808
        %v1905 = vunpack.c.l.b16 %v1809
        %v1906 = vunpack.c.l.b16 %v1810
        %v1907 = vpack.c.b16 %v1892, %v1891
        %v1908 = vpack.c.b16 %v1894, %v1893
        %v1909 = vpack.c.b16 %v1896, %v1895
        %v1910 = vpack.c.b16 %v1898, %v1897
        %v1911 = vpack.c.b16 %v1900, %v1899
        %v1912 = vpack.c.b16 %v1902, %v1901
        %v1913 = vpack.c.b16 %v1904, %v1903
        %v1914 = vpack.c.b16 %v1906, %v1905
        %1923 = vmatprep.subr.bf16.mxu0 0
        %1924 = vmatpush1.bf16.msra.mxu0 %v1907
        %1925 = vmatprep.subr.bf16.mxu0 0
        %1926 = vmatpush1.bf16.msra.mxu0 %v1908
        %1927 = vmatprep.subr.bf16.mxu0 0
        %1928 = vmatpush1.bf16.msra.mxu0 %v1909
        %1929 = vmatprep.subr.bf16.mxu0 0
        %1930 = vmatpush1.bf16.msra.mxu0 %v1910
        %1931 = vmatprep.subr.bf16.mxu0 0
        %1932 = vmatpush1.bf16.msra.mxu0 %v1911
        %1933 = vmatprep.subr.bf16.mxu0 0
        %1934 = vmatpush1.bf16.msra.mxu0 %v1912
        %1935 = vmatprep.subr.bf16.mxu0 0
        %1936 = vmatpush1.bf16.msra.mxu0 %v1913
        %1937 = vmatprep.subr.bf16.mxu0 0
        %1938 = vmatpush1.bf16.msra.mxu0 %v1914
        %1939 = vmatprep.subr.bf16.mxu0 0
        %1940 = vmatpush1.bf16.msra.mxu0 0
        %1941 = vmatprep.subr.bf16.mxu0 0
        %1942 = vmatpush1.bf16.msra.mxu0 0
        %1943 = vmatprep.subr.bf16.mxu0 0
        %1944 = vmatpush1.bf16.msra.mxu0 0
        %1945 = vmatprep.subr.bf16.mxu0 0
        %1946 = vmatpush1.bf16.msra.mxu0 0
        %1947 = vmatprep.subr.bf16.mxu0 0
        %1948 = vmatpush1.bf16.msra.mxu0 0
        %1949 = vmatprep.subr.bf16.mxu0 0
        %1950 = vmatpush1.bf16.msra.mxu0 0
        %1951 = vmatprep.subr.bf16.mxu0 0
        %1952 = vmatpush1.bf16.msra.mxu0 0
        %1953 = vmatprep.subr.bf16.mxu0 0
        %1954 = vmatpush1.bf16.msra.mxu0 0
        %1955 = vmatprep.mubr.bf16.mxu0 0
        %1956 = vmatmul.mubr.bf16.gmra.mrb[0].mxu0 %v1843
        %v1957 = vpop.f32.mrb[0].mxu0
        %v1958 = vadd.f32 0.0, %v1957
        %v1959 = vpop.f32.mrb[0].mxu0
        %v1960 = vpop.f32.mrb[0].mxu0
        %v1961 = vadd.f32 0.0, %v1960
        %v1962 = vpop.f32.mrb[0].mxu0
        %1963 = vmatprep.mubr.bf16.mxu0 0
        %1964 = vmatmul.mubr.bf16.gmra.mrb[0].mxu0 %v1844
        %v1965 = vpop.f32.mrb[0].mxu0
        %v1966 = vadd.f32 0.0, %v1965
        %v1967 = vpop.f32.mrb[0].mxu0
        %v1968 = vpop.f32.mrb[0].mxu0
        %v1969 = vadd.f32 0.0, %v1968
        %v1970 = vpop.f32.mrb[0].mxu0
        %1971 = vmatprep.mubr.bf16.mxu0 0
        %1972 = vmatmul.mubr.bf16.gmra.mrb[0].mxu0 %v1845
        %v1973 = vpop.f32.mrb[0].mxu0
        %v1974 = vadd.f32 0.0, %v1973
        %v1975 = vpop.f32.mrb[0].mxu0
        %v1976 = vpop.f32.mrb[0].mxu0
        %v1977 = vadd.f32 0.0, %v1976
        %v1978 = vpop.f32.mrb[0].mxu0
        %1979 = vmatprep.mubr.bf16.mxu0 0
        %1980 = vmatmul.mubr.bf16.gmra.mrb[0].mxu0 %v1846
        %v1981 = vpop.f32.mrb[0].mxu0
        %v1982 = vadd.f32 0.0, %v1981
        %v1983 = vpop.f32.mrb[0].mxu0
        %v1984 = vpop.f32.mrb[0].mxu0
        %v1985 = vadd.f32 0.0, %v1984
        %v1986 = vpop.f32.mrb[0].mxu0
        %1987 = vmatprep.mubr.bf16.mxu0 0
        %1988 = vmatmul.mubr.bf16.gmra.mrb[0].mxu0 %v1847
        %v1989 = vpop.f32.mrb[0].mxu0
        %v1990 = vadd.f32 0.0, %v1989
        %v1991 = vpop.f32.mrb[0].mxu0
        %v1992 = vpop.f32.mrb[0].mxu0
        %v1993 = vadd.f32 0.0, %v1992
        %v1994 = vpop.f32.mrb[0].mxu0
        %1995 = vmatprep.mubr.bf16.mxu0 0
        %1996 = vmatmul.mubr.bf16.gmra.mrb[0].mxu0 %v1848
        %v1997 = vpop.f32.mrb[0].mxu0
        %v1998 = vadd.f32 0.0, %v1997
        %v1999 = vpop.f32.mrb[0].mxu0
        %v2000 = vpop.f32.mrb[0].mxu0
        %v2001 = vadd.f32 0.0, %v2000
        %v2002 = vpop.f32.mrb[0].mxu0
        %2003 = vmatprep.mubr.bf16.mxu0 0
        %2004 = vmatmul.mubr.bf16.gmra.mrb[0].mxu0 %v1849
        %v2005 = vpop.f32.mrb[0].mxu0
        %v2006 = vadd.f32 0.0, %v2005
        %v2007 = vpop.f32.mrb[0].mxu0
        %v2008 = vpop.f32.mrb[0].mxu0
        %v2009 = vadd.f32 0.0, %v2008
        %v2010 = vpop.f32.mrb[0].mxu0
        %2011 = vmatprep.mubr.bf16.mxu0 0
        %2012 = vmatmul.mubr.bf16.gmra.mrb[0].mxu0 %v1850
        %v2013 = vpop.f32.mrb[0].mxu0
        %v2014 = vadd.f32 0.0, %v2013
        %v2015 = vpop.f32.mrb[0].mxu0
        %v2016 = vpop.f32.mrb[0].mxu0
        %v2017 = vadd.f32 0.0, %v2016
        %v2018 = vpop.f32.mrb[0].mxu0
        %2019 = vmatprep.mubr.bf16.mxu0 0
        %2020 = vmatmul.mubr.bf16.gmra.mrb[0].mxu0 %v1851
        %v2021 = vpop.f32.mrb[0].mxu0
        %v2022 = vadd.f32 0.0, %v2021
        %v2023 = vpop.f32.mrb[0].mxu0
        %v2024 = vpop.f32.mrb[0].mxu0
        %v2025 = vadd.f32 0.0, %v2024
        %v2026 = vpop.f32.mrb[0].mxu0
        %2027 = vmatprep.mubr.bf16.mxu0 0
        %2028 = vmatmul.mubr.bf16.gmra.mrb[0].mxu0 %v1852
        %v2029 = vpop.f32.mrb[0].mxu0
        %v2030 = vadd.f32 0.0, %v2029
        %v2031 = vpop.f32.mrb[0].mxu0
        %v2032 = vpop.f32.mrb[0].mxu0
        %v2033 = vadd.f32 0.0, %v2032
        %v2034 = vpop.f32.mrb[0].mxu0
        %2035 = vmatprep.mubr.bf16.mxu0 0
        %2036 = vmatmul.mubr.bf16.gmra.mrb[0].mxu0 %v1853
        %v2037 = vpop.f32.mrb[0].mxu0
        %v2038 = vadd.f32 0.0, %v2037
        %v2039 = vpop.f32.mrb[0].mxu0
        %v2040 = vpop.f32.mrb[0].mxu0
        %v2041 = vadd.f32 0.0, %v2040
        %v2042 = vpop.f32.mrb[0].mxu0
        %2043 = vmatprep.mubr.bf16.mxu0 0
        %2044 = vmatmul.mubr.bf16.gmra.mrb[0].mxu0 %v1854
        %v2045 = vpop.f32.mrb[0].mxu0
        %v2046 = vadd.f32 0.0, %v2045
        %v2047 = vpop.f32.mrb[0].mxu0
        %v2048 = vpop.f32.mrb[0].mxu0
        %v2049 = vadd.f32 0.0, %v2048
        %v2050 = vpop.f32.mrb[0].mxu0
        %2051 = vmatprep.mubr.bf16.mxu0 0
        %2052 = vmatmul.mubr.bf16.gmra.mrb[0].mxu0 %v1855
        %v2053 = vpop.f32.mrb[0].mxu0
        %v2054 = vadd.f32 0.0, %v2053
        %v2055 = vpop.f32.mrb[0].mxu0
        %v2056 = vpop.f32.mrb[0].mxu0
        %v2057 = vadd.f32 0.0, %v2056
        %v2058 = vpop.f32.mrb[0].mxu0
        %2059 = vmatprep.mubr.bf16.mxu0 0
        %2060 = vmatmul.mubr.bf16.gmra.mrb[0].mxu0 %v1856
        %v2061 = vpop.f32.mrb[0].mxu0
        %v2062 = vadd.f32 0.0, %v2061
        %v2063 = vpop.f32.mrb[0].mxu0
        %v2064 = vpop.f32.mrb[0].mxu0
        %v2065 = vadd.f32 0.0, %v2064
        %v2066 = vpop.f32.mrb[0].mxu0
        %2067 = vmatprep.mubr.bf16.mxu0 0
        %2068 = vmatmul.mubr.bf16.gmra.mrb[0].mxu0 %v1857
        %v2069 = vpop.f32.mrb[0].mxu0
        %v2070 = vadd.f32 0.0, %v2069
        %v2071 = vpop.f32.mrb[0].mxu0
        %v2072 = vpop.f32.mrb[0].mxu0
        %v2073 = vadd.f32 0.0, %v2072
        %v2074 = vpop.f32.mrb[0].mxu0
        %2075 = vmatprep.mubr.bf16.mxu0 0
        %2076 = vmatmul.mubr.bf16.gmra.mrb[0].mxu0 %v1858
        %v2077 = vpop.f32.mrb[0].mxu0
        %v2078 = vadd.f32 0.0, %v2077
        %v2079 = vpop.f32.mrb[0].mxu0
        %v2080 = vpop.f32.mrb[0].mxu0
        %v2081 = vadd.f32 0.0, %v2080
        %v2082 = vpop.f32.mrb[0].mxu0
        %2083 = vdwg.mxu0
        %v2116 = vunpack.c.l.b16 %v1343
        %v2117 = vunpack.c.l.b16 %v1344
        %v2118 = vunpack.c.l.b16 %v1345
        %v2119 = vunpack.c.l.b16 %v1346
        %v2120 = vunpack.c.l.b16 %v1347
        %v2121 = vunpack.c.l.b16 %v1348
        %v2122 = vunpack.c.l.b16 %v1349
        %v2123 = vunpack.c.l.b16 %v1350
        %v2124 = vunpack.c.l.b16 %v1351
        %v2125 = vunpack.c.l.b16 %v1352
        %v2126 = vunpack.c.l.b16 %v1353
        %v2127 = vunpack.c.l.b16 %v1354
        %v2128 = vunpack.c.l.b16 %v1355
        %v2129 = vunpack.c.l.b16 %v1356
        %v2130 = vunpack.c.l.b16 %v1357
        %v2131 = vunpack.c.l.b16 %v1358
        %v2132 = vunpack.c.l.b16 %v1359
        %v2133 = vunpack.c.l.b16 %v1360
        %v2134 = vunpack.c.l.b16 %v1361
        %v2135 = vunpack.c.l.b16 %v1362
        %v2136 = vunpack.c.l.b16 %v1363
        %v2137 = vunpack.c.l.b16 %v1364
        %v2138 = vunpack.c.l.b16 %v1365
        %v2139 = vunpack.c.l.b16 %v1366
        %v2140 = vunpack.c.l.b16 %v1367
        %v2141 = vunpack.c.l.b16 %v1368
        %v2142 = vunpack.c.l.b16 %v1369
        %v2143 = vunpack.c.l.b16 %v1370
        %v2144 = vunpack.c.l.b16 %v1371
        %v2145 = vunpack.c.l.b16 %v1372
        %v2146 = vunpack.c.l.b16 %v1373
        %v2147 = vunpack.c.l.b16 %v1374
        %v2148 = vpack.c.b16 %v2117, %v2116
        %v2149 = vpack.c.b16 %v2119, %v2118
        %v2150 = vpack.c.b16 %v2121, %v2120
        %v2151 = vpack.c.b16 %v2123, %v2122
        %v2152 = vpack.c.b16 %v2125, %v2124
        %v2153 = vpack.c.b16 %v2127, %v2126
        %v2154 = vpack.c.b16 %v2129, %v2128
        %v2155 = vpack.c.b16 %v2131, %v2130
        %v2156 = vpack.c.b16 %v2133, %v2132
        %v2157 = vpack.c.b16 %v2135, %v2134
        %v2158 = vpack.c.b16 %v2137, %v2136
        %v2159 = vpack.c.b16 %v2139, %v2138
        %v2160 = vpack.c.b16 %v2141, %v2140
        %v2161 = vpack.c.b16 %v2143, %v2142
        %v2162 = vpack.c.b16 %v2145, %v2144
        %v2163 = vpack.c.b16 %v2147, %v2146
        %v2196 = vunpack.c.l.b16 %v1375
        %v2197 = vunpack.c.l.b16 %v1376
        %v2198 = vunpack.c.l.b16 %v1377
        %v2199 = vunpack.c.l.b16 %v1378
        %v2200 = vunpack.c.l.b16 %v1379
        %v2201 = vunpack.c.l.b16 %v1380
        %v2202 = vunpack.c.l.b16 %v1381
        %v2203 = vunpack.c.l.b16 %v1382
        %v2204 = vunpack.c.l.b16 %v1383
        %v2205 = vunpack.c.l.b16 %v1384
        %v2206 = vunpack.c.l.b16 %v1385
        %v2207 = vunpack.c.l.b16 %v1386
        %v2208 = vunpack.c.l.b16 %v1387
        %v2209 = vunpack.c.l.b16 %v1388
        %v2210 = vunpack.c.l.b16 %v1389
        %v2211 = vunpack.c.l.b16 %v1390
        %v2212 = vpack.c.b16 %v2197, %v2196
        %v2213 = vpack.c.b16 %v2199, %v2198
        %v2214 = vpack.c.b16 %v2201, %v2200
        %v2215 = vpack.c.b16 %v2203, %v2202
        %v2216 = vpack.c.b16 %v2205, %v2204
        %v2217 = vpack.c.b16 %v2207, %v2206
        %v2218 = vpack.c.b16 %v2209, %v2208
        %v2219 = vpack.c.b16 %v2211, %v2210
        %2228 = vmatprep.subr.bf16.mxu0 0
        %2229 = vmatpush1.bf16.msra.mxu0 %v2212
        %2230 = vmatprep.subr.bf16.mxu0 0
        %2231 = vmatpush1.bf16.msra.mxu0 %v2213
        %2232 = vmatprep.subr.bf16.mxu0 0
        %2233 = vmatpush1.bf16.msra.mxu0 %v2214
        %2234 = vmatprep.subr.bf16.mxu0 0
        %2235 = vmatpush1.bf16.msra.mxu0 %v2215
        %2236 = vmatprep.subr.bf16.mxu0 0
        %2237 = vmatpush1.bf16.msra.mxu0 %v2216
        %2238 = vmatprep.subr.bf16.mxu0 0
        %2239 = vmatpush1.bf16.msra.mxu0 %v2217
        %2240 = vmatprep.subr.bf16.mxu0 0
        %2241 = vmatpush1.bf16.msra.mxu0 %v2218
        %2242 = vmatprep.subr.bf16.mxu0 0
        %2243 = vmatpush1.bf16.msra.mxu0 %v2219
        %2244 = vmatprep.subr.bf16.mxu0 0
        %2245 = vmatpush1.bf16.msra.mxu0 0
        %2246 = vmatprep.subr.bf16.mxu0 0
        %2247 = vmatpush1.bf16.msra.mxu0 0
        %2248 = vmatprep.subr.bf16.mxu0 0
        %2249 = vmatpush1.bf16.msra.mxu0 0
        %2250 = vmatprep.subr.bf16.mxu0 0
        %2251 = vmatpush1.bf16.msra.mxu0 0
        %2252 = vmatprep.subr.bf16.mxu0 0
        %2253 = vmatpush1.bf16.msra.mxu0 0
        %2254 = vmatprep.subr.bf16.mxu0 0
        %2255 = vmatpush1.bf16.msra.mxu0 0
        %2256 = vmatprep.subr.bf16.mxu0 0
        %2257 = vmatpush1.bf16.msra.mxu0 0
        %2258 = vmatprep.subr.bf16.mxu0 0
        %2259 = vmatpush1.bf16.msra.mxu0 0
        %2260 = vmatprep.mubr.bf16.mxu0 0
        %2261 = vmatmul.mubr.bf16.gmra.mrb[0].mxu0 %v2148
        %v2262 = vpop.f32.mrb[0].mxu0
        %v2263 = vadd.f32 %v1958, %v2262
        %v2264 = vpop.f32.mrb[0].mxu0
        %v2265 = vpop.f32.mrb[0].mxu0
        %v2266 = vadd.f32 %v1961, %v2265
        %v2267 = vpop.f32.mrb[0].mxu0
        %2268 = vmatprep.mubr.bf16.mxu0 0
        %2269 = vmatmul.mubr.bf16.gmra.mrb[0].mxu0 %v2149
        %v2270 = vpop.f32.mrb[0].mxu0
        %v2271 = vadd.f32 %v1966, %v2270
        %v2272 = vpop.f32.mrb[0].mxu0
        %v2273 = vpop.f32.mrb[0].mxu0
        %v2274 = vadd.f32 %v1969, %v2273
        %v2275 = vpop.f32.mrb[0].mxu0
        %2276 = vmatprep.mubr.bf16.mxu0 0
        %2277 = vmatmul.mubr.bf16.gmra.mrb[0].mxu0 %v2150
        %v2278 = vpop.f32.mrb[0].mxu0
        %v2279 = vadd.f32 %v1974, %v2278
        %v2280 = vpop.f32.mrb[0].mxu0
        %v2281 = vpop.f32.mrb[0].mxu0
        %v2282 = vadd.f32 %v1977, %v2281
        %v2283 = vpop.f32.mrb[0].mxu0
        %2284 = vmatprep.mubr.bf16.mxu0 0
        %2285 = vmatmul.mubr.bf16.gmra.mrb[0].mxu0 %v2151
        %v2286 = vpop.f32.mrb[0].mxu0
        %v2287 = vadd.f32 %v1982, %v2286
        %v2288 = vpop.f32.mrb[0].mxu0
        %v2289 = vpop.f32.mrb[0].mxu0
        %v2290 = vadd.f32 %v1985, %v2289
        %v2291 = vpop.f32.mrb[0].mxu0
        %2292 = vmatprep.mubr.bf16.mxu0 0
        %2293 = vmatmul.mubr.bf16.gmra.mrb[0].mxu0 %v2152
        %v2294 = vpop.f32.mrb[0].mxu0
        %v2295 = vadd.f32 %v1990, %v2294
        %v2296 = vpop.f32.mrb[0].mxu0
        %v2297 = vpop.f32.mrb[0].mxu0
        %v2298 = vadd.f32 %v1993, %v2297
        %v2299 = vpop.f32.mrb[0].mxu0
        %2300 = vmatprep.mubr.bf16.mxu0 0
        %2301 = vmatmul.mubr.bf16.gmra.mrb[0].mxu0 %v2153
        %v2302 = vpop.f32.mrb[0].mxu0
        %v2303 = vadd.f32 %v1998, %v2302
        %v2304 = vpop.f32.mrb[0].mxu0
        %v2305 = vpop.f32.mrb[0].mxu0
        %v2306 = vadd.f32 %v2001, %v2305
        %v2307 = vpop.f32.mrb[0].mxu0
        %2308 = vmatprep.mubr.bf16.mxu0 0
        %2309 = vmatmul.mubr.bf16.gmra.mrb[0].mxu0 %v2154
        %v2310 = vpop.f32.mrb[0].mxu0
        %v2311 = vadd.f32 %v2006, %v2310
        %v2312 = vpop.f32.mrb[0].mxu0
        %v2313 = vpop.f32.mrb[0].mxu0
        %v2314 = vadd.f32 %v2009, %v2313
        %v2315 = vpop.f32.mrb[0].mxu0
        %2316 = vmatprep.mubr.bf16.mxu0 0
        %2317 = vmatmul.mubr.bf16.gmra.mrb[0].mxu0 %v2155
        %v2318 = vpop.f32.mrb[0].mxu0
        %v2319 = vadd.f32 %v2014, %v2318
        %v2320 = vpop.f32.mrb[0].mxu0
        %v2321 = vpop.f32.mrb[0].mxu0
        %v2322 = vadd.f32 %v2017, %v2321
        %v2323 = vpop.f32.mrb[0].mxu0
        %2324 = vmatprep.mubr.bf16.mxu0 0
        %2325 = vmatmul.mubr.bf16.gmra.mrb[0].mxu0 %v2156
        %v2326 = vpop.f32.mrb[0].mxu0
        %v2327 = vadd.f32 %v2022, %v2326
        %v2328 = vpop.f32.mrb[0].mxu0
        %v2329 = vpop.f32.mrb[0].mxu0
        %v2330 = vadd.f32 %v2025, %v2329
        %v2331 = vpop.f32.mrb[0].mxu0
        %2332 = vmatprep.mubr.bf16.mxu0 0
        %2333 = vmatmul.mubr.bf16.gmra.mrb[0].mxu0 %v2157
        %v2334 = vpop.f32.mrb[0].mxu0
        %v2335 = vadd.f32 %v2030, %v2334
        %v2336 = vpop.f32.mrb[0].mxu0
        %v2337 = vpop.f32.mrb[0].mxu0
        %v2338 = vadd.f32 %v2033, %v2337
        %v2339 = vpop.f32.mrb[0].mxu0
        %2340 = vmatprep.mubr.bf16.mxu0 0
        %2341 = vmatmul.mubr.bf16.gmra.mrb[0].mxu0 %v2158
        %v2342 = vpop.f32.mrb[0].mxu0
        %v2343 = vadd.f32 %v2038, %v2342
        %v2344 = vpop.f32.mrb[0].mxu0
        %v2345 = vpop.f32.mrb[0].mxu0
        %v2346 = vadd.f32 %v2041, %v2345
        %v2347 = vpop.f32.mrb[0].mxu0
        %2348 = vmatprep.mubr.bf16.mxu0 0
        %2349 = vmatmul.mubr.bf16.gmra.mrb[0].mxu0 %v2159
        %v2350 = vpop.f32.mrb[0].mxu0
        %v2351 = vadd.f32 %v2046, %v2350
        %v2352 = vpop.f32.mrb[0].mxu0
        %v2353 = vpop.f32.mrb[0].mxu0
        %v2354 = vadd.f32 %v2049, %v2353
        %v2355 = vpop.f32.mrb[0].mxu0
        %2356 = vmatprep.mubr.bf16.mxu0 0
        %2357 = vmatmul.mubr.bf16.gmra.mrb[0].mxu0 %v2160
        %v2358 = vpop.f32.mrb[0].mxu0
        %v2359 = vadd.f32 %v2054, %v2358
        %v2360 = vpop.f32.mrb[0].mxu0
        %v2361 = vpop.f32.mrb[0].mxu0
        %v2362 = vadd.f32 %v2057, %v2361
        %v2363 = vpop.f32.mrb[0].mxu0
        %2364 = vmatprep.mubr.bf16.mxu0 0
        %2365 = vmatmul.mubr.bf16.gmra.mrb[0].mxu0 %v2161
        %v2366 = vpop.f32.mrb[0].mxu0
        %v2367 = vadd.f32 %v2062, %v2366
        %v2368 = vpop.f32.mrb[0].mxu0
        %v2369 = vpop.f32.mrb[0].mxu0
        %v2370 = vadd.f32 %v2065, %v2369
        %v2371 = vpop.f32.mrb[0].mxu0
        %2372 = vmatprep.mubr.bf16.mxu0 0
        %2373 = vmatmul.mubr.bf16.gmra.mrb[0].mxu0 %v2162
        %v2374 = vpop.f32.mrb[0].mxu0
        %v2375 = vadd.f32 %v2070, %v2374
        %v2376 = vpop.f32.mrb[0].mxu0
        %v2377 = vpop.f32.mrb[0].mxu0
        %v2378 = vadd.f32 %v2073, %v2377
        %v2379 = vpop.f32.mrb[0].mxu0
        %2380 = vmatprep.mubr.bf16.mxu0 0
        %2381 = vmatmul.mubr.bf16.gmra.mrb[0].mxu0 %v2163
        %v2382 = vpop.f32.mrb[0].mxu0
        %v2383 = vadd.f32 %v2078, %v2382
        %v2384 = vpop.f32.mrb[0].mxu0
        %v2385 = vpop.f32.mrb[0].mxu0
        %v2386 = vadd.f32 %v2081, %v2385
        %v2387 = vpop.f32.mrb[0].mxu0
        %2388 = vdwg.mxu0
        %v2389 = vld [vmem:[#allocation2] sm:$0xe]
        %v2390 = vld [vmem:[#allocation2 + $0xc] sm:$0xe]
        %v2391 = vld [vmem:[#allocation2 + $0x18] sm:$0xe]
        %v2392 = vld [vmem:[#allocation2 + $0x24] sm:$0xe]
        %v2393 = vld [vmem:[#allocation2 + $0x30] sm:$0xe]
        %v2394 = vld [vmem:[#allocation2 + $0x3c] sm:$0xe]
        %v2395 = vld [vmem:[#allocation2 + $0x48] sm:$0xe]
        %v2396 = vld [vmem:[#allocation2 + $0x54] sm:$0xe]
        %v2397 = vld [vmem:[#allocation2 + $0x60] sm:$0xe]
        %v2398 = vld [vmem:[#allocation2 + $0x6c] sm:$0xe]
        %v2399 = vld [vmem:[#allocation2 + $0x78] sm:$0xe]
        %v2400 = vld [vmem:[#allocation2 + $0x84] sm:$0xe]
        %v2401 = vld [vmem:[#allocation2 + $0x90] sm:$0xe]
        %v2402 = vld [vmem:[#allocation2 + $0x9c] sm:$0xe]
        %v2403 = vld [vmem:[#allocation2 + $0xa8] sm:$0xe]
        %v2404 = vld [vmem:[#allocation2 + $0xb4] sm:$0xe]
        %vm2437 = vcmask 1042432
        %vm2438 = vcmask 1046532
        %vm2439 = vmor %vm2437, %vm2438
        %v2440 = vrot.slane %v2389, 5
        %v2441 = vrot.slane %v2440, 4
        %v2442 = vrot.slane %v1344, 5
        %v2443 = vsel %vm2439, %v2441, %v2442
        %v2444 = vrot.slane %v2442, 4
        %v2445 = vrot.slane %v1391, 5
        %v2446 = vsel %vm2439, %v2444, %v2445
        %v2447 = vrot.slane %v2390, 5
        %v2448 = vrot.slane %v2447, 4
        %v2449 = vrot.slane %v1346, 5
        %v2450 = vsel %vm2439, %v2448, %v2449
        %v2451 = vrot.slane %v2449, 4
        %v2452 = vrot.slane %v1392, 5
        %v2453 = vsel %vm2439, %v2451, %v2452
        %v2454 = vrot.slane %v2391, 5
        %v2455 = vrot.slane %v2454, 4
        %v2456 = vrot.slane %v1348, 5
        %v2457 = vsel %vm2439, %v2455, %v2456
        %v2458 = vrot.slane %v2456, 4
        %v2459 = vrot.slane %v1393, 5
        %v2460 = vsel %vm2439, %v2458, %v2459
        %v2461 = vrot.slane %v2392, 5
        %v2462 = vrot.slane %v2461, 4
        %v2463 = vrot.slane %v1350, 5
        %v2464 = vsel %vm2439, %v2462, %v2463
        %v2465 = vrot.slane %v2463, 4
        %v2466 = vrot.slane %v1394, 5
        %v2467 = vsel %vm2439, %v2465, %v2466
        %v2468 = vrot.slane %v2393, 5
        %v2469 = vrot.slane %v2468, 4
        %v2470 = vrot.slane %v1352, 5
        %v2471 = vsel %vm2439, %v2469, %v2470
        %v2472 = vrot.slane %v2470, 4
        %v2473 = vrot.slane %v1395, 5
        %v2474 = vsel %vm2439, %v2472, %v2473
        %v2475 = vrot.slane %v2394, 5
        %v2476 = vrot.slane %v2475, 4
        %v2477 = vrot.slane %v1354, 5
        %v2478 = vsel %vm2439, %v2476, %v2477
        %v2479 = vrot.slane %v2477, 4
        %v2480 = vrot.slane %v1396, 5
        %v2481 = vsel %vm2439, %v2479, %v2480
        %v2482 = vrot.slane %v2395, 5
        %v2483 = vrot.slane %v2482, 4
        %v2484 = vrot.slane %v1356, 5
        %v2485 = vsel %vm2439, %v2483, %v2484
        %v2486 = vrot.slane %v2484, 4
        %v2487 = vrot.slane %v1397, 5
        %v2488 = vsel %vm2439, %v2486, %v2487
        %v2489 = vrot.slane %v2396, 5
        %v2490 = vrot.slane %v2489, 4
        %v2491 = vrot.slane %v1358, 5
        %v2492 = vsel %vm2439, %v2490, %v2491
        %v2493 = vrot.slane %v2491, 4
        %v2494 = vrot.slane %v1398, 5
        %v2495 = vsel %vm2439, %v2493, %v2494
        %v2496 = vrot.slane %v2397, 5
        %v2497 = vrot.slane %v2496, 4
        %v2498 = vrot.slane %v1360, 5
        %v2499 = vsel %vm2439, %v2497, %v2498
        %v2500 = vrot.slane %v2498, 4
        %v2501 = vrot.slane %v1399, 5
        %v2502 = vsel %vm2439, %v2500, %v2501
        %v2503 = vrot.slane %v2398, 5
        %v2504 = vrot.slane %v2503, 4
        %v2505 = vrot.slane %v1362, 5
        %v2506 = vsel %vm2439, %v2504, %v2505
        %v2507 = vrot.slane %v2505, 4
        %v2508 = vrot.slane %v1400, 5
        %v2509 = vsel %vm2439, %v2507, %v2508
        %v2510 = vrot.slane %v2399, 5
        %v2511 = vrot.slane %v2510, 4
        %v2512 = vrot.slane %v1364, 5
        %v2513 = vsel %vm2439, %v2511, %v2512
        %v2514 = vrot.slane %v2512, 4
        %v2515 = vrot.slane %v1401, 5
        %v2516 = vsel %vm2439, %v2514, %v2515
        %v2517 = vrot.slane %v2400, 5
        %v2518 = vrot.slane %v2517, 4
        %v2519 = vrot.slane %v1366, 5
        %v2520 = vsel %vm2439, %v2518, %v2519
        %v2521 = vrot.slane %v2519, 4
        %v2522 = vrot.slane %v1402, 5
        %v2523 = vsel %vm2439, %v2521, %v2522
        %v2524 = vrot.slane %v2401, 5
        %v2525 = vrot.slane %v2524, 4
        %v2526 = vrot.slane %v1368, 5
        %v2527 = vsel %vm2439, %v2525, %v2526
        %v2528 = vrot.slane %v2526, 4
        %v2529 = vrot.slane %v1403, 5
        %v2530 = vsel %vm2439, %v2528, %v2529
        %v2531 = vrot.slane %v2402, 5
        %v2532 = vrot.slane %v2531, 4
        %v2533 = vrot.slane %v1370, 5
        %v2534 = vsel %vm2439, %v2532, %v2533
        %v2535 = vrot.slane %v2533, 4
        %v2536 = vrot.slane %v1404, 5
        %v2537 = vsel %vm2439, %v2535, %v2536
        %v2538 = vrot.slane %v2403, 5
        %v2539 = vrot.slane %v2538, 4
        %v2540 = vrot.slane %v1372, 5
        %v2541 = vsel %vm2439, %v2539, %v2540
        %v2542 = vrot.slane %v2540, 4
        %v2543 = vrot.slane %v1405, 5
        %v2544 = vsel %vm2439, %v2542, %v2543
        %v2545 = vrot.slane %v2404, 5
        %v2546 = vrot.slane %v2545, 4
        %v2547 = vrot.slane %v1374, 5
        %v2548 = vsel %vm2439, %v2546, %v2547
        %v2549 = vrot.slane %v2547, 4
        %v2550 = vrot.slane %v1406, 5
        %v2551 = vsel %vm2439, %v2549, %v2550
        %s2552 = scalar_lea.vmem [#allocation8], 128
        %v2553 = vld [vmem:[%s2552] sm:$0xf]
        %v2554 = vld [vmem:[%s2552 + $0x4] sm:$0xf]
        %v2555 = vld [vmem:[%s2552 + $0x8] sm:$0xf]
        %v2556 = vld [vmem:[%s2552 + $0xc] sm:$0xf]
        %v2557 = vld [vmem:[%s2552 + $0x10] sm:$0xf]
        %v2558 = vld [vmem:[%s2552 + $0x14] sm:$0xf]
        %v2559 = vld [vmem:[%s2552 + $0x18] sm:$0xf]
        %v2560 = vld [vmem:[%s2552 + $0x1c] sm:$0xf]
        %v2561 = vld [vmem:[%s2552 + $0x20] sm:$0xf]
        %v2562 = vld [vmem:[%s2552 + $0x24] sm:$0xf]
        %v2563 = vld [vmem:[%s2552 + $0x28] sm:$0xf]
        %v2564 = vld [vmem:[%s2552 + $0x2c] sm:$0xf]
        %v2565 = vld [vmem:[%s2552 + $0x30] sm:$0xf]
        %v2566 = vld [vmem:[%s2552 + $0x34] sm:$0xf]
        %v2567 = vld [vmem:[%s2552 + $0x38] sm:$0xf]
        %v2568 = vld [vmem:[%s2552 + $0x3c] sm:$0xf]
        %v2569 = vunpack.c.l.b16 %v2443
        %v2570 = vunpack.c.l.b16 %v2446
        %v2571 = vunpack.c.l.b16 %v2450
        %v2572 = vunpack.c.l.b16 %v2453
        %v2573 = vunpack.c.l.b16 %v2457
        %v2574 = vunpack.c.l.b16 %v2460
        %v2575 = vunpack.c.l.b16 %v2464
        %v2576 = vunpack.c.l.b16 %v2467
        %v2577 = vunpack.c.l.b16 %v2471
        %v2578 = vunpack.c.l.b16 %v2474
        %v2579 = vunpack.c.l.b16 %v2478
        %v2580 = vunpack.c.l.b16 %v2481
        %v2581 = vunpack.c.l.b16 %v2485
        %v2582 = vunpack.c.l.b16 %v2488
        %v2583 = vunpack.c.l.b16 %v2492
        %v2584 = vunpack.c.l.b16 %v2495
        %v2585 = vunpack.c.l.b16 %v2499
        %v2586 = vunpack.c.l.b16 %v2502
        %v2587 = vunpack.c.l.b16 %v2506
        %v2588 = vunpack.c.l.b16 %v2509
        %v2589 = vunpack.c.l.b16 %v2513
        %v2590 = vunpack.c.l.b16 %v2516
        %v2591 = vunpack.c.l.b16 %v2520
        %v2592 = vunpack.c.l.b16 %v2523
        %v2593 = vunpack.c.l.b16 %v2527
        %v2594 = vunpack.c.l.b16 %v2530
        %v2595 = vunpack.c.l.b16 %v2534
        %v2596 = vunpack.c.l.b16 %v2537
        %v2597 = vunpack.c.l.b16 %v2541
        %v2598 = vunpack.c.l.b16 %v2544
        %v2599 = vunpack.c.l.b16 %v2548
        %v2600 = vunpack.c.l.b16 %v2551
        %v2601 = vpack.c.b16 %v2570, %v2569
        %v2602 = vpack.c.b16 %v2572, %v2571
        %v2603 = vpack.c.b16 %v2574, %v2573
        %v2604 = vpack.c.b16 %v2576, %v2575
        %v2605 = vpack.c.b16 %v2578, %v2577
        %v2606 = vpack.c.b16 %v2580, %v2579
        %v2607 = vpack.c.b16 %v2582, %v2581
        %v2608 = vpack.c.b16 %v2584, %v2583
        %v2609 = vpack.c.b16 %v2586, %v2585
        %v2610 = vpack.c.b16 %v2588, %v2587
        %v2611 = vpack.c.b16 %v2590, %v2589
        %v2612 = vpack.c.b16 %v2592, %v2591
        %v2613 = vpack.c.b16 %v2594, %v2593
        %v2614 = vpack.c.b16 %v2596, %v2595
        %v2615 = vpack.c.b16 %v2598, %v2597
        %v2616 = vpack.c.b16 %v2600, %v2599
        %v2649 = vunpack.c.l.b16 %v2553
        %v2650 = vunpack.c.l.b16 %v2554
        %v2651 = vunpack.c.l.b16 %v2555
        %v2652 = vunpack.c.l.b16 %v2556
        %v2653 = vunpack.c.l.b16 %v2557
        %v2654 = vunpack.c.l.b16 %v2558
        %v2655 = vunpack.c.l.b16 %v2559
        %v2656 = vunpack.c.l.b16 %v2560
        %v2657 = vunpack.c.l.b16 %v2561
        %v2658 = vunpack.c.l.b16 %v2562
        %v2659 = vunpack.c.l.b16 %v2563
        %v2660 = vunpack.c.l.b16 %v2564
        %v2661 = vunpack.c.l.b16 %v2565
        %v2662 = vunpack.c.l.b16 %v2566
        %v2663 = vunpack.c.l.b16 %v2567
        %v2664 = vunpack.c.l.b16 %v2568
        %v2665 = vpack.c.b16 %v2650, %v2649
        %v2666 = vpack.c.b16 %v2652, %v2651
        %v2667 = vpack.c.b16 %v2654, %v2653
        %v2668 = vpack.c.b16 %v2656, %v2655
        %v2669 = vpack.c.b16 %v2658, %v2657
        %v2670 = vpack.c.b16 %v2660, %v2659
        %v2671 = vpack.c.b16 %v2662, %v2661
        %v2672 = vpack.c.b16 %v2664, %v2663
        %2681 = vmatprep.subr.bf16.mxu0 0
        %2682 = vmatpush1.bf16.msra.mxu0 %v2665
        %2683 = vmatprep.subr.bf16.mxu0 0
        %2684 = vmatpush1.bf16.msra.mxu0 %v2666
        %2685 = vmatprep.subr.bf16.mxu0 0
        %2686 = vmatpush1.bf16.msra.mxu0 %v2667
        %2687 = vmatprep.subr.bf16.mxu0 0
        %2688 = vmatpush1.bf16.msra.mxu0 %v2668
        %2689 = vmatprep.subr.bf16.mxu0 0
        %2690 = vmatpush1.bf16.msra.mxu0 %v2669
        %2691 = vmatprep.subr.bf16.mxu0 0
        %2692 = vmatpush1.bf16.msra.mxu0 %v2670
        %2693 = vmatprep.subr.bf16.mxu0 0
        %2694 = vmatpush1.bf16.msra.mxu0 %v2671
        %2695 = vmatprep.subr.bf16.mxu0 0
        %2696 = vmatpush1.bf16.msra.mxu0 %v2672
        %2697 = vmatprep.subr.bf16.mxu0 0
        %2698 = vmatpush1.bf16.msra.mxu0 0
        %2699 = vmatprep.subr.bf16.mxu0 0
        %2700 = vmatpush1.bf16.msra.mxu0 0
        %2701 = vmatprep.subr.bf16.mxu0 0
        %2702 = vmatpush1.bf16.msra.mxu0 0
        %2703 = vmatprep.subr.bf16.mxu0 0
        %2704 = vmatpush1.bf16.msra.mxu0 0
        %2705 = vmatprep.subr.bf16.mxu0 0
        %2706 = vmatpush1.bf16.msra.mxu0 0
        %2707 = vmatprep.subr.bf16.mxu0 0
        %2708 = vmatpush1.bf16.msra.mxu0 0
        %2709 = vmatprep.subr.bf16.mxu0 0
        %2710 = vmatpush1.bf16.msra.mxu0 0
        %2711 = vmatprep.subr.bf16.mxu0 0
        %2712 = vmatpush1.bf16.msra.mxu0 0
        %2713 = vmatprep.mubr.bf16.mxu0 0
        %2714 = vmatmul.mubr.bf16.gmra.mrb[0].mxu0 %v2601
        %v2715 = vpop.f32.mrb[0].mxu0
        %v2716 = vadd.f32 0.0, %v2715
        %v2717 = vpop.f32.mrb[0].mxu0
        %v2718 = vpop.f32.mrb[0].mxu0
        %v2719 = vadd.f32 0.0, %v2718
        %v2720 = vpop.f32.mrb[0].mxu0
        %2721 = vmatprep.mubr.bf16.mxu0 0
        %2722 = vmatmul.mubr.bf16.gmra.mrb[0].mxu0 %v2602
        %v2723 = vpop.f32.mrb[0].mxu0
        %v2724 = vadd.f32 0.0, %v2723
        %v2725 = vpop.f32.mrb[0].mxu0
        %v2726 = vpop.f32.mrb[0].mxu0
        %v2727 = vadd.f32 0.0, %v2726
        %v2728 = vpop.f32.mrb[0].mxu0
        %2729 = vmatprep.mubr.bf16.mxu0 0
        %2730 = vmatmul.mubr.bf16.gmra.mrb[0].mxu0 %v2603
        %v2731 = vpop.f32.mrb[0].mxu0
        %v2732 = vadd.f32 0.0, %v2731
        %v2733 = vpop.f32.mrb[0].mxu0
        %v2734 = vpop.f32.mrb[0].mxu0
        %v2735 = vadd.f32 0.0, %v2734
        %v2736 = vpop.f32.mrb[0].mxu0
        %2737 = vmatprep.mubr.bf16.mxu0 0
        %2738 = vmatmul.mubr.bf16.gmra.mrb[0].mxu0 %v2604
        %v2739 = vpop.f32.mrb[0].mxu0
        %v2740 = vadd.f32 0.0, %v2739
        %v2741 = vpop.f32.mrb[0].mxu0
        %v2742 = vpop.f32.mrb[0].mxu0
        %v2743 = vadd.f32 0.0, %v2742
        %v2744 = vpop.f32.mrb[0].mxu0
        %2745 = vmatprep.mubr.bf16.mxu0 0
        %2746 = vmatmul.mubr.bf16.gmra.mrb[0].mxu0 %v2605
        %v2747 = vpop.f32.mrb[0].mxu0
        %v2748 = vadd.f32 0.0, %v2747
        %v2749 = vpop.f32.mrb[0].mxu0
        %v2750 = vpop.f32.mrb[0].mxu0
        %v2751 = vadd.f32 0.0, %v2750
        %v2752 = vpop.f32.mrb[0].mxu0
        %2753 = vmatprep.mubr.bf16.mxu0 0
        %2754 = vmatmul.mubr.bf16.gmra.mrb[0].mxu0 %v2606
        %v2755 = vpop.f32.mrb[0].mxu0
        %v2756 = vadd.f32 0.0, %v2755
        %v2757 = vpop.f32.mrb[0].mxu0
        %v2758 = vpop.f32.mrb[0].mxu0
        %v2759 = vadd.f32 0.0, %v2758
        %v2760 = vpop.f32.mrb[0].mxu0
        %2761 = vmatprep.mubr.bf16.mxu0 0
        %2762 = vmatmul.mubr.bf16.gmra.mrb[0].mxu0 %v2607
        %v2763 = vpop.f32.mrb[0].mxu0
        %v2764 = vadd.f32 0.0, %v2763
        %v2765 = vpop.f32.mrb[0].mxu0
        %v2766 = vpop.f32.mrb[0].mxu0
        %v2767 = vadd.f32 0.0, %v2766
        %v2768 = vpop.f32.mrb[0].mxu0
        %2769 = vmatprep.mubr.bf16.mxu0 0
        %2770 = vmatmul.mubr.bf16.gmra.mrb[0].mxu0 %v2608
        %v2771 = vpop.f32.mrb[0].mxu0
        %v2772 = vadd.f32 0.0, %v2771
        %v2773 = vpop.f32.mrb[0].mxu0
        %v2774 = vpop.f32.mrb[0].mxu0
        %v2775 = vadd.f32 0.0, %v2774
        %v2776 = vpop.f32.mrb[0].mxu0
        %2777 = vmatprep.mubr.bf16.mxu0 0
        %2778 = vmatmul.mubr.bf16.gmra.mrb[0].mxu0 %v2609
        %v2779 = vpop.f32.mrb[0].mxu0
        %v2780 = vadd.f32 0.0, %v2779
        %v2781 = vpop.f32.mrb[0].mxu0
        %v2782 = vpop.f32.mrb[0].mxu0
        %v2783 = vadd.f32 0.0, %v2782
        %v2784 = vpop.f32.mrb[0].mxu0
        %2785 = vmatprep.mubr.bf16.mxu0 0
        %2786 = vmatmul.mubr.bf16.gmra.mrb[0].mxu0 %v2610
        %v2787 = vpop.f32.mrb[0].mxu0
        %v2788 = vadd.f32 0.0, %v2787
        %v2789 = vpop.f32.mrb[0].mxu0
        %v2790 = vpop.f32.mrb[0].mxu0
        %v2791 = vadd.f32 0.0, %v2790
        %v2792 = vpop.f32.mrb[0].mxu0
        %2793 = vmatprep.mubr.bf16.mxu0 0
        %2794 = vmatmul.mubr.bf16.gmra.mrb[0].mxu0 %v2611
        %v2795 = vpop.f32.mrb[0].mxu0
        %v2796 = vadd.f32 0.0, %v2795
        %v2797 = vpop.f32.mrb[0].mxu0
        %v2798 = vpop.f32.mrb[0].mxu0
        %v2799 = vadd.f32 0.0, %v2798
        %v2800 = vpop.f32.mrb[0].mxu0
        %2801 = vmatprep.mubr.bf16.mxu0 0
        %2802 = vmatmul.mubr.bf16.gmra.mrb[0].mxu0 %v2612
        %v2803 = vpop.f32.mrb[0].mxu0
        %v2804 = vadd.f32 0.0, %v2803
        %v2805 = vpop.f32.mrb[0].mxu0
        %v2806 = vpop.f32.mrb[0].mxu0
        %v2807 = vadd.f32 0.0, %v2806
        %v2808 = vpop.f32.mrb[0].mxu0
        %2809 = vmatprep.mubr.bf16.mxu0 0
        %2810 = vmatmul.mubr.bf16.gmra.mrb[0].mxu0 %v2613
        %v2811 = vpop.f32.mrb[0].mxu0
        %v2812 = vadd.f32 0.0, %v2811
        %v2813 = vpop.f32.mrb[0].mxu0
        %v2814 = vpop.f32.mrb[0].mxu0
        %v2815 = vadd.f32 0.0, %v2814
        %v2816 = vpop.f32.mrb[0].mxu0
        %2817 = vmatprep.mubr.bf16.mxu0 0
        %2818 = vmatmul.mubr.bf16.gmra.mrb[0].mxu0 %v2614
        %v2819 = vpop.f32.mrb[0].mxu0
        %v2820 = vadd.f32 0.0, %v2819
        %v2821 = vpop.f32.mrb[0].mxu0
        %v2822 = vpop.f32.mrb[0].mxu0
        %v2823 = vadd.f32 0.0, %v2822
        %v2824 = vpop.f32.mrb[0].mxu0
        %2825 = vmatprep.mubr.bf16.mxu0 0
        %2826 = vmatmul.mubr.bf16.gmra.mrb[0].mxu0 %v2615
        %v2827 = vpop.f32.mrb[0].mxu0
        %v2828 = vadd.f32 0.0, %v2827
        %v2829 = vpop.f32.mrb[0].mxu0
        %v2830 = vpop.f32.mrb[0].mxu0
        %v2831 = vadd.f32 0.0, %v2830
        %v2832 = vpop.f32.mrb[0].mxu0
        %2833 = vmatprep.mubr.bf16.mxu0 0
        %2834 = vmatmul.mubr.bf16.gmra.mrb[0].mxu0 %v2616
        %v2835 = vpop.f32.mrb[0].mxu0
        %v2836 = vadd.f32 0.0, %v2835
        %v2837 = vpop.f32.mrb[0].mxu0
        %v2838 = vpop.f32.mrb[0].mxu0
        %v2839 = vadd.f32 0.0, %v2838
        %v2840 = vpop.f32.mrb[0].mxu0
        %2841 = vdwg.mxu0
        %v2842 = vadd.f32 %v2263, %v2716
        %v2843 = vadd.f32 %v2266, %v2719
        %v2844 = vadd.f32 %v2271, %v2724
        %v2845 = vadd.f32 %v2274, %v2727
        %v2846 = vadd.f32 %v2279, %v2732
        %v2847 = vadd.f32 %v2282, %v2735
        %v2848 = vadd.f32 %v2287, %v2740
        %v2849 = vadd.f32 %v2290, %v2743
        %v2850 = vadd.f32 %v2295, %v2748
        %v2851 = vadd.f32 %v2298, %v2751
        %v2852 = vadd.f32 %v2303, %v2756
        %v2853 = vadd.f32 %v2306, %v2759
        %v2854 = vadd.f32 %v2311, %v2764
        %v2855 = vadd.f32 %v2314, %v2767
        %v2856 = vadd.f32 %v2319, %v2772
        %v2857 = vadd.f32 %v2322, %v2775
        %v2858 = vadd.f32 %v2327, %v2780
        %v2859 = vadd.f32 %v2330, %v2783
        %v2860 = vadd.f32 %v2335, %v2788
        %v2861 = vadd.f32 %v2338, %v2791
        %v2862 = vadd.f32 %v2343, %v2796
        %v2863 = vadd.f32 %v2346, %v2799
        %v2864 = vadd.f32 %v2351, %v2804
        %v2865 = vadd.f32 %v2354, %v2807
        %v2866 = vadd.f32 %v2359, %v2812
        %v2867 = vadd.f32 %v2362, %v2815
        %v2868 = vadd.f32 %v2367, %v2820
        %v2869 = vadd.f32 %v2370, %v2823
        %v2870 = vadd.f32 %v2375, %v2828
        %v2871 = vadd.f32 %v2378, %v2831
        %v2872 = vadd.f32 %v2383, %v2836
        %v2873 = vadd.f32 %v2386, %v2839
        %v2874 = vld [vmem:[%s1294] sm:$0xf]
        %v2875 = vld [vmem:[%s1294 + $0x4] sm:$0xf]
        %v2876 = vld [vmem:[%s1294 + $0xc] sm:$0xf]
        %v2877 = vld [vmem:[%s1294 + $0x10] sm:$0xf]
        %v2878 = vld [vmem:[%s1294 + $0x18] sm:$0xf]
        %v2879 = vld [vmem:[%s1294 + $0x1c] sm:$0xf]
        %v2880 = vld [vmem:[%s1294 + $0x24] sm:$0xf]
        %v2881 = vld [vmem:[%s1294 + $0x28] sm:$0xf]
        %v2882 = vld [vmem:[%s1294 + $0x30] sm:$0xf]
        %v2883 = vld [vmem:[%s1294 + $0x34] sm:$0xf]
        %v2884 = vld [vmem:[%s1294 + $0x3c] sm:$0xf]
        %v2885 = vld [vmem:[%s1294 + $0x40] sm:$0xf]
        %v2886 = vld [vmem:[%s1294 + $0x48] sm:$0xf]
        %v2887 = vld [vmem:[%s1294 + $0x4c] sm:$0xf]
        %v2888 = vld [vmem:[%s1294 + $0x54] sm:$0xf]
        %v2889 = vld [vmem:[%s1294 + $0x58] sm:$0xf]
        %v2890 = vld [vmem:[%s1294 + $0x60] sm:$0xf]
        %v2891 = vld [vmem:[%s1294 + $0x64] sm:$0xf]
        %v2892 = vld [vmem:[%s1294 + $0x6c] sm:$0xf]
        %v2893 = vld [vmem:[%s1294 + $0x70] sm:$0xf]
        %v2894 = vld [vmem:[%s1294 + $0x78] sm:$0xf]
        %v2895 = vld [vmem:[%s1294 + $0x7c] sm:$0xf]
        %v2896 = vld [vmem:[%s1294 + $0x84] sm:$0xf]
        %v2897 = vld [vmem:[%s1294 + $0x88] sm:$0xf]
        %v2898 = vld [vmem:[%s1294 + $0x90] sm:$0xf]
        %v2899 = vld [vmem:[%s1294 + $0x94] sm:$0xf]
        %v2900 = vld [vmem:[%s1294 + $0x9c] sm:$0xf]
        %v2901 = vld [vmem:[%s1294 + $0xa0] sm:$0xf]
        %v2902 = vld [vmem:[%s1294 + $0xa8] sm:$0xf]
        %v2903 = vld [vmem:[%s1294 + $0xac] sm:$0xf]
        %v2904 = vld [vmem:[%s1294 + $0xb4] sm:$0xf]
        %v2905 = vld [vmem:[%s1294 + $0xb8] sm:$0xf]
        %s2906 = scalar_lea.vmem [#allocation8], 192
        %v2907 = vld [vmem:[%s2906] sm:$0xf]
        %v2908 = vld [vmem:[%s2906 + $0x4] sm:$0xf]
        %v2909 = vld [vmem:[%s2906 + $0x8] sm:$0xf]
        %v2910 = vld [vmem:[%s2906 + $0xc] sm:$0xf]
        %v2911 = vld [vmem:[%s2906 + $0x10] sm:$0xf]
        %v2912 = vld [vmem:[%s2906 + $0x14] sm:$0xf]
        %v2913 = vld [vmem:[%s2906 + $0x18] sm:$0xf]
        %v2914 = vld [vmem:[%s2906 + $0x1c] sm:$0xf]
        %v2915 = vld [vmem:[%s2906 + $0x20] sm:$0xf]
        %v2916 = vld [vmem:[%s2906 + $0x24] sm:$0xf]
        %v2917 = vld [vmem:[%s2906 + $0x28] sm:$0xf]
        %v2918 = vld [vmem:[%s2906 + $0x2c] sm:$0xf]
        %v2919 = vld [vmem:[%s2906 + $0x30] sm:$0xf]
        %v2920 = vld [vmem:[%s2906 + $0x34] sm:$0xf]
        %v2921 = vld [vmem:[%s2906 + $0x38] sm:$0xf]
        %v2922 = vld [vmem:[%s2906 + $0x3c] sm:$0xf]
        %v2955 = vunpack.c.l.b16 %v2874
        %v2956 = vunpack.c.l.b16 %v2875
        %v2957 = vunpack.c.l.b16 %v2876
        %v2958 = vunpack.c.l.b16 %v2877
        %v2959 = vunpack.c.l.b16 %v2878
        %v2960 = vunpack.c.l.b16 %v2879
        %v2961 = vunpack.c.l.b16 %v2880
        %v2962 = vunpack.c.l.b16 %v2881
        %v2963 = vunpack.c.l.b16 %v2882
        %v2964 = vunpack.c.l.b16 %v2883
        %v2965 = vunpack.c.l.b16 %v2884
        %v2966 = vunpack.c.l.b16 %v2885
        %v2967 = vunpack.c.l.b16 %v2886
        %v2968 = vunpack.c.l.b16 %v2887
        %v2969 = vunpack.c.l.b16 %v2888
        %v2970 = vunpack.c.l.b16 %v2889
        %v2971 = vunpack.c.l.b16 %v2890
        %v2972 = vunpack.c.l.b16 %v2891
        %v2973 = vunpack.c.l.b16 %v2892
        %v2974 = vunpack.c.l.b16 %v2893
        %v2975 = vunpack.c.l.b16 %v2894
        %v2976 = vunpack.c.l.b16 %v2895
        %v2977 = vunpack.c.l.b16 %v2896
        %v2978 = vunpack.c.l.b16 %v2897
        %v2979 = vunpack.c.l.b16 %v2898
        %v2980 = vunpack.c.l.b16 %v2899
        %v2981 = vunpack.c.l.b16 %v2900
        %v2982 = vunpack.c.l.b16 %v2901
        %v2983 = vunpack.c.l.b16 %v2902
        %v2984 = vunpack.c.l.b16 %v2903
        %v2985 = vunpack.c.l.b16 %v2904
        %v2986 = vunpack.c.l.b16 %v2905
        %v2987 = vpack.c.b16 %v2956, %v2955
        %v2988 = vpack.c.b16 %v2958, %v2957
        %v2989 = vpack.c.b16 %v2960, %v2959
        %v2990 = vpack.c.b16 %v2962, %v2961
        %v2991 = vpack.c.b16 %v2964, %v2963
        %v2992 = vpack.c.b16 %v2966, %v2965
        %v2993 = vpack.c.b16 %v2968, %v2967
        %v2994 = vpack.c.b16 %v2970, %v2969
        %v2995 = vpack.c.b16 %v2972, %v2971
        %v2996 = vpack.c.b16 %v2974, %v2973
        %v2997 = vpack.c.b16 %v2976, %v2975
        %v2998 = vpack.c.b16 %v2978, %v2977
        %v2999 = vpack.c.b16 %v2980, %v2979
        %v3000 = vpack.c.b16 %v2982, %v2981
        %v3001 = vpack.c.b16 %v2984, %v2983
        %v3002 = vpack.c.b16 %v2986, %v2985
        %v3035 = vunpack.c.l.b16 %v2907
        %v3036 = vunpack.c.l.b16 %v2908
        %v3037 = vunpack.c.l.b16 %v2909
        %v3038 = vunpack.c.l.b16 %v2910
        %v3039 = vunpack.c.l.b16 %v2911
        %v3040 = vunpack.c.l.b16 %v2912
        %v3041 = vunpack.c.l.b16 %v2913
        %v3042 = vunpack.c.l.b16 %v2914
        %v3043 = vunpack.c.l.b16 %v2915
        %v3044 = vunpack.c.l.b16 %v2916
        %v3045 = vunpack.c.l.b16 %v2917
        %v3046 = vunpack.c.l.b16 %v2918
        %v3047 = vunpack.c.l.b16 %v2919
        %v3048 = vunpack.c.l.b16 %v2920
        %v3049 = vunpack.c.l.b16 %v2921
        %v3050 = vunpack.c.l.b16 %v2922
        %v3051 = vpack.c.b16 %v3036, %v3035
        %v3052 = vpack.c.b16 %v3038, %v3037
        %v3053 = vpack.c.b16 %v3040, %v3039
        %v3054 = vpack.c.b16 %v3042, %v3041
        %v3055 = vpack.c.b16 %v3044, %v3043
        %v3056 = vpack.c.b16 %v3046, %v3045
        %v3057 = vpack.c.b16 %v3048, %v3047
        %v3058 = vpack.c.b16 %v3050, %v3049
        %3067 = vmatprep.subr.bf16.mxu0 0
        %3068 = vmatpush1.bf16.msra.mxu0 %v3051
        %3069 = vmatprep.subr.bf16.mxu0 0
        %3070 = vmatpush1.bf16.msra.mxu0 %v3052
        %3071 = vmatprep.subr.bf16.mxu0 0
        %3072 = vmatpush1.bf16.msra.mxu0 %v3053
        %3073 = vmatprep.subr.bf16.mxu0 0
        %3074 = vmatpush1.bf16.msra.mxu0 %v3054
        %3075 = vmatprep.subr.bf16.mxu0 0
        %3076 = vmatpush1.bf16.msra.mxu0 %v3055
        %3077 = vmatprep.subr.bf16.mxu0 0
        %3078 = vmatpush1.bf16.msra.mxu0 %v3056
        %3079 = vmatprep.subr.bf16.mxu0 0
        %3080 = vmatpush1.bf16.msra.mxu0 %v3057
        %3081 = vmatprep.subr.bf16.mxu0 0
        %3082 = vmatpush1.bf16.msra.mxu0 %v3058
        %3083 = vmatprep.subr.bf16.mxu0 0
        %3084 = vmatpush1.bf16.msra.mxu0 0
        %3085 = vmatprep.subr.bf16.mxu0 0
        %3086 = vmatpush1.bf16.msra.mxu0 0
        %3087 = vmatprep.subr.bf16.mxu0 0
        %3088 = vmatpush1.bf16.msra.mxu0 0
        %3089 = vmatprep.subr.bf16.mxu0 0
        %3090 = vmatpush1.bf16.msra.mxu0 0
        %3091 = vmatprep.subr.bf16.mxu0 0
        %3092 = vmatpush1.bf16.msra.mxu0 0
        %3093 = vmatprep.subr.bf16.mxu0 0
        %3094 = vmatpush1.bf16.msra.mxu0 0
        %3095 = vmatprep.subr.bf16.mxu0 0
        %3096 = vmatpush1.bf16.msra.mxu0 0
        %3097 = vmatprep.subr.bf16.mxu0 0
        %3098 = vmatpush1.bf16.msra.mxu0 0
        %3099 = vmatprep.mubr.bf16.mxu0 0
        %3100 = vmatmul.mubr.bf16.gmra.mrb[0].mxu0 %v2987
        %v3101 = vpop.f32.mrb[0].mxu0
        %v3102 = vadd.f32 0.0, %v3101
        %v3103 = vpop.f32.mrb[0].mxu0
        %v3104 = vpop.f32.mrb[0].mxu0
        %v3105 = vadd.f32 0.0, %v3104
        %v3106 = vpop.f32.mrb[0].mxu0
        %3107 = vmatprep.mubr.bf16.mxu0 0
        %3108 = vmatmul.mubr.bf16.gmra.mrb[0].mxu0 %v2988
        %v3109 = vpop.f32.mrb[0].mxu0
        %v3110 = vadd.f32 0.0, %v3109
        %v3111 = vpop.f32.mrb[0].mxu0
        %v3112 = vpop.f32.mrb[0].mxu0
        %v3113 = vadd.f32 0.0, %v3112
        %v3114 = vpop.f32.mrb[0].mxu0
        %3115 = vmatprep.mubr.bf16.mxu0 0
        %3116 = vmatmul.mubr.bf16.gmra.mrb[0].mxu0 %v2989
        %v3117 = vpop.f32.mrb[0].mxu0
        %v3118 = vadd.f32 0.0, %v3117
        %v3119 = vpop.f32.mrb[0].mxu0
        %v3120 = vpop.f32.mrb[0].mxu0
        %v3121 = vadd.f32 0.0, %v3120
        %v3122 = vpop.f32.mrb[0].mxu0
        %3123 = vmatprep.mubr.bf16.mxu0 0
        %3124 = vmatmul.mubr.bf16.gmra.mrb[0].mxu0 %v2990
        %v3125 = vpop.f32.mrb[0].mxu0
        %v3126 = vadd.f32 0.0, %v3125
        %v3127 = vpop.f32.mrb[0].mxu0
        %v3128 = vpop.f32.mrb[0].mxu0
        %v3129 = vadd.f32 0.0, %v3128
        %v3130 = vpop.f32.mrb[0].mxu0
        %3131 = vmatprep.mubr.bf16.mxu0 0
        %3132 = vmatmul.mubr.bf16.gmra.mrb[0].mxu0 %v2991
        %v3133 = vpop.f32.mrb[0].mxu0
        %v3134 = vadd.f32 0.0, %v3133
        %v3135 = vpop.f32.mrb[0].mxu0
        %v3136 = vpop.f32.mrb[0].mxu0
        %v3137 = vadd.f32 0.0, %v3136
        %v3138 = vpop.f32.mrb[0].mxu0
        %3139 = vmatprep.mubr.bf16.mxu0 0
        %3140 = vmatmul.mubr.bf16.gmra.mrb[0].mxu0 %v2992
        %v3141 = vpop.f32.mrb[0].mxu0
        %v3142 = vadd.f32 0.0, %v3141
        %v3143 = vpop.f32.mrb[0].mxu0
        %v3144 = vpop.f32.mrb[0].mxu0
        %v3145 = vadd.f32 0.0, %v3144
        %v3146 = vpop.f32.mrb[0].mxu0
        %3147 = vmatprep.mubr.bf16.mxu0 0
        %3148 = vmatmul.mubr.bf16.gmra.mrb[0].mxu0 %v2993
        %v3149 = vpop.f32.mrb[0].mxu0
        %v3150 = vadd.f32 0.0, %v3149
        %v3151 = vpop.f32.mrb[0].mxu0
        %v3152 = vpop.f32.mrb[0].mxu0
        %v3153 = vadd.f32 0.0, %v3152
        %v3154 = vpop.f32.mrb[0].mxu0
        %3155 = vmatprep.mubr.bf16.mxu0 0
        %3156 = vmatmul.mubr.bf16.gmra.mrb[0].mxu0 %v2994
        %v3157 = vpop.f32.mrb[0].mxu0
        %v3158 = vadd.f32 0.0, %v3157
        %v3159 = vpop.f32.mrb[0].mxu0
        %v3160 = vpop.f32.mrb[0].mxu0
        %v3161 = vadd.f32 0.0, %v3160
        %v3162 = vpop.f32.mrb[0].mxu0
        %3163 = vmatprep.mubr.bf16.mxu0 0
        %3164 = vmatmul.mubr.bf16.gmra.mrb[0].mxu0 %v2995
        %v3165 = vpop.f32.mrb[0].mxu0
        %v3166 = vadd.f32 0.0, %v3165
        %v3167 = vpop.f32.mrb[0].mxu0
        %v3168 = vpop.f32.mrb[0].mxu0
        %v3169 = vadd.f32 0.0, %v3168
        %v3170 = vpop.f32.mrb[0].mxu0
        %3171 = vmatprep.mubr.bf16.mxu0 0
        %3172 = vmatmul.mubr.bf16.gmra.mrb[0].mxu0 %v2996
        %v3173 = vpop.f32.mrb[0].mxu0
        %v3174 = vadd.f32 0.0, %v3173
        %v3175 = vpop.f32.mrb[0].mxu0
        %v3176 = vpop.f32.mrb[0].mxu0
        %v3177 = vadd.f32 0.0, %v3176
        %v3178 = vpop.f32.mrb[0].mxu0
        %3179 = vmatprep.mubr.bf16.mxu0 0
        %3180 = vmatmul.mubr.bf16.gmra.mrb[0].mxu0 %v2997
        %v3181 = vpop.f32.mrb[0].mxu0
        %v3182 = vadd.f32 0.0, %v3181
        %v3183 = vpop.f32.mrb[0].mxu0
        %v3184 = vpop.f32.mrb[0].mxu0
        %v3185 = vadd.f32 0.0, %v3184
        %v3186 = vpop.f32.mrb[0].mxu0
        %3187 = vmatprep.mubr.bf16.mxu0 0
        %3188 = vmatmul.mubr.bf16.gmra.mrb[0].mxu0 %v2998
        %v3189 = vpop.f32.mrb[0].mxu0
        %v3190 = vadd.f32 0.0, %v3189
        %v3191 = vpop.f32.mrb[0].mxu0
        %v3192 = vpop.f32.mrb[0].mxu0
        %v3193 = vadd.f32 0.0, %v3192
        %v3194 = vpop.f32.mrb[0].mxu0
        %3195 = vmatprep.mubr.bf16.mxu0 0
        %3196 = vmatmul.mubr.bf16.gmra.mrb[0].mxu0 %v2999
        %v3197 = vpop.f32.mrb[0].mxu0
        %v3198 = vadd.f32 0.0, %v3197
        %v3199 = vpop.f32.mrb[0].mxu0
        %v3200 = vpop.f32.mrb[0].mxu0
        %v3201 = vadd.f32 0.0, %v3200
        %v3202 = vpop.f32.mrb[0].mxu0
        %3203 = vmatprep.mubr.bf16.mxu0 0
        %3204 = vmatmul.mubr.bf16.gmra.mrb[0].mxu0 %v3000
        %v3205 = vpop.f32.mrb[0].mxu0
        %v3206 = vadd.f32 0.0, %v3205
        %v3207 = vpop.f32.mrb[0].mxu0
        %v3208 = vpop.f32.mrb[0].mxu0
        %v3209 = vadd.f32 0.0, %v3208
        %v3210 = vpop.f32.mrb[0].mxu0
        %3211 = vmatprep.mubr.bf16.mxu0 0
        %3212 = vmatmul.mubr.bf16.gmra.mrb[0].mxu0 %v3001
        %v3213 = vpop.f32.mrb[0].mxu0
        %v3214 = vadd.f32 0.0, %v3213
        %v3215 = vpop.f32.mrb[0].mxu0
        %v3216 = vpop.f32.mrb[0].mxu0
        %v3217 = vadd.f32 0.0, %v3216
        %v3218 = vpop.f32.mrb[0].mxu0
        %3219 = vmatprep.mubr.bf16.mxu0 0
        %3220 = vmatmul.mubr.bf16.gmra.mrb[0].mxu0 %v3002
        %v3221 = vpop.f32.mrb[0].mxu0
        %v3222 = vadd.f32 0.0, %v3221
        %v3223 = vpop.f32.mrb[0].mxu0
        %v3224 = vpop.f32.mrb[0].mxu0
        %v3225 = vadd.f32 0.0, %v3224
        %v3226 = vpop.f32.mrb[0].mxu0
        %3227 = vdwg.mxu0
        %v3228 = vadd.f32 %v2842, %v3102
        %v3229 = vadd.f32 %v2843, %v3105
        %v3230 = vadd.f32 %v2844, %v3110
        %v3231 = vadd.f32 %v2845, %v3113
        %v3232 = vadd.f32 %v2846, %v3118
        %v3233 = vadd.f32 %v2847, %v3121
        %v3234 = vadd.f32 %v2848, %v3126
        %v3235 = vadd.f32 %v2849, %v3129
        %v3236 = vadd.f32 %v2850, %v3134
        %v3237 = vadd.f32 %v2851, %v3137
        %v3238 = vadd.f32 %v2852, %v3142
        %v3239 = vadd.f32 %v2853, %v3145
        %v3240 = vadd.f32 %v2854, %v3150
        %v3241 = vadd.f32 %v2855, %v3153
        %v3242 = vadd.f32 %v2856, %v3158
        %v3243 = vadd.f32 %v2857, %v3161
        %v3244 = vadd.f32 %v2858, %v3166
        %v3245 = vadd.f32 %v2859, %v3169
        %v3246 = vadd.f32 %v2860, %v3174
        %v3247 = vadd.f32 %v2861, %v3177
        %v3248 = vadd.f32 %v2862, %v3182
        %v3249 = vadd.f32 %v2863, %v3185
        %v3250 = vadd.f32 %v2864, %v3190
        %v3251 = vadd.f32 %v2865, %v3193
        %v3252 = vadd.f32 %v2866, %v3198
        %v3253 = vadd.f32 %v2867, %v3201
        %v3254 = vadd.f32 %v2868, %v3206
        %v3255 = vadd.f32 %v2869, %v3209
        %v3256 = vadd.f32 %v2870, %v3214
        %v3257 = vadd.f32 %v2871, %v3217
        %v3258 = vadd.f32 %v2872, %v3222
        %v3259 = vadd.f32 %v2873, %v3225
        %v3260 = vld [vmem:[%s1294] sm:$0xf]
        %v3261 = vld [vmem:[%s1294 + $0x4] sm:$0xf]
        %v3262 = vld [vmem:[%s1294 + $0x8] sm:$0x1]
        %v3263 = vld [vmem:[%s1294 + $0xc] sm:$0xf]
        %v3264 = vld [vmem:[%s1294 + $0x10] sm:$0xf]
        %v3265 = vld [vmem:[%s1294 + $0x14] sm:$0x1]
        %v3266 = vld [vmem:[%s1294 + $0x18] sm:$0xf]
        %v3267 = vld [vmem:[%s1294 + $0x1c] sm:$0xf]
        %v3268 = vld [vmem:[%s1294 + $0x20] sm:$0x1]
        %v3269 = vld [vmem:[%s1294 + $0x24] sm:$0xf]
        %v3270 = vld [vmem:[%s1294 + $0x28] sm:$0xf]
        %v3271 = vld [vmem:[%s1294 + $0x2c] sm:$0x1]
        %v3272 = vld [vmem:[%s1294 + $0x30] sm:$0xf]
        %v3273 = vld [vmem:[%s1294 + $0x34] sm:$0xf]
        %v3274 = vld [vmem:[%s1294 + $0x38] sm:$0x1]
        %v3275 = vld [vmem:[%s1294 + $0x3c] sm:$0xf]
        %v3276 = vld [vmem:[%s1294 + $0x40] sm:$0xf]
        %v3277 = vld [vmem:[%s1294 + $0x44] sm:$0x1]
        %v3278 = vld [vmem:[%s1294 + $0x48] sm:$0xf]
        %v3279 = vld [vmem:[%s1294 + $0x4c] sm:$0xf]
        %v3280 = vld [vmem:[%s1294 + $0x50] sm:$0x1]
        %v3281 = vld [vmem:[%s1294 + $0x54] sm:$0xf]
        %v3282 = vld [vmem:[%s1294 + $0x58] sm:$0xf]
        %v3283 = vld [vmem:[%s1294 + $0x5c] sm:$0x1]
        %v3284 = vld [vmem:[%s1294 + $0x60] sm:$0xf]
        %v3285 = vld [vmem:[%s1294 + $0x64] sm:$0xf]
        %v3286 = vld [vmem:[%s1294 + $0x68] sm:$0x1]
        %v3287 = vld [vmem:[%s1294 + $0x6c] sm:$0xf]
        %v3288 = vld [vmem:[%s1294 + $0x70] sm:$0xf]
        %v3289 = vld [vmem:[%s1294 + $0x74] sm:$0x1]
        %v3290 = vld [vmem:[%s1294 + $0x78] sm:$0xf]
        %v3291 = vld [vmem:[%s1294 + $0x7c] sm:$0xf]
        %v3292 = vld [vmem:[%s1294 + $0x80] sm:$0x1]
        %v3293 = vld [vmem:[%s1294 + $0x84] sm:$0xf]
        %v3294 = vld [vmem:[%s1294 + $0x88] sm:$0xf]
        %v3295 = vld [vmem:[%s1294 + $0x8c] sm:$0x1]
        %v3296 = vld [vmem:[%s1294 + $0x90] sm:$0xf]
        %v3297 = vld [vmem:[%s1294 + $0x94] sm:$0xf]
        %v3298 = vld [vmem:[%s1294 + $0x98] sm:$0x1]
        %v3299 = vld [vmem:[%s1294 + $0x9c] sm:$0xf]
        %v3300 = vld [vmem:[%s1294 + $0xa0] sm:$0xf]
        %v3301 = vld [vmem:[%s1294 + $0xa4] sm:$0x1]
        %v3302 = vld [vmem:[%s1294 + $0xa8] sm:$0xf]
        %v3303 = vld [vmem:[%s1294 + $0xac] sm:$0xf]
        %v3304 = vld [vmem:[%s1294 + $0xb0] sm:$0x1]
        %v3305 = vld [vmem:[%s1294 + $0xb4] sm:$0xf]
        %v3306 = vld [vmem:[%s1294 + $0xb8] sm:$0xf]
        %v3307 = vld [vmem:[%s1294 + $0xbc] sm:$0x1]
        %v3309 = vshrl.u32 %v3260, 16
        %v3311 = vrot.slane %v3309, 4
        %v3312 = vshll.u32 %v3260, 16
        %v3314 = vrot.slane %v3312, 5
        %v3315 = vor.u32 %v3311, %v3314
        %v3316 = vrot.slane %v3315, 4
        %v3318 = vshll.u32 %v3261, 16
        %v3320 = vrot.slane %v3318, 5
        %v3321 = vsel %vm1409, %v3316, %v3320
        %v3322 = vshrl.u32 %v3261, 16
        %v3324 = vrot.slane %v3322, 4
        %v3325 = vor.u32 %v3324, %v3320
        %v3326 = vrot.slane %v3325, 4
        %v3328 = vshll.u32 %v3262, 16
        %v3330 = vrot.slane %v3328, 5
        %v3331 = vsel %vm1409, %v3326, %v3330
        %v3333 = vshrl.u32 %v3263, 16
        %v3335 = vrot.slane %v3333, 4
        %v3336 = vshll.u32 %v3263, 16
        %v3338 = vrot.slane %v3336, 5
        %v3339 = vor.u32 %v3335, %v3338
        %v3340 = vrot.slane %v3339, 4
        %v3342 = vshll.u32 %v3264, 16
        %v3344 = vrot.slane %v3342, 5
        %v3345 = vsel %vm1409, %v3340, %v3344
        %v3346 = vshrl.u32 %v3264, 16
        %v3348 = vrot.slane %v3346, 4
        %v3349 = vor.u32 %v3348, %v3344
        %v3350 = vrot.slane %v3349, 4
        %v3352 = vshll.u32 %v3265, 16
        %v3354 = vrot.slane %v3352, 5
        %v3355 = vsel %vm1409, %v3350, %v3354
        %v3357 = vshrl.u32 %v3266, 16
        %v3359 = vrot.slane %v3357, 4
        %v3360 = vshll.u32 %v3266, 16
        %v3362 = vrot.slane %v3360, 5
        %v3363 = vor.u32 %v3359, %v3362
        %v3364 = vrot.slane %v3363, 4
        %v3366 = vshll.u32 %v3267, 16
        %v3368 = vrot.slane %v3366, 5
        %v3369 = vsel %vm1409, %v3364, %v3368
        %v3370 = vshrl.u32 %v3267, 16
        %v3372 = vrot.slane %v3370, 4
        %v3373 = vor.u32 %v3372, %v3368
        %v3374 = vrot.slane %v3373, 4
        %v3376 = vshll.u32 %v3268, 16
        %v3378 = vrot.slane %v3376, 5
        %v3379 = vsel %vm1409, %v3374, %v3378
        %v3381 = vshrl.u32 %v3269, 16
        %v3383 = vrot.slane %v3381, 4
        %v3384 = vshll.u32 %v3269, 16
        %v3386 = vrot.slane %v3384, 5
        %v3387 = vor.u32 %v3383, %v3386
        %v3388 = vrot.slane %v3387, 4
        %v3390 = vshll.u32 %v3270, 16
        %v3392 = vrot.slane %v3390, 5
        %v3393 = vsel %vm1409, %v3388, %v3392
        %v3394 = vshrl.u32 %v3270, 16
        %v3396 = vrot.slane %v3394, 4
        %v3397 = vor.u32 %v3396, %v3392
        %v3398 = vrot.slane %v3397, 4
        %v3400 = vshll.u32 %v3271, 16
        %v3402 = vrot.slane %v3400, 5
        %v3403 = vsel %vm1409, %v3398, %v3402
        %v3405 = vshrl.u32 %v3272, 16
        %v3407 = vrot.slane %v3405, 4
        %v3408 = vshll.u32 %v3272, 16
        %v3410 = vrot.slane %v3408, 5
        %v3411 = vor.u32 %v3407, %v3410
        %v3412 = vrot.slane %v3411, 4
        %v3414 = vshll.u32 %v3273, 16
        %v3416 = vrot.slane %v3414, 5
        %v3417 = vsel %vm1409, %v3412, %v3416
        %v3418 = vshrl.u32 %v3273, 16
        %v3420 = vrot.slane %v3418, 4
        %v3421 = vor.u32 %v3420, %v3416
        %v3422 = vrot.slane %v3421, 4
        %v3424 = vshll.u32 %v3274, 16
        %v3426 = vrot.slane %v3424, 5
        %v3427 = vsel %vm1409, %v3422, %v3426
        %v3429 = vshrl.u32 %v3275, 16
        %v3431 = vrot.slane %v3429, 4
        %v3432 = vshll.u32 %v3275, 16
        %v3434 = vrot.slane %v3432, 5
        %v3435 = vor.u32 %v3431, %v3434
        %v3436 = vrot.slane %v3435, 4
        %v3438 = vshll.u32 %v3276, 16
        %v3440 = vrot.slane %v3438, 5
        %v3441 = vsel %vm1409, %v3436, %v3440
        %v3442 = vshrl.u32 %v3276, 16
        %v3444 = vrot.slane %v3442, 4
        %v3445 = vor.u32 %v3444, %v3440
        %v3446 = vrot.slane %v3445, 4
        %v3448 = vshll.u32 %v3277, 16
        %v3450 = vrot.slane %v3448, 5
        %v3451 = vsel %vm1409, %v3446, %v3450
        %v3453 = vshrl.u32 %v3278, 16
        %v3455 = vrot.slane %v3453, 4
        %v3456 = vshll.u32 %v3278, 16
        %v3458 = vrot.slane %v3456, 5
        %v3459 = vor.u32 %v3455, %v3458
        %v3460 = vrot.slane %v3459, 4
        %v3462 = vshll.u32 %v3279, 16
        %v3464 = vrot.slane %v3462, 5
        %v3465 = vsel %vm1409, %v3460, %v3464
        %v3466 = vshrl.u32 %v3279, 16
        %v3468 = vrot.slane %v3466, 4
        %v3469 = vor.u32 %v3468, %v3464
        %v3470 = vrot.slane %v3469, 4
        %v3472 = vshll.u32 %v3280, 16
        %v3474 = vrot.slane %v3472, 5
        %v3475 = vsel %vm1409, %v3470, %v3474
        %v3477 = vshrl.u32 %v3281, 16
        %v3479 = vrot.slane %v3477, 4
        %v3480 = vshll.u32 %v3281, 16
        %v3482 = vrot.slane %v3480, 5
        %v3483 = vor.u32 %v3479, %v3482
        %v3484 = vrot.slane %v3483, 4
        %v3486 = vshll.u32 %v3282, 16
        %v3488 = vrot.slane %v3486, 5
        %v3489 = vsel %vm1409, %v3484, %v3488
        %v3490 = vshrl.u32 %v3282, 16
        %v3492 = vrot.slane %v3490, 4
        %v3493 = vor.u32 %v3492, %v3488
        %v3494 = vrot.slane %v3493, 4
        %v3496 = vshll.u32 %v3283, 16
        %v3498 = vrot.slane %v3496, 5
        %v3499 = vsel %vm1409, %v3494, %v3498
        %v3501 = vshrl.u32 %v3284, 16
        %v3503 = vrot.slane %v3501, 4
        %v3504 = vshll.u32 %v3284, 16
        %v3506 = vrot.slane %v3504, 5
        %v3507 = vor.u32 %v3503, %v3506
        %v3508 = vrot.slane %v3507, 4
        %v3510 = vshll.u32 %v3285, 16
        %v3512 = vrot.slane %v3510, 5
        %v3513 = vsel %vm1409, %v3508, %v3512
        %v3514 = vshrl.u32 %v3285, 16
        %v3516 = vrot.slane %v3514, 4
        %v3517 = vor.u32 %v3516, %v3512
        %v3518 = vrot.slane %v3517, 4
        %v3520 = vshll.u32 %v3286, 16
        %v3522 = vrot.slane %v3520, 5
        %v3523 = vsel %vm1409, %v3518, %v3522
        %v3525 = vshrl.u32 %v3287, 16
        %v3527 = vrot.slane %v3525, 4
        %v3528 = vshll.u32 %v3287, 16
        %v3530 = vrot.slane %v3528, 5
        %v3531 = vor.u32 %v3527, %v3530
        %v3532 = vrot.slane %v3531, 4
        %v3534 = vshll.u32 %v3288, 16
        %v3536 = vrot.slane %v3534, 5
        %v3537 = vsel %vm1409, %v3532, %v3536
        %v3538 = vshrl.u32 %v3288, 16
        %v3540 = vrot.slane %v3538, 4
        %v3541 = vor.u32 %v3540, %v3536
        %v3542 = vrot.slane %v3541, 4
        %v3544 = vshll.u32 %v3289, 16
        %v3546 = vrot.slane %v3544, 5
        %v3547 = vsel %vm1409, %v3542, %v3546
        %v3549 = vshrl.u32 %v3290, 16
        %v3551 = vrot.slane %v3549, 4
        %v3552 = vshll.u32 %v3290, 16
        %v3554 = vrot.slane %v3552, 5
        %v3555 = vor.u32 %v3551, %v3554
        %v3556 = vrot.slane %v3555, 4
        %v3558 = vshll.u32 %v3291, 16
        %v3560 = vrot.slane %v3558, 5
        %v3561 = vsel %vm1409, %v3556, %v3560
        %v3562 = vshrl.u32 %v3291, 16
        %v3564 = vrot.slane %v3562, 4
        %v3565 = vor.u32 %v3564, %v3560
        %v3566 = vrot.slane %v3565, 4
        %v3568 = vshll.u32 %v3292, 16
        %v3570 = vrot.slane %v3568, 5
        %v3571 = vsel %vm1409, %v3566, %v3570
        %v3573 = vshrl.u32 %v3293, 16
        %v3575 = vrot.slane %v3573, 4
        %v3576 = vshll.u32 %v3293, 16
        %v3578 = vrot.slane %v3576, 5
        %v3579 = vor.u32 %v3575, %v3578
        %v3580 = vrot.slane %v3579, 4
        %v3582 = vshll.u32 %v3294, 16
        %v3584 = vrot.slane %v3582, 5
        %v3585 = vsel %vm1409, %v3580, %v3584
        %v3586 = vshrl.u32 %v3294, 16
        %v3588 = vrot.slane %v3586, 4
        %v3589 = vor.u32 %v3588, %v3584
        %v3590 = vrot.slane %v3589, 4
        %v3592 = vshll.u32 %v3295, 16
        %v3594 = vrot.slane %v3592, 5
        %v3595 = vsel %vm1409, %v3590, %v3594
        %v3597 = vshrl.u32 %v3296, 16
        %v3599 = vrot.slane %v3597, 4
        %v3600 = vshll.u32 %v3296, 16
        %v3602 = vrot.slane %v3600, 5
        %v3603 = vor.u32 %v3599, %v3602
        %v3604 = vrot.slane %v3603, 4
        %v3606 = vshll.u32 %v3297, 16
        %v3608 = vrot.slane %v3606, 5
        %v3609 = vsel %vm1409, %v3604, %v3608
        %v3610 = vshrl.u32 %v3297, 16
        %v3612 = vrot.slane %v3610, 4
        %v3613 = vor.u32 %v3612, %v3608
        %v3614 = vrot.slane %v3613, 4
        %v3616 = vshll.u32 %v3298, 16
        %v3618 = vrot.slane %v3616, 5
        %v3619 = vsel %vm1409, %v3614, %v3618
        %v3621 = vshrl.u32 %v3299, 16
        %v3623 = vrot.slane %v3621, 4
        %v3624 = vshll.u32 %v3299, 16
        %v3626 = vrot.slane %v3624, 5
        %v3627 = vor.u32 %v3623, %v3626
        %v3628 = vrot.slane %v3627, 4
        %v3630 = vshll.u32 %v3300, 16
        %v3632 = vrot.slane %v3630, 5
        %v3633 = vsel %vm1409, %v3628, %v3632
        %v3634 = vshrl.u32 %v3300, 16
        %v3636 = vrot.slane %v3634, 4
        %v3637 = vor.u32 %v3636, %v3632
        %v3638 = vrot.slane %v3637, 4
        %v3640 = vshll.u32 %v3301, 16
        %v3642 = vrot.slane %v3640, 5
        %v3643 = vsel %vm1409, %v3638, %v3642
        %v3645 = vshrl.u32 %v3302, 16
        %v3647 = vrot.slane %v3645, 4
        %v3648 = vshll.u32 %v3302, 16
        %v3650 = vrot.slane %v3648, 5
        %v3651 = vor.u32 %v3647, %v3650
        %v3652 = vrot.slane %v3651, 4
        %v3654 = vshll.u32 %v3303, 16
        %v3656 = vrot.slane %v3654, 5
        %v3657 = vsel %vm1409, %v3652, %v3656
        %v3658 = vshrl.u32 %v3303, 16
        %v3660 = vrot.slane %v3658, 4
        %v3661 = vor.u32 %v3660, %v3656
        %v3662 = vrot.slane %v3661, 4
        %v3664 = vshll.u32 %v3304, 16
        %v3666 = vrot.slane %v3664, 5
        %v3667 = vsel %vm1409, %v3662, %v3666
        %v3669 = vshrl.u32 %v3305, 16
        %v3671 = vrot.slane %v3669, 4
        %v3672 = vshll.u32 %v3305, 16
        %v3674 = vrot.slane %v3672, 5
        %v3675 = vor.u32 %v3671, %v3674
        %v3676 = vrot.slane %v3675, 4
        %v3678 = vshll.u32 %v3306, 16
        %v3680 = vrot.slane %v3678, 5
        %v3681 = vsel %vm1409, %v3676, %v3680
        %v3682 = vshrl.u32 %v3306, 16
        %v3684 = vrot.slane %v3682, 4
        %v3685 = vor.u32 %v3684, %v3680
        %v3686 = vrot.slane %v3685, 4
        %v3688 = vshll.u32 %v3307, 16
        %v3690 = vrot.slane %v3688, 5
        %v3691 = vsel %vm1409, %v3686, %v3690
        %s3692 = scalar_lea.vmem [#allocation8], 256
        %v3693 = vld [vmem:[%s3692] sm:$0xf]
        %v3694 = vld [vmem:[%s3692 + $0x4] sm:$0xf]
        %v3695 = vld [vmem:[%s3692 + $0x8] sm:$0xf]
        %v3696 = vld [vmem:[%s3692 + $0xc] sm:$0xf]
        %v3697 = vld [vmem:[%s3692 + $0x10] sm:$0xf]
        %v3698 = vld [vmem:[%s3692 + $0x14] sm:$0xf]
        %v3699 = vld [vmem:[%s3692 + $0x18] sm:$0xf]
        %v3700 = vld [vmem:[%s3692 + $0x1c] sm:$0xf]
        %v3701 = vld [vmem:[%s3692 + $0x20] sm:$0xf]
        %v3702 = vld [vmem:[%s3692 + $0x24] sm:$0xf]
        %v3703 = vld [vmem:[%s3692 + $0x28] sm:$0xf]
        %v3704 = vld [vmem:[%s3692 + $0x2c] sm:$0xf]
        %v3705 = vld [vmem:[%s3692 + $0x30] sm:$0xf]
        %v3706 = vld [vmem:[%s3692 + $0x34] sm:$0xf]
        %v3707 = vld [vmem:[%s3692 + $0x38] sm:$0xf]
        %v3708 = vld [vmem:[%s3692 + $0x3c] sm:$0xf]
        %v3709 = vunpack.c.l.b16 %v3321
        %v3710 = vunpack.c.l.b16 %v3331
        %v3711 = vunpack.c.l.b16 %v3345
        %v3712 = vunpack.c.l.b16 %v3355
        %v3713 = vunpack.c.l.b16 %v3369
        %v3714 = vunpack.c.l.b16 %v3379
        %v3715 = vunpack.c.l.b16 %v3393
        %v3716 = vunpack.c.l.b16 %v3403
        %v3717 = vunpack.c.l.b16 %v3417
        %v3718 = vunpack.c.l.b16 %v3427
        %v3719 = vunpack.c.l.b16 %v3441
        %v3720 = vunpack.c.l.b16 %v3451
        %v3721 = vunpack.c.l.b16 %v3465
        %v3722 = vunpack.c.l.b16 %v3475
        %v3723 = vunpack.c.l.b16 %v3489
        %v3724 = vunpack.c.l.b16 %v3499
        %v3725 = vunpack.c.l.b16 %v3513
        %v3726 = vunpack.c.l.b16 %v3523
        %v3727 = vunpack.c.l.b16 %v3537
        %v3728 = vunpack.c.l.b16 %v3547
        %v3729 = vunpack.c.l.b16 %v3561
        %v3730 = vunpack.c.l.b16 %v3571
        %v3731 = vunpack.c.l.b16 %v3585
        %v3732 = vunpack.c.l.b16 %v3595
        %v3733 = vunpack.c.l.b16 %v3609
        %v3734 = vunpack.c.l.b16 %v3619
        %v3735 = vunpack.c.l.b16 %v3633
        %v3736 = vunpack.c.l.b16 %v3643
        %v3737 = vunpack.c.l.b16 %v3657
        %v3738 = vunpack.c.l.b16 %v3667
        %v3739 = vunpack.c.l.b16 %v3681
        %v3740 = vunpack.c.l.b16 %v3691
        %v3741 = vpack.c.b16 %v3710, %v3709
        %v3742 = vpack.c.b16 %v3712, %v3711
        %v3743 = vpack.c.b16 %v3714, %v3713
        %v3744 = vpack.c.b16 %v3716, %v3715
        %v3745 = vpack.c.b16 %v3718, %v3717
        %v3746 = vpack.c.b16 %v3720, %v3719
        %v3747 = vpack.c.b16 %v3722, %v3721
        %v3748 = vpack.c.b16 %v3724, %v3723
        %v3749 = vpack.c.b16 %v3726, %v3725
        %v3750 = vpack.c.b16 %v3728, %v3727
        %v3751 = vpack.c.b16 %v3730, %v3729
        %v3752 = vpack.c.b16 %v3732, %v3731
        %v3753 = vpack.c.b16 %v3734, %v3733
        %v3754 = vpack.c.b16 %v3736, %v3735
        %v3755 = vpack.c.b16 %v3738, %v3737
        %v3756 = vpack.c.b16 %v3740, %v3739
        %v3789 = vunpack.c.l.b16 %v3693
        %v3790 = vunpack.c.l.b16 %v3694
        %v3791 = vunpack.c.l.b16 %v3695
        %v3792 = vunpack.c.l.b16 %v3696
        %v3793 = vunpack.c.l.b16 %v3697
        %v3794 = vunpack.c.l.b16 %v3698
        %v3795 = vunpack.c.l.b16 %v3699
        %v3796 = vunpack.c.l.b16 %v3700
        %v3797 = vunpack.c.l.b16 %v3701
        %v3798 = vunpack.c.l.b16 %v3702
        %v3799 = vunpack.c.l.b16 %v3703
        %v3800 = vunpack.c.l.b16 %v3704
        %v3801 = vunpack.c.l.b16 %v3705
        %v3802 = vunpack.c.l.b16 %v3706
        %v3803 = vunpack.c.l.b16 %v3707
        %v3804 = vunpack.c.l.b16 %v3708
        %v3805 = vpack.c.b16 %v3790, %v3789
        %v3806 = vpack.c.b16 %v3792, %v3791
        %v3807 = vpack.c.b16 %v3794, %v3793
        %v3808 = vpack.c.b16 %v3796, %v3795
        %v3809 = vpack.c.b16 %v3798, %v3797
        %v3810 = vpack.c.b16 %v3800, %v3799
        %v3811 = vpack.c.b16 %v3802, %v3801
        %v3812 = vpack.c.b16 %v3804, %v3803
        %3821 = vmatprep.subr.bf16.mxu0 0
        %3822 = vmatpush1.bf16.msra.mxu0 %v3805
        %3823 = vmatprep.subr.bf16.mxu0 0
        %3824 = vmatpush1.bf16.msra.mxu0 %v3806
        %3825 = vmatprep.subr.bf16.mxu0 0
        %3826 = vmatpush1.bf16.msra.mxu0 %v3807
        %3827 = vmatprep.subr.bf16.mxu0 0
        %3828 = vmatpush1.bf16.msra.mxu0 %v3808
        %3829 = vmatprep.subr.bf16.mxu0 0
        %3830 = vmatpush1.bf16.msra.mxu0 %v3809
        %3831 = vmatprep.subr.bf16.mxu0 0
        %3832 = vmatpush1.bf16.msra.mxu0 %v3810
        %3833 = vmatprep.subr.bf16.mxu0 0
        %3834 = vmatpush1.bf16.msra.mxu0 %v3811
        %3835 = vmatprep.subr.bf16.mxu0 0
        %3836 = vmatpush1.bf16.msra.mxu0 %v3812
        %3837 = vmatprep.subr.bf16.mxu0 0
        %3838 = vmatpush1.bf16.msra.mxu0 0
        %3839 = vmatprep.subr.bf16.mxu0 0
        %3840 = vmatpush1.bf16.msra.mxu0 0
        %3841 = vmatprep.subr.bf16.mxu0 0
        %3842 = vmatpush1.bf16.msra.mxu0 0
        %3843 = vmatprep.subr.bf16.mxu0 0
        %3844 = vmatpush1.bf16.msra.mxu0 0
        %3845 = vmatprep.subr.bf16.mxu0 0
        %3846 = vmatpush1.bf16.msra.mxu0 0
        %3847 = vmatprep.subr.bf16.mxu0 0
        %3848 = vmatpush1.bf16.msra.mxu0 0
        %3849 = vmatprep.subr.bf16.mxu0 0
        %3850 = vmatpush1.bf16.msra.mxu0 0
        %3851 = vmatprep.subr.bf16.mxu0 0
        %3852 = vmatpush1.bf16.msra.mxu0 0
        %3853 = vmatprep.mubr.bf16.mxu0 0
        %3854 = vmatmul.mubr.bf16.gmra.mrb[0].mxu0 %v3741
        %v3855 = vpop.f32.mrb[0].mxu0
        %v3856 = vadd.f32 0.0, %v3855
        %v3857 = vpop.f32.mrb[0].mxu0
        %v3858 = vpop.f32.mrb[0].mxu0
        %v3859 = vadd.f32 0.0, %v3858
        %v3860 = vpop.f32.mrb[0].mxu0
        %3861 = vmatprep.mubr.bf16.mxu0 0
        %3862 = vmatmul.mubr.bf16.gmra.mrb[0].mxu0 %v3742
        %v3863 = vpop.f32.mrb[0].mxu0
        %v3864 = vadd.f32 0.0, %v3863
        %v3865 = vpop.f32.mrb[0].mxu0
        %v3866 = vpop.f32.mrb[0].mxu0
        %v3867 = vadd.f32 0.0, %v3866
        %v3868 = vpop.f32.mrb[0].mxu0
        %3869 = vmatprep.mubr.bf16.mxu0 0
        %3870 = vmatmul.mubr.bf16.gmra.mrb[0].mxu0 %v3743
        %v3871 = vpop.f32.mrb[0].mxu0
        %v3872 = vadd.f32 0.0, %v3871
        %v3873 = vpop.f32.mrb[0].mxu0
        %v3874 = vpop.f32.mrb[0].mxu0
        %v3875 = vadd.f32 0.0, %v3874
        %v3876 = vpop.f32.mrb[0].mxu0
        %3877 = vmatprep.mubr.bf16.mxu0 0
        %3878 = vmatmul.mubr.bf16.gmra.mrb[0].mxu0 %v3744
        %v3879 = vpop.f32.mrb[0].mxu0
        %v3880 = vadd.f32 0.0, %v3879
        %v3881 = vpop.f32.mrb[0].mxu0
        %v3882 = vpop.f32.mrb[0].mxu0
        %v3883 = vadd.f32 0.0, %v3882
        %v3884 = vpop.f32.mrb[0].mxu0
        %3885 = vmatprep.mubr.bf16.mxu0 0
        %3886 = vmatmul.mubr.bf16.gmra.mrb[0].mxu0 %v3745
        %v3887 = vpop.f32.mrb[0].mxu0
        %v3888 = vadd.f32 0.0, %v3887
        %v3889 = vpop.f32.mrb[0].mxu0
        %v3890 = vpop.f32.mrb[0].mxu0
        %v3891 = vadd.f32 0.0, %v3890
        %v3892 = vpop.f32.mrb[0].mxu0
        %3893 = vmatprep.mubr.bf16.mxu0 0
        %3894 = vmatmul.mubr.bf16.gmra.mrb[0].mxu0 %v3746
        %v3895 = vpop.f32.mrb[0].mxu0
        %v3896 = vadd.f32 0.0, %v3895
        %v3897 = vpop.f32.mrb[0].mxu0
        %v3898 = vpop.f32.mrb[0].mxu0
        %v3899 = vadd.f32 0.0, %v3898
        %v3900 = vpop.f32.mrb[0].mxu0
        %3901 = vmatprep.mubr.bf16.mxu0 0
        %3902 = vmatmul.mubr.bf16.gmra.mrb[0].mxu0 %v3747
        %v3903 = vpop.f32.mrb[0].mxu0
        %v3904 = vadd.f32 0.0, %v3903
        %v3905 = vpop.f32.mrb[0].mxu0
        %v3906 = vpop.f32.mrb[0].mxu0
        %v3907 = vadd.f32 0.0, %v3906
        %v3908 = vpop.f32.mrb[0].mxu0
        %3909 = vmatprep.mubr.bf16.mxu0 0
        %3910 = vmatmul.mubr.bf16.gmra.mrb[0].mxu0 %v3748
        %v3911 = vpop.f32.mrb[0].mxu0
        %v3912 = vadd.f32 0.0, %v3911
        %v3913 = vpop.f32.mrb[0].mxu0
        %v3914 = vpop.f32.mrb[0].mxu0
        %v3915 = vadd.f32 0.0, %v3914
        %v3916 = vpop.f32.mrb[0].mxu0
        %3917 = vmatprep.mubr.bf16.mxu0 0
        %3918 = vmatmul.mubr.bf16.gmra.mrb[0].mxu0 %v3749
        %v3919 = vpop.f32.mrb[0].mxu0
        %v3920 = vadd.f32 0.0, %v3919
        %v3921 = vpop.f32.mrb[0].mxu0
        %v3922 = vpop.f32.mrb[0].mxu0
        %v3923 = vadd.f32 0.0, %v3922
        %v3924 = vpop.f32.mrb[0].mxu0
        %3925 = vmatprep.mubr.bf16.mxu0 0
        %3926 = vmatmul.mubr.bf16.gmra.mrb[0].mxu0 %v3750
        %v3927 = vpop.f32.mrb[0].mxu0
        %v3928 = vadd.f32 0.0, %v3927
        %v3929 = vpop.f32.mrb[0].mxu0
        %v3930 = vpop.f32.mrb[0].mxu0
        %v3931 = vadd.f32 0.0, %v3930
        %v3932 = vpop.f32.mrb[0].mxu0
        %3933 = vmatprep.mubr.bf16.mxu0 0
        %3934 = vmatmul.mubr.bf16.gmra.mrb[0].mxu0 %v3751
        %v3935 = vpop.f32.mrb[0].mxu0
        %v3936 = vadd.f32 0.0, %v3935
        %v3937 = vpop.f32.mrb[0].mxu0
        %v3938 = vpop.f32.mrb[0].mxu0
        %v3939 = vadd.f32 0.0, %v3938
        %v3940 = vpop.f32.mrb[0].mxu0
        %3941 = vmatprep.mubr.bf16.mxu0 0
        %3942 = vmatmul.mubr.bf16.gmra.mrb[0].mxu0 %v3752
        %v3943 = vpop.f32.mrb[0].mxu0
        %v3944 = vadd.f32 0.0, %v3943
        %v3945 = vpop.f32.mrb[0].mxu0
        %v3946 = vpop.f32.mrb[0].mxu0
        %v3947 = vadd.f32 0.0, %v3946
        %v3948 = vpop.f32.mrb[0].mxu0
        %3949 = vmatprep.mubr.bf16.mxu0 0
        %3950 = vmatmul.mubr.bf16.gmra.mrb[0].mxu0 %v3753
        %v3951 = vpop.f32.mrb[0].mxu0
        %v3952 = vadd.f32 0.0, %v3951
        %v3953 = vpop.f32.mrb[0].mxu0
        %v3954 = vpop.f32.mrb[0].mxu0
        %v3955 = vadd.f32 0.0, %v3954
        %v3956 = vpop.f32.mrb[0].mxu0
        %3957 = vmatprep.mubr.bf16.mxu0 0
        %3958 = vmatmul.mubr.bf16.gmra.mrb[0].mxu0 %v3754
        %v3959 = vpop.f32.mrb[0].mxu0
        %v3960 = vadd.f32 0.0, %v3959
        %v3961 = vpop.f32.mrb[0].mxu0
        %v3962 = vpop.f32.mrb[0].mxu0
        %v3963 = vadd.f32 0.0, %v3962
        %v3964 = vpop.f32.mrb[0].mxu0
        %3965 = vmatprep.mubr.bf16.mxu0 0
        %3966 = vmatmul.mubr.bf16.gmra.mrb[0].mxu0 %v3755
        %v3967 = vpop.f32.mrb[0].mxu0
        %v3968 = vadd.f32 0.0, %v3967
        %v3969 = vpop.f32.mrb[0].mxu0
        %v3970 = vpop.f32.mrb[0].mxu0
        %v3971 = vadd.f32 0.0, %v3970
        %v3972 = vpop.f32.mrb[0].mxu0
        %3973 = vmatprep.mubr.bf16.mxu0 0
        %3974 = vmatmul.mubr.bf16.gmra.mrb[0].mxu0 %v3756
        %v3975 = vpop.f32.mrb[0].mxu0
        %v3976 = vadd.f32 0.0, %v3975
        %v3977 = vpop.f32.mrb[0].mxu0
        %v3978 = vpop.f32.mrb[0].mxu0
        %v3979 = vadd.f32 0.0, %v3978
        %v3980 = vpop.f32.mrb[0].mxu0
        %3981 = vdwg.mxu0
        %v3982 = vadd.f32 %v3228, %v3856
        %v3983 = vadd.f32 %v3229, %v3859
        %v3984 = vadd.f32 %v3230, %v3864
        %v3985 = vadd.f32 %v3231, %v3867
        %v3986 = vadd.f32 %v3232, %v3872
        %v3987 = vadd.f32 %v3233, %v3875
        %v3988 = vadd.f32 %v3234, %v3880
        %v3989 = vadd.f32 %v3235, %v3883
        %v3990 = vadd.f32 %v3236, %v3888
        %v3991 = vadd.f32 %v3237, %v3891
        %v3992 = vadd.f32 %v3238, %v3896
        %v3993 = vadd.f32 %v3239, %v3899
        %v3994 = vadd.f32 %v3240, %v3904
        %v3995 = vadd.f32 %v3241, %v3907
        %v3996 = vadd.f32 %v3242, %v3912
        %v3997 = vadd.f32 %v3243, %v3915
        %v3998 = vadd.f32 %v3244, %v3920
        %v3999 = vadd.f32 %v3245, %v3923
        %v4000 = vadd.f32 %v3246, %v3928
        %v4001 = vadd.f32 %v3247, %v3931
        %v4002 = vadd.f32 %v3248, %v3936
        %v4003 = vadd.f32 %v3249, %v3939
        %v4004 = vadd.f32 %v3250, %v3944
        %v4005 = vadd.f32 %v3251, %v3947
        %v4006 = vadd.f32 %v3252, %v3952
        %v4007 = vadd.f32 %v3253, %v3955
        %v4008 = vadd.f32 %v3254, %v3960
        %v4009 = vadd.f32 %v3255, %v3963
        %v4010 = vadd.f32 %v3256, %v3968
        %v4011 = vadd.f32 %v3257, %v3971
        %v4012 = vadd.f32 %v3258, %v3976
        %v4013 = vadd.f32 %v3259, %v3979
        %v4014 = vld [vmem:[%s1294] sm:$0xe]
        %v4015 = vld [vmem:[%s1294 + $0xc] sm:$0xe]
        %v4016 = vld [vmem:[%s1294 + $0x18] sm:$0xe]
        %v4017 = vld [vmem:[%s1294 + $0x24] sm:$0xe]
        %v4018 = vld [vmem:[%s1294 + $0x30] sm:$0xe]
        %v4019 = vld [vmem:[%s1294 + $0x3c] sm:$0xe]
        %v4020 = vld [vmem:[%s1294 + $0x48] sm:$0xe]
        %v4021 = vld [vmem:[%s1294 + $0x54] sm:$0xe]
        %v4022 = vld [vmem:[%s1294 + $0x60] sm:$0xe]
        %v4023 = vld [vmem:[%s1294 + $0x6c] sm:$0xe]
        %v4024 = vld [vmem:[%s1294 + $0x78] sm:$0xe]
        %v4025 = vld [vmem:[%s1294 + $0x84] sm:$0xe]
        %v4026 = vld [vmem:[%s1294 + $0x90] sm:$0xe]
        %v4027 = vld [vmem:[%s1294 + $0x9c] sm:$0xe]
        %v4028 = vld [vmem:[%s1294 + $0xa8] sm:$0xe]
        %v4029 = vld [vmem:[%s1294 + $0xb4] sm:$0xe]
        %v4078 = vrot.slane %v4014, 5
        %v4079 = vrot.slane %v4078, 4
        %v4080 = vrot.slane %v3261, 5
        %v4081 = vsel %vm2439, %v4079, %v4080
        %v4082 = vrot.slane %v4080, 4
        %v4083 = vrot.slane %v3262, 5
        %v4084 = vsel %vm2439, %v4082, %v4083
        %v4085 = vrot.slane %v4015, 5
        %v4086 = vrot.slane %v4085, 4
        %v4087 = vrot.slane %v3264, 5
        %v4088 = vsel %vm2439, %v4086, %v4087
        %v4089 = vrot.slane %v4087, 4
        %v4090 = vrot.slane %v3265, 5
        %v4091 = vsel %vm2439, %v4089, %v4090
        %v4092 = vrot.slane %v4016, 5
        %v4093 = vrot.slane %v4092, 4
        %v4094 = vrot.slane %v3267, 5
        %v4095 = vsel %vm2439, %v4093, %v4094
        %v4096 = vrot.slane %v4094, 4
        %v4097 = vrot.slane %v3268, 5
        %v4098 = vsel %vm2439, %v4096, %v4097
        %v4099 = vrot.slane %v4017, 5
        %v4100 = vrot.slane %v4099, 4
        %v4101 = vrot.slane %v3270, 5
        %v4102 = vsel %vm2439, %v4100, %v4101
        %v4103 = vrot.slane %v4101, 4
        %v4104 = vrot.slane %v3271, 5
        %v4105 = vsel %vm2439, %v4103, %v4104
        %v4106 = vrot.slane %v4018, 5
        %v4107 = vrot.slane %v4106, 4
        %v4108 = vrot.slane %v3273, 5
        %v4109 = vsel %vm2439, %v4107, %v4108
        %v4110 = vrot.slane %v4108, 4
        %v4111 = vrot.slane %v3274, 5
        %v4112 = vsel %vm2439, %v4110, %v4111
        %v4113 = vrot.slane %v4019, 5
        %v4114 = vrot.slane %v4113, 4
        %v4115 = vrot.slane %v3276, 5
        %v4116 = vsel %vm2439, %v4114, %v4115
        %v4117 = vrot.slane %v4115, 4
        %v4118 = vrot.slane %v3277, 5
        %v4119 = vsel %vm2439, %v4117, %v4118
        %v4120 = vrot.slane %v4020, 5
        %v4121 = vrot.slane %v4120, 4
        %v4122 = vrot.slane %v3279, 5
        %v4123 = vsel %vm2439, %v4121, %v4122
        %v4124 = vrot.slane %v4122, 4
        %v4125 = vrot.slane %v3280, 5
        %v4126 = vsel %vm2439, %v4124, %v4125
        %v4127 = vrot.slane %v4021, 5
        %v4128 = vrot.slane %v4127, 4
        %v4129 = vrot.slane %v3282, 5
        %v4130 = vsel %vm2439, %v4128, %v4129
        %v4131 = vrot.slane %v4129, 4
        %v4132 = vrot.slane %v3283, 5
        %v4133 = vsel %vm2439, %v4131, %v4132
        %v4134 = vrot.slane %v4022, 5
        %v4135 = vrot.slane %v4134, 4
        %v4136 = vrot.slane %v3285, 5
        %v4137 = vsel %vm2439, %v4135, %v4136
        %v4138 = vrot.slane %v4136, 4
        %v4139 = vrot.slane %v3286, 5
        %v4140 = vsel %vm2439, %v4138, %v4139
        %v4141 = vrot.slane %v4023, 5
        %v4142 = vrot.slane %v4141, 4
        %v4143 = vrot.slane %v3288, 5
        %v4144 = vsel %vm2439, %v4142, %v4143
        %v4145 = vrot.slane %v4143, 4
        %v4146 = vrot.slane %v3289, 5
        %v4147 = vsel %vm2439, %v4145, %v4146
        %v4148 = vrot.slane %v4024, 5
        %v4149 = vrot.slane %v4148, 4
        %v4150 = vrot.slane %v3291, 5
        %v4151 = vsel %vm2439, %v4149, %v4150
        %v4152 = vrot.slane %v4150, 4
        %v4153 = vrot.slane %v3292, 5
        %v4154 = vsel %vm2439, %v4152, %v4153
        %v4155 = vrot.slane %v4025, 5
        %v4156 = vrot.slane %v4155, 4
        %v4157 = vrot.slane %v3294, 5
        %v4158 = vsel %vm2439, %v4156, %v4157
        %v4159 = vrot.slane %v4157, 4
        %v4160 = vrot.slane %v3295, 5
        %v4161 = vsel %vm2439, %v4159, %v4160
        %v4162 = vrot.slane %v4026, 5
        %v4163 = vrot.slane %v4162, 4
        %v4164 = vrot.slane %v3297, 5
        %v4165 = vsel %vm2439, %v4163, %v4164
        %v4166 = vrot.slane %v4164, 4
        %v4167 = vrot.slane %v3298, 5
        %v4168 = vsel %vm2439, %v4166, %v4167
        %v4169 = vrot.slane %v4027, 5
        %v4170 = vrot.slane %v4169, 4
        %v4171 = vrot.slane %v3300, 5
        %v4172 = vsel %vm2439, %v4170, %v4171
        %v4173 = vrot.slane %v4171, 4
        %v4174 = vrot.slane %v3301, 5
        %v4175 = vsel %vm2439, %v4173, %v4174
        %v4176 = vrot.slane %v4028, 5
        %v4177 = vrot.slane %v4176, 4
        %v4178 = vrot.slane %v3303, 5
        %v4179 = vsel %vm2439, %v4177, %v4178
        %v4180 = vrot.slane %v4178, 4
        %v4181 = vrot.slane %v3304, 5
        %v4182 = vsel %vm2439, %v4180, %v4181
        %v4183 = vrot.slane %v4029, 5
        %v4184 = vrot.slane %v4183, 4
        %v4185 = vrot.slane %v3306, 5
        %v4186 = vsel %vm2439, %v4184, %v4185
        %v4187 = vrot.slane %v4185, 4
        %v4188 = vrot.slane %v3307, 5
        %v4189 = vsel %vm2439, %v4187, %v4188
        %s4190 = scalar_lea.vmem [#allocation8], 320
        %v4191 = vld [vmem:[%s4190] sm:$0xf]
        %v4192 = vld [vmem:[%s4190 + $0x4] sm:$0xf]
        %v4193 = vld [vmem:[%s4190 + $0x8] sm:$0xf]
        %v4194 = vld [vmem:[%s4190 + $0xc] sm:$0xf]
        %v4195 = vld [vmem:[%s4190 + $0x10] sm:$0xf]
        %v4196 = vld [vmem:[%s4190 + $0x14] sm:$0xf]
        %v4197 = vld [vmem:[%s4190 + $0x18] sm:$0xf]
        %v4198 = vld [vmem:[%s4190 + $0x1c] sm:$0xf]
        %v4199 = vld [vmem:[%s4190 + $0x20] sm:$0xf]
        %v4200 = vld [vmem:[%s4190 + $0x24] sm:$0xf]
        %v4201 = vld [vmem:[%s4190 + $0x28] sm:$0xf]
        %v4202 = vld [vmem:[%s4190 + $0x2c] sm:$0xf]
        %v4203 = vld [vmem:[%s4190 + $0x30] sm:$0xf]
        %v4204 = vld [vmem:[%s4190 + $0x34] sm:$0xf]
        %v4205 = vld [vmem:[%s4190 + $0x38] sm:$0xf]
        %v4206 = vld [vmem:[%s4190 + $0x3c] sm:$0xf]
        %v4207 = vunpack.c.l.b16 %v4081
        %v4208 = vunpack.c.l.b16 %v4084
        %v4209 = vunpack.c.l.b16 %v4088
        %v4210 = vunpack.c.l.b16 %v4091
        %v4211 = vunpack.c.l.b16 %v4095
        %v4212 = vunpack.c.l.b16 %v4098
        %v4213 = vunpack.c.l.b16 %v4102
        %v4214 = vunpack.c.l.b16 %v4105
        %v4215 = vunpack.c.l.b16 %v4109
        %v4216 = vunpack.c.l.b16 %v4112
        %v4217 = vunpack.c.l.b16 %v4116
        %v4218 = vunpack.c.l.b16 %v4119
        %v4219 = vunpack.c.l.b16 %v4123
        %v4220 = vunpack.c.l.b16 %v4126
        %v4221 = vunpack.c.l.b16 %v4130
        %v4222 = vunpack.c.l.b16 %v4133
        %v4223 = vunpack.c.l.b16 %v4137
        %v4224 = vunpack.c.l.b16 %v4140
        %v4225 = vunpack.c.l.b16 %v4144
        %v4226 = vunpack.c.l.b16 %v4147
        %v4227 = vunpack.c.l.b16 %v4151
        %v4228 = vunpack.c.l.b16 %v4154
        %v4229 = vunpack.c.l.b16 %v4158
        %v4230 = vunpack.c.l.b16 %v4161
        %v4231 = vunpack.c.l.b16 %v4165
        %v4232 = vunpack.c.l.b16 %v4168
        %v4233 = vunpack.c.l.b16 %v4172
        %v4234 = vunpack.c.l.b16 %v4175
        %v4235 = vunpack.c.l.b16 %v4179
        %v4236 = vunpack.c.l.b16 %v4182
        %v4237 = vunpack.c.l.b16 %v4186
        %v4238 = vunpack.c.l.b16 %v4189
        %v4239 = vpack.c.b16 %v4208, %v4207
        %v4240 = vpack.c.b16 %v4210, %v4209
        %v4241 = vpack.c.b16 %v4212, %v4211
        %v4242 = vpack.c.b16 %v4214, %v4213
        %v4243 = vpack.c.b16 %v4216, %v4215
        %v4244 = vpack.c.b16 %v4218, %v4217
        %v4245 = vpack.c.b16 %v4220, %v4219
        %v4246 = vpack.c.b16 %v4222, %v4221
        %v4247 = vpack.c.b16 %v4224, %v4223
        %v4248 = vpack.c.b16 %v4226, %v4225
        %v4249 = vpack.c.b16 %v4228, %v4227
        %v4250 = vpack.c.b16 %v4230, %v4229
        %v4251 = vpack.c.b16 %v4232, %v4231
        %v4252 = vpack.c.b16 %v4234, %v4233
        %v4253 = vpack.c.b16 %v4236, %v4235
        %v4254 = vpack.c.b16 %v4238, %v4237
        %v4287 = vunpack.c.l.b16 %v4191
        %v4288 = vunpack.c.l.b16 %v4192
        %v4289 = vunpack.c.l.b16 %v4193
        %v4290 = vunpack.c.l.b16 %v4194
        %v4291 = vunpack.c.l.b16 %v4195
        %v4292 = vunpack.c.l.b16 %v4196
        %v4293 = vunpack.c.l.b16 %v4197
        %v4294 = vunpack.c.l.b16 %v4198
        %v4295 = vunpack.c.l.b16 %v4199
        %v4296 = vunpack.c.l.b16 %v4200
        %v4297 = vunpack.c.l.b16 %v4201
        %v4298 = vunpack.c.l.b16 %v4202
        %v4299 = vunpack.c.l.b16 %v4203
        %v4300 = vunpack.c.l.b16 %v4204
        %v4301 = vunpack.c.l.b16 %v4205
        %v4302 = vunpack.c.l.b16 %v4206
        %v4303 = vpack.c.b16 %v4288, %v4287
        %v4304 = vpack.c.b16 %v4290, %v4289
        %v4305 = vpack.c.b16 %v4292, %v4291
        %v4306 = vpack.c.b16 %v4294, %v4293
        %v4307 = vpack.c.b16 %v4296, %v4295
        %v4308 = vpack.c.b16 %v4298, %v4297
        %v4309 = vpack.c.b16 %v4300, %v4299
        %v4310 = vpack.c.b16 %v4302, %v4301
        %4319 = vmatprep.subr.bf16.mxu0 0
        %4320 = vmatpush1.bf16.msra.mxu0 %v4303
        %4321 = vmatprep.subr.bf16.mxu0 0
        %4322 = vmatpush1.bf16.msra.mxu0 %v4304
        %4323 = vmatprep.subr.bf16.mxu0 0
        %4324 = vmatpush1.bf16.msra.mxu0 %v4305
        %4325 = vmatprep.subr.bf16.mxu0 0
        %4326 = vmatpush1.bf16.msra.mxu0 %v4306
        %4327 = vmatprep.subr.bf16.mxu0 0
        %4328 = vmatpush1.bf16.msra.mxu0 %v4307
        %4329 = vmatprep.subr.bf16.mxu0 0
        %4330 = vmatpush1.bf16.msra.mxu0 %v4308
        %4331 = vmatprep.subr.bf16.mxu0 0
        %4332 = vmatpush1.bf16.msra.mxu0 %v4309
        %4333 = vmatprep.subr.bf16.mxu0 0
        %4334 = vmatpush1.bf16.msra.mxu0 %v4310
        %4335 = vmatprep.subr.bf16.mxu0 0
        %4336 = vmatpush1.bf16.msra.mxu0 0
        %4337 = vmatprep.subr.bf16.mxu0 0
        %4338 = vmatpush1.bf16.msra.mxu0 0
        %4339 = vmatprep.subr.bf16.mxu0 0
        %4340 = vmatpush1.bf16.msra.mxu0 0
        %4341 = vmatprep.subr.bf16.mxu0 0
        %4342 = vmatpush1.bf16.msra.mxu0 0
        %4343 = vmatprep.subr.bf16.mxu0 0
        %4344 = vmatpush1.bf16.msra.mxu0 0
        %4345 = vmatprep.subr.bf16.mxu0 0
        %4346 = vmatpush1.bf16.msra.mxu0 0
        %4347 = vmatprep.subr.bf16.mxu0 0
        %4348 = vmatpush1.bf16.msra.mxu0 0
        %4349 = vmatprep.subr.bf16.mxu0 0
        %4350 = vmatpush1.bf16.msra.mxu0 0
        %4351 = vmatprep.mubr.bf16.mxu0 0
        %4352 = vmatmul.mubr.bf16.gmra.mrb[0].mxu0 %v4239
        %v4353 = vpop.f32.mrb[0].mxu0
        %v4354 = vadd.f32 0.0, %v4353
        %v4355 = vpop.f32.mrb[0].mxu0
        %v4356 = vpop.f32.mrb[0].mxu0
        %v4357 = vadd.f32 0.0, %v4356
        %v4358 = vpop.f32.mrb[0].mxu0
        %4359 = vmatprep.mubr.bf16.mxu0 0
        %4360 = vmatmul.mubr.bf16.gmra.mrb[0].mxu0 %v4240
        %v4361 = vpop.f32.mrb[0].mxu0
        %v4362 = vadd.f32 0.0, %v4361
        %v4363 = vpop.f32.mrb[0].mxu0
        %v4364 = vpop.f32.mrb[0].mxu0
        %v4365 = vadd.f32 0.0, %v4364
        %v4366 = vpop.f32.mrb[0].mxu0
        %4367 = vmatprep.mubr.bf16.mxu0 0
        %4368 = vmatmul.mubr.bf16.gmra.mrb[0].mxu0 %v4241
        %v4369 = vpop.f32.mrb[0].mxu0
        %v4370 = vadd.f32 0.0, %v4369
        %v4371 = vpop.f32.mrb[0].mxu0
        %v4372 = vpop.f32.mrb[0].mxu0
        %v4373 = vadd.f32 0.0, %v4372
        %v4374 = vpop.f32.mrb[0].mxu0
        %4375 = vmatprep.mubr.bf16.mxu0 0
        %4376 = vmatmul.mubr.bf16.gmra.mrb[0].mxu0 %v4242
        %v4377 = vpop.f32.mrb[0].mxu0
        %v4378 = vadd.f32 0.0, %v4377
        %v4379 = vpop.f32.mrb[0].mxu0
        %v4380 = vpop.f32.mrb[0].mxu0
        %v4381 = vadd.f32 0.0, %v4380
        %v4382 = vpop.f32.mrb[0].mxu0
        %4383 = vmatprep.mubr.bf16.mxu0 0
        %4384 = vmatmul.mubr.bf16.gmra.mrb[0].mxu0 %v4243
        %v4385 = vpop.f32.mrb[0].mxu0
        %v4386 = vadd.f32 0.0, %v4385
        %v4387 = vpop.f32.mrb[0].mxu0
        %v4388 = vpop.f32.mrb[0].mxu0
        %v4389 = vadd.f32 0.0, %v4388
        %v4390 = vpop.f32.mrb[0].mxu0
        %4391 = vmatprep.mubr.bf16.mxu0 0
        %4392 = vmatmul.mubr.bf16.gmra.mrb[0].mxu0 %v4244
        %v4393 = vpop.f32.mrb[0].mxu0
        %v4394 = vadd.f32 0.0, %v4393
        %v4395 = vpop.f32.mrb[0].mxu0
        %v4396 = vpop.f32.mrb[0].mxu0
        %v4397 = vadd.f32 0.0, %v4396
        %v4398 = vpop.f32.mrb[0].mxu0
        %4399 = vmatprep.mubr.bf16.mxu0 0
        %4400 = vmatmul.mubr.bf16.gmra.mrb[0].mxu0 %v4245
        %v4401 = vpop.f32.mrb[0].mxu0
        %v4402 = vadd.f32 0.0, %v4401
        %v4403 = vpop.f32.mrb[0].mxu0
        %v4404 = vpop.f32.mrb[0].mxu0
        %v4405 = vadd.f32 0.0, %v4404
        %v4406 = vpop.f32.mrb[0].mxu0
        %4407 = vmatprep.mubr.bf16.mxu0 0
        %4408 = vmatmul.mubr.bf16.gmra.mrb[0].mxu0 %v4246
        %v4409 = vpop.f32.mrb[0].mxu0
        %v4410 = vadd.f32 0.0, %v4409
        %v4411 = vpop.f32.mrb[0].mxu0
        %v4412 = vpop.f32.mrb[0].mxu0
        %v4413 = vadd.f32 0.0, %v4412
        %v4414 = vpop.f32.mrb[0].mxu0
        %4415 = vmatprep.mubr.bf16.mxu0 0
        %4416 = vmatmul.mubr.bf16.gmra.mrb[0].mxu0 %v4247
        %v4417 = vpop.f32.mrb[0].mxu0
        %v4418 = vadd.f32 0.0, %v4417
        %v4419 = vpop.f32.mrb[0].mxu0
        %v4420 = vpop.f32.mrb[0].mxu0
        %v4421 = vadd.f32 0.0, %v4420
        %v4422 = vpop.f32.mrb[0].mxu0
        %4423 = vmatprep.mubr.bf16.mxu0 0
        %4424 = vmatmul.mubr.bf16.gmra.mrb[0].mxu0 %v4248
        %v4425 = vpop.f32.mrb[0].mxu0
        %v4426 = vadd.f32 0.0, %v4425
        %v4427 = vpop.f32.mrb[0].mxu0
        %v4428 = vpop.f32.mrb[0].mxu0
        %v4429 = vadd.f32 0.0, %v4428
        %v4430 = vpop.f32.mrb[0].mxu0
        %4431 = vmatprep.mubr.bf16.mxu0 0
        %4432 = vmatmul.mubr.bf16.gmra.mrb[0].mxu0 %v4249
        %v4433 = vpop.f32.mrb[0].mxu0
        %v4434 = vadd.f32 0.0, %v4433
        %v4435 = vpop.f32.mrb[0].mxu0
        %v4436 = vpop.f32.mrb[0].mxu0
        %v4437 = vadd.f32 0.0, %v4436
        %v4438 = vpop.f32.mrb[0].mxu0
        %4439 = vmatprep.mubr.bf16.mxu0 0
        %4440 = vmatmul.mubr.bf16.gmra.mrb[0].mxu0 %v4250
        %v4441 = vpop.f32.mrb[0].mxu0
        %v4442 = vadd.f32 0.0, %v4441
        %v4443 = vpop.f32.mrb[0].mxu0
        %v4444 = vpop.f32.mrb[0].mxu0
        %v4445 = vadd.f32 0.0, %v4444
        %v4446 = vpop.f32.mrb[0].mxu0
        %4447 = vmatprep.mubr.bf16.mxu0 0
        %4448 = vmatmul.mubr.bf16.gmra.mrb[0].mxu0 %v4251
        %v4449 = vpop.f32.mrb[0].mxu0
        %v4450 = vadd.f32 0.0, %v4449
        %v4451 = vpop.f32.mrb[0].mxu0
        %v4452 = vpop.f32.mrb[0].mxu0
        %v4453 = vadd.f32 0.0, %v4452
        %v4454 = vpop.f32.mrb[0].mxu0
        %4455 = vmatprep.mubr.bf16.mxu0 0
        %4456 = vmatmul.mubr.bf16.gmra.mrb[0].mxu0 %v4252
        %v4457 = vpop.f32.mrb[0].mxu0
        %v4458 = vadd.f32 0.0, %v4457
        %v4459 = vpop.f32.mrb[0].mxu0
        %v4460 = vpop.f32.mrb[0].mxu0
        %v4461 = vadd.f32 0.0, %v4460
        %v4462 = vpop.f32.mrb[0].mxu0
        %4463 = vmatprep.mubr.bf16.mxu0 0
        %4464 = vmatmul.mubr.bf16.gmra.mrb[0].mxu0 %v4253
        %v4465 = vpop.f32.mrb[0].mxu0
        %v4466 = vadd.f32 0.0, %v4465
        %v4467 = vpop.f32.mrb[0].mxu0
        %v4468 = vpop.f32.mrb[0].mxu0
        %v4469 = vadd.f32 0.0, %v4468
        %v4470 = vpop.f32.mrb[0].mxu0
        %4471 = vmatprep.mubr.bf16.mxu0 0
        %4472 = vmatmul.mubr.bf16.gmra.mrb[0].mxu0 %v4254
        %v4473 = vpop.f32.mrb[0].mxu0
        %v4474 = vadd.f32 0.0, %v4473
        %v4475 = vpop.f32.mrb[0].mxu0
        %v4476 = vpop.f32.mrb[0].mxu0
        %v4477 = vadd.f32 0.0, %v4476
        %v4478 = vpop.f32.mrb[0].mxu0
        %4479 = vdwg.mxu0
        %v4480 = vadd.f32 %v3982, %v4354
        %v4481 = vadd.f32 %v3983, %v4357
        %v4482 = vadd.f32 %v3984, %v4362
        %v4483 = vadd.f32 %v3985, %v4365
        %v4484 = vadd.f32 %v3986, %v4370
        %v4485 = vadd.f32 %v3987, %v4373
        %v4486 = vadd.f32 %v3988, %v4378
        %v4487 = vadd.f32 %v3989, %v4381
        %v4488 = vadd.f32 %v3990, %v4386
        %v4489 = vadd.f32 %v3991, %v4389
        %v4490 = vadd.f32 %v3992, %v4394
        %v4491 = vadd.f32 %v3993, %v4397
        %v4492 = vadd.f32 %v3994, %v4402
        %v4493 = vadd.f32 %v3995, %v4405
        %v4494 = vadd.f32 %v3996, %v4410
        %v4495 = vadd.f32 %v3997, %v4413
        %v4496 = vadd.f32 %v3998, %v4418
        %v4497 = vadd.f32 %v3999, %v4421
        %v4498 = vadd.f32 %v4000, %v4426
        %v4499 = vadd.f32 %v4001, %v4429
        %v4500 = vadd.f32 %v4002, %v4434
        %v4501 = vadd.f32 %v4003, %v4437
        %v4502 = vadd.f32 %v4004, %v4442
        %v4503 = vadd.f32 %v4005, %v4445
        %v4504 = vadd.f32 %v4006, %v4450
        %v4505 = vadd.f32 %v4007, %v4453
        %v4506 = vadd.f32 %v4008, %v4458
        %v4507 = vadd.f32 %v4009, %v4461
        %v4508 = vadd.f32 %v4010, %v4466
        %v4509 = vadd.f32 %v4011, %v4469
        %v4510 = vadd.f32 %v4012, %v4474
        %v4511 = vadd.f32 %v4013, %v4477
        %s4512 = scalar_lea.vmem [#allocation2], 24
        %v4513 = vld [vmem:[%s4512] sm:$0xf]
        %v4514 = vld [vmem:[%s4512 + $0x4] sm:$0xf]
        %v4515 = vld [vmem:[%s4512 + $0xc] sm:$0xf]
        %v4516 = vld [vmem:[%s4512 + $0x10] sm:$0xf]
        %v4517 = vld [vmem:[%s4512 + $0x18] sm:$0xf]
        %v4518 = vld [vmem:[%s4512 + $0x1c] sm:$0xf]
        %v4519 = vld [vmem:[%s4512 + $0x24] sm:$0xf]
        %v4520 = vld [vmem:[%s4512 + $0x28] sm:$0xf]
        %v4521 = vld [vmem:[%s4512 + $0x30] sm:$0xf]
        %v4522 = vld [vmem:[%s4512 + $0x34] sm:$0xf]
        %v4523 = vld [vmem:[%s4512 + $0x3c] sm:$0xf]
        %v4524 = vld [vmem:[%s4512 + $0x40] sm:$0xf]
        %v4525 = vld [vmem:[%s4512 + $0x48] sm:$0xf]
        %v4526 = vld [vmem:[%s4512 + $0x4c] sm:$0xf]
        %v4527 = vld [vmem:[%s4512 + $0x54] sm:$0xf]
        %v4528 = vld [vmem:[%s4512 + $0x58] sm:$0xf]
        %v4529 = vld [vmem:[%s4512 + $0x60] sm:$0xf]
        %v4530 = vld [vmem:[%s4512 + $0x64] sm:$0xf]
        %v4531 = vld [vmem:[%s4512 + $0x6c] sm:$0xf]
        %v4532 = vld [vmem:[%s4512 + $0x70] sm:$0xf]
        %v4533 = vld [vmem:[%s4512 + $0x78] sm:$0xf]
        %v4534 = vld [vmem:[%s4512 + $0x7c] sm:$0xf]
        %v4535 = vld [vmem:[%s4512 + $0x84] sm:$0xf]
        %v4536 = vld [vmem:[%s4512 + $0x88] sm:$0xf]
        %v4537 = vld [vmem:[%s4512 + $0x90] sm:$0xf]
        %v4538 = vld [vmem:[%s4512 + $0x94] sm:$0xf]
        %v4539 = vld [vmem:[%s4512 + $0x9c] sm:$0xf]
        %v4540 = vld [vmem:[%s4512 + $0xa0] sm:$0xf]
        %v4541 = vld [vmem:[%s4512 + $0xa8] sm:$0xf]
        %v4542 = vld [vmem:[%s4512 + $0xac] sm:$0xf]
        %v4543 = vld [vmem:[%s4512 + $0xb4] sm:$0xf]
        %v4544 = vld [vmem:[%s4512 + $0xb8] sm:$0xf]
        %s4545 = scalar_lea.vmem [#allocation8], 384
        %v4546 = vld [vmem:[%s4545] sm:$0xf]
        %v4547 = vld [vmem:[%s4545 + $0x4] sm:$0xf]
        %v4548 = vld [vmem:[%s4545 + $0x8] sm:$0xf]
        %v4549 = vld [vmem:[%s4545 + $0xc] sm:$0xf]
        %v4550 = vld [vmem:[%s4545 + $0x10] sm:$0xf]
        %v4551 = vld [vmem:[%s4545 + $0x14] sm:$0xf]
        %v4552 = vld [vmem:[%s4545 + $0x18] sm:$0xf]
        %v4553 = vld [vmem:[%s4545 + $0x1c] sm:$0xf]
        %v4554 = vld [vmem:[%s4545 + $0x20] sm:$0xf]
        %v4555 = vld [vmem:[%s4545 + $0x24] sm:$0xf]
        %v4556 = vld [vmem:[%s4545 + $0x28] sm:$0xf]
        %v4557 = vld [vmem:[%s4545 + $0x2c] sm:$0xf]
        %v4558 = vld [vmem:[%s4545 + $0x30] sm:$0xf]
        %v4559 = vld [vmem:[%s4545 + $0x34] sm:$0xf]
        %v4560 = vld [vmem:[%s4545 + $0x38] sm:$0xf]
        %v4561 = vld [vmem:[%s4545 + $0x3c] sm:$0xf]
        %v4594 = vunpack.c.l.b16 %v4513
        %v4595 = vunpack.c.l.b16 %v4514
        %v4596 = vunpack.c.l.b16 %v4515
        %v4597 = vunpack.c.l.b16 %v4516
        %v4598 = vunpack.c.l.b16 %v4517
        %v4599 = vunpack.c.l.b16 %v4518
        %v4600 = vunpack.c.l.b16 %v4519
        %v4601 = vunpack.c.l.b16 %v4520
        %v4602 = vunpack.c.l.b16 %v4521
        %v4603 = vunpack.c.l.b16 %v4522
        %v4604 = vunpack.c.l.b16 %v4523
        %v4605 = vunpack.c.l.b16 %v4524
        %v4606 = vunpack.c.l.b16 %v4525
        %v4607 = vunpack.c.l.b16 %v4526
        %v4608 = vunpack.c.l.b16 %v4527
        %v4609 = vunpack.c.l.b16 %v4528
        %v4610 = vunpack.c.l.b16 %v4529
        %v4611 = vunpack.c.l.b16 %v4530
        %v4612 = vunpack.c.l.b16 %v4531
        %v4613 = vunpack.c.l.b16 %v4532
        %v4614 = vunpack.c.l.b16 %v4533
        %v4615 = vunpack.c.l.b16 %v4534
        %v4616 = vunpack.c.l.b16 %v4535
        %v4617 = vunpack.c.l.b16 %v4536
        %v4618 = vunpack.c.l.b16 %v4537
        %v4619 = vunpack.c.l.b16 %v4538
        %v4620 = vunpack.c.l.b16 %v4539
        %v4621 = vunpack.c.l.b16 %v4540
        %v4622 = vunpack.c.l.b16 %v4541
        %v4623 = vunpack.c.l.b16 %v4542
        %v4624 = vunpack.c.l.b16 %v4543
        %v4625 = vunpack.c.l.b16 %v4544
        %v4626 = vpack.c.b16 %v4595, %v4594
        %v4627 = vpack.c.b16 %v4597, %v4596
        %v4628 = vpack.c.b16 %v4599, %v4598
        %v4629 = vpack.c.b16 %v4601, %v4600
        %v4630 = vpack.c.b16 %v4603, %v4602
        %v4631 = vpack.c.b16 %v4605, %v4604
        %v4632 = vpack.c.b16 %v4607, %v4606
        %v4633 = vpack.c.b16 %v4609, %v4608
        %v4634 = vpack.c.b16 %v4611, %v4610
        %v4635 = vpack.c.b16 %v4613, %v4612
        %v4636 = vpack.c.b16 %v4615, %v4614
        %v4637 = vpack.c.b16 %v4617, %v4616
        %v4638 = vpack.c.b16 %v4619, %v4618
        %v4639 = vpack.c.b16 %v4621, %v4620
        %v4640 = vpack.c.b16 %v4623, %v4622
        %v4641 = vpack.c.b16 %v4625, %v4624
        %v4674 = vunpack.c.l.b16 %v4546
        %v4675 = vunpack.c.l.b16 %v4547
        %v4676 = vunpack.c.l.b16 %v4548
        %v4677 = vunpack.c.l.b16 %v4549
        %v4678 = vunpack.c.l.b16 %v4550
        %v4679 = vunpack.c.l.b16 %v4551
        %v4680 = vunpack.c.l.b16 %v4552
        %v4681 = vunpack.c.l.b16 %v4553
        %v4682 = vunpack.c.l.b16 %v4554
        %v4683 = vunpack.c.l.b16 %v4555
        %v4684 = vunpack.c.l.b16 %v4556
        %v4685 = vunpack.c.l.b16 %v4557
        %v4686 = vunpack.c.l.b16 %v4558
        %v4687 = vunpack.c.l.b16 %v4559
        %v4688 = vunpack.c.l.b16 %v4560
        %v4689 = vunpack.c.l.b16 %v4561
        %v4690 = vpack.c.b16 %v4675, %v4674
        %v4691 = vpack.c.b16 %v4677, %v4676
        %v4692 = vpack.c.b16 %v4679, %v4678
        %v4693 = vpack.c.b16 %v4681, %v4680
        %v4694 = vpack.c.b16 %v4683, %v4682
        %v4695 = vpack.c.b16 %v4685, %v4684
        %v4696 = vpack.c.b16 %v4687, %v4686
        %v4697 = vpack.c.b16 %v4689, %v4688
        %4706 = vmatprep.subr.bf16.mxu0 0
        %4707 = vmatpush1.bf16.msra.mxu0 %v4690
        %4708 = vmatprep.subr.bf16.mxu0 0
        %4709 = vmatpush1.bf16.msra.mxu0 %v4691
        %4710 = vmatprep.subr.bf16.mxu0 0
        %4711 = vmatpush1.bf16.msra.mxu0 %v4692
        %4712 = vmatprep.subr.bf16.mxu0 0
        %4713 = vmatpush1.bf16.msra.mxu0 %v4693
        %4714 = vmatprep.subr.bf16.mxu0 0
        %4715 = vmatpush1.bf16.msra.mxu0 %v4694
        %4716 = vmatprep.subr.bf16.mxu0 0
        %4717 = vmatpush1.bf16.msra.mxu0 %v4695
        %4718 = vmatprep.subr.bf16.mxu0 0
        %4719 = vmatpush1.bf16.msra.mxu0 %v4696
        %4720 = vmatprep.subr.bf16.mxu0 0
        %4721 = vmatpush1.bf16.msra.mxu0 %v4697
        %4722 = vmatprep.subr.bf16.mxu0 0
        %4723 = vmatpush1.bf16.msra.mxu0 0
        %4724 = vmatprep.subr.bf16.mxu0 0
        %4725 = vmatpush1.bf16.msra.mxu0 0
        %4726 = vmatprep.subr.bf16.mxu0 0
        %4727 = vmatpush1.bf16.msra.mxu0 0
        %4728 = vmatprep.subr.bf16.mxu0 0
        %4729 = vmatpush1.bf16.msra.mxu0 0
        %4730 = vmatprep.subr.bf16.mxu0 0
        %4731 = vmatpush1.bf16.msra.mxu0 0
        %4732 = vmatprep.subr.bf16.mxu0 0
        %4733 = vmatpush1.bf16.msra.mxu0 0
        %4734 = vmatprep.subr.bf16.mxu0 0
        %4735 = vmatpush1.bf16.msra.mxu0 0
        %4736 = vmatprep.subr.bf16.mxu0 0
        %4737 = vmatpush1.bf16.msra.mxu0 0
        %4738 = vmatprep.mubr.bf16.mxu0 0
        %4739 = vmatmul.mubr.bf16.gmra.mrb[0].mxu0 %v4626
        %v4740 = vpop.f32.mrb[0].mxu0
        %v4741 = vadd.f32 0.0, %v4740
        %v4742 = vpop.f32.mrb[0].mxu0
        %v4743 = vpop.f32.mrb[0].mxu0
        %v4744 = vadd.f32 0.0, %v4743
        %v4745 = vpop.f32.mrb[0].mxu0
        %4746 = vmatprep.mubr.bf16.mxu0 0
        %4747 = vmatmul.mubr.bf16.gmra.mrb[0].mxu0 %v4627
        %v4748 = vpop.f32.mrb[0].mxu0
        %v4749 = vadd.f32 0.0, %v4748
        %v4750 = vpop.f32.mrb[0].mxu0
        %v4751 = vpop.f32.mrb[0].mxu0
        %v4752 = vadd.f32 0.0, %v4751
        %v4753 = vpop.f32.mrb[0].mxu0
        %4754 = vmatprep.mubr.bf16.mxu0 0
        %4755 = vmatmul.mubr.bf16.gmra.mrb[0].mxu0 %v4628
        %v4756 = vpop.f32.mrb[0].mxu0
        %v4757 = vadd.f32 0.0, %v4756
        %v4758 = vpop.f32.mrb[0].mxu0
        %v4759 = vpop.f32.mrb[0].mxu0
        %v4760 = vadd.f32 0.0, %v4759
        %v4761 = vpop.f32.mrb[0].mxu0
        %4762 = vmatprep.mubr.bf16.mxu0 0
        %4763 = vmatmul.mubr.bf16.gmra.mrb[0].mxu0 %v4629
        %v4764 = vpop.f32.mrb[0].mxu0
        %v4765 = vadd.f32 0.0, %v4764
        %v4766 = vpop.f32.mrb[0].mxu0
        %v4767 = vpop.f32.mrb[0].mxu0
        %v4768 = vadd.f32 0.0, %v4767
        %v4769 = vpop.f32.mrb[0].mxu0
        %4770 = vmatprep.mubr.bf16.mxu0 0
        %4771 = vmatmul.mubr.bf16.gmra.mrb[0].mxu0 %v4630
        %v4772 = vpop.f32.mrb[0].mxu0
        %v4773 = vadd.f32 0.0, %v4772
        %v4774 = vpop.f32.mrb[0].mxu0
        %v4775 = vpop.f32.mrb[0].mxu0
        %v4776 = vadd.f32 0.0, %v4775
        %v4777 = vpop.f32.mrb[0].mxu0
        %4778 = vmatprep.mubr.bf16.mxu0 0
        %4779 = vmatmul.mubr.bf16.gmra.mrb[0].mxu0 %v4631
        %v4780 = vpop.f32.mrb[0].mxu0
        %v4781 = vadd.f32 0.0, %v4780
        %v4782 = vpop.f32.mrb[0].mxu0
        %v4783 = vpop.f32.mrb[0].mxu0
        %v4784 = vadd.f32 0.0, %v4783
        %v4785 = vpop.f32.mrb[0].mxu0
        %4786 = vmatprep.mubr.bf16.mxu0 0
        %4787 = vmatmul.mubr.bf16.gmra.mrb[0].mxu0 %v4632
        %v4788 = vpop.f32.mrb[0].mxu0
        %v4789 = vadd.f32 0.0, %v4788
        %v4790 = vpop.f32.mrb[0].mxu0
        %v4791 = vpop.f32.mrb[0].mxu0
        %v4792 = vadd.f32 0.0, %v4791
        %v4793 = vpop.f32.mrb[0].mxu0
        %4794 = vmatprep.mubr.bf16.mxu0 0
        %4795 = vmatmul.mubr.bf16.gmra.mrb[0].mxu0 %v4633
        %v4796 = vpop.f32.mrb[0].mxu0
        %v4797 = vadd.f32 0.0, %v4796
        %v4798 = vpop.f32.mrb[0].mxu0
        %v4799 = vpop.f32.mrb[0].mxu0
        %v4800 = vadd.f32 0.0, %v4799
        %v4801 = vpop.f32.mrb[0].mxu0
        %4802 = vmatprep.mubr.bf16.mxu0 0
        %4803 = vmatmul.mubr.bf16.gmra.mrb[0].mxu0 %v4634
        %v4804 = vpop.f32.mrb[0].mxu0
        %v4805 = vadd.f32 0.0, %v4804
        %v4806 = vpop.f32.mrb[0].mxu0
        %v4807 = vpop.f32.mrb[0].mxu0
        %v4808 = vadd.f32 0.0, %v4807
        %v4809 = vpop.f32.mrb[0].mxu0
        %4810 = vmatprep.mubr.bf16.mxu0 0
        %4811 = vmatmul.mubr.bf16.gmra.mrb[0].mxu0 %v4635
        %v4812 = vpop.f32.mrb[0].mxu0
        %v4813 = vadd.f32 0.0, %v4812
        %v4814 = vpop.f32.mrb[0].mxu0
        %v4815 = vpop.f32.mrb[0].mxu0
        %v4816 = vadd.f32 0.0, %v4815
        %v4817 = vpop.f32.mrb[0].mxu0
        %4818 = vmatprep.mubr.bf16.mxu0 0
        %4819 = vmatmul.mubr.bf16.gmra.mrb[0].mxu0 %v4636
        %v4820 = vpop.f32.mrb[0].mxu0
        %v4821 = vadd.f32 0.0, %v4820
        %v4822 = vpop.f32.mrb[0].mxu0
        %v4823 = vpop.f32.mrb[0].mxu0
        %v4824 = vadd.f32 0.0, %v4823
        %v4825 = vpop.f32.mrb[0].mxu0
        %4826 = vmatprep.mubr.bf16.mxu0 0
        %4827 = vmatmul.mubr.bf16.gmra.mrb[0].mxu0 %v4637
        %v4828 = vpop.f32.mrb[0].mxu0
        %v4829 = vadd.f32 0.0, %v4828
        %v4830 = vpop.f32.mrb[0].mxu0
        %v4831 = vpop.f32.mrb[0].mxu0
        %v4832 = vadd.f32 0.0, %v4831
        %v4833 = vpop.f32.mrb[0].mxu0
        %4834 = vmatprep.mubr.bf16.mxu0 0
        %4835 = vmatmul.mubr.bf16.gmra.mrb[0].mxu0 %v4638
        %v4836 = vpop.f32.mrb[0].mxu0
        %v4837 = vadd.f32 0.0, %v4836
        %v4838 = vpop.f32.mrb[0].mxu0
        %v4839 = vpop.f32.mrb[0].mxu0
        %v4840 = vadd.f32 0.0, %v4839
        %v4841 = vpop.f32.mrb[0].mxu0
        %4842 = vmatprep.mubr.bf16.mxu0 0
        %4843 = vmatmul.mubr.bf16.gmra.mrb[0].mxu0 %v4639
        %v4844 = vpop.f32.mrb[0].mxu0
        %v4845 = vadd.f32 0.0, %v4844
        %v4846 = vpop.f32.mrb[0].mxu0
        %v4847 = vpop.f32.mrb[0].mxu0
        %v4848 = vadd.f32 0.0, %v4847
        %v4849 = vpop.f32.mrb[0].mxu0
        %4850 = vmatprep.mubr.bf16.mxu0 0
        %4851 = vmatmul.mubr.bf16.gmra.mrb[0].mxu0 %v4640
        %v4852 = vpop.f32.mrb[0].mxu0
        %v4853 = vadd.f32 0.0, %v4852
        %v4854 = vpop.f32.mrb[0].mxu0
        %v4855 = vpop.f32.mrb[0].mxu0
        %v4856 = vadd.f32 0.0, %v4855
        %v4857 = vpop.f32.mrb[0].mxu0
        %4858 = vmatprep.mubr.bf16.mxu0 0
        %4859 = vmatmul.mubr.bf16.gmra.mrb[0].mxu0 %v4641
        %v4860 = vpop.f32.mrb[0].mxu0
        %v4861 = vadd.f32 0.0, %v4860
        %v4862 = vpop.f32.mrb[0].mxu0
        %v4863 = vpop.f32.mrb[0].mxu0
        %v4864 = vadd.f32 0.0, %v4863
        %v4865 = vpop.f32.mrb[0].mxu0
        %4866 = vdwg.mxu0
        %v4867 = vadd.f32 %v4480, %v4741
        %v4868 = vadd.f32 %v4481, %v4744
        %v4869 = vadd.f32 %v4482, %v4749
        %v4870 = vadd.f32 %v4483, %v4752
        %v4871 = vadd.f32 %v4484, %v4757
        %v4872 = vadd.f32 %v4485, %v4760
        %v4873 = vadd.f32 %v4486, %v4765
        %v4874 = vadd.f32 %v4487, %v4768
        %v4875 = vadd.f32 %v4488, %v4773
        %v4876 = vadd.f32 %v4489, %v4776
        %v4877 = vadd.f32 %v4490, %v4781
        %v4878 = vadd.f32 %v4491, %v4784
        %v4879 = vadd.f32 %v4492, %v4789
        %v4880 = vadd.f32 %v4493, %v4792
        %v4881 = vadd.f32 %v4494, %v4797
        %v4882 = vadd.f32 %v4495, %v4800
        %v4883 = vadd.f32 %v4496, %v4805
        %v4884 = vadd.f32 %v4497, %v4808
        %v4885 = vadd.f32 %v4498, %v4813
        %v4886 = vadd.f32 %v4499, %v4816
        %v4887 = vadd.f32 %v4500, %v4821
        %v4888 = vadd.f32 %v4501, %v4824
        %v4889 = vadd.f32 %v4502, %v4829
        %v4890 = vadd.f32 %v4503, %v4832
        %v4891 = vadd.f32 %v4504, %v4837
        %v4892 = vadd.f32 %v4505, %v4840
        %v4893 = vadd.f32 %v4506, %v4845
        %v4894 = vadd.f32 %v4507, %v4848
        %v4895 = vadd.f32 %v4508, %v4853
        %v4896 = vadd.f32 %v4509, %v4856
        %v4897 = vadd.f32 %v4510, %v4861
        %v4898 = vadd.f32 %v4511, %v4864
        %v4899 = vld [vmem:[%s4512] sm:$0xf]
        %v4900 = vld [vmem:[%s4512 + $0x4] sm:$0xf]
        %v4901 = vld [vmem:[%s4512 + $0x8] sm:$0x1]
        %v4902 = vld [vmem:[%s4512 + $0xc] sm:$0xf]
        %v4903 = vld [vmem:[%s4512 + $0x10] sm:$0xf]
        %v4904 = vld [vmem:[%s4512 + $0x14] sm:$0x1]
        %v4905 = vld [vmem:[%s4512 + $0x18] sm:$0xf]
        %v4906 = vld [vmem:[%s4512 + $0x1c] sm:$0xf]
        %v4907 = vld [vmem:[%s4512 + $0x20] sm:$0x1]
        %v4908 = vld [vmem:[%s4512 + $0x24] sm:$0xf]
        %v4909 = vld [vmem:[%s4512 + $0x28] sm:$0xf]
        %v4910 = vld [vmem:[%s4512 + $0x2c] sm:$0x1]
        %v4911 = vld [vmem:[%s4512 + $0x30] sm:$0xf]
        %v4912 = vld [vmem:[%s4512 + $0x34] sm:$0xf]
        %v4913 = vld [vmem:[%s4512 + $0x38] sm:$0x1]
        %v4914 = vld [vmem:[%s4512 + $0x3c] sm:$0xf]
        %v4915 = vld [vmem:[%s4512 + $0x40] sm:$0xf]
        %v4916 = vld [vmem:[%s4512 + $0x44] sm:$0x1]
        %v4917 = vld [vmem:[%s4512 + $0x48] sm:$0xf]
        %v4918 = vld [vmem:[%s4512 + $0x4c] sm:$0xf]
        %v4919 = vld [vmem:[%s4512 + $0x50] sm:$0x1]
        %v4920 = vld [vmem:[%s4512 + $0x54] sm:$0xf]
        %v4921 = vld [vmem:[%s4512 + $0x58] sm:$0xf]
        %v4922 = vld [vmem:[%s4512 + $0x5c] sm:$0x1]
        %v4923 = vld [vmem:[%s4512 + $0x60] sm:$0xf]
        %v4924 = vld [vmem:[%s4512 + $0x64] sm:$0xf]
        %v4925 = vld [vmem:[%s4512 + $0x68] sm:$0x1]
        %v4926 = vld [vmem:[%s4512 + $0x6c] sm:$0xf]
        %v4927 = vld [vmem:[%s4512 + $0x70] sm:$0xf]
        %v4928 = vld [vmem:[%s4512 + $0x74] sm:$0x1]
        %v4929 = vld [vmem:[%s4512 + $0x78] sm:$0xf]
        %v4930 = vld [vmem:[%s4512 + $0x7c] sm:$0xf]
        %v4931 = vld [vmem:[%s4512 + $0x80] sm:$0x1]
        %v4932 = vld [vmem:[%s4512 + $0x84] sm:$0xf]
        %v4933 = vld [vmem:[%s4512 + $0x88] sm:$0xf]
        %v4934 = vld [vmem:[%s4512 + $0x8c] sm:$0x1]
        %v4935 = vld [vmem:[%s4512 + $0x90] sm:$0xf]
        %v4936 = vld [vmem:[%s4512 + $0x94] sm:$0xf]
        %v4937 = vld [vmem:[%s4512 + $0x98] sm:$0x1]
        %v4938 = vld [vmem:[%s4512 + $0x9c] sm:$0xf]
        %v4939 = vld [vmem:[%s4512 + $0xa0] sm:$0xf]
        %v4940 = vld [vmem:[%s4512 + $0xa4] sm:$0x1]
        %v4941 = vld [vmem:[%s4512 + $0xa8] sm:$0xf]
        %v4942 = vld [vmem:[%s4512 + $0xac] sm:$0xf]
        %v4943 = vld [vmem:[%s4512 + $0xb0] sm:$0x1]
        %v4944 = vld [vmem:[%s4512 + $0xb4] sm:$0xf]
        %v4945 = vld [vmem:[%s4512 + $0xb8] sm:$0xf]
        %v4946 = vld [vmem:[%s4512 + $0xbc] sm:$0x1]
        %v4948 = vshrl.u32 %v4899, 16
        %v4950 = vrot.slane %v4948, 4
        %v4951 = vshll.u32 %v4899, 16
        %v4953 = vrot.slane %v4951, 5
        %v4954 = vor.u32 %v4950, %v4953
        %v4955 = vrot.slane %v4954, 4
        %v4957 = vshll.u32 %v4900, 16
        %v4959 = vrot.slane %v4957, 5
        %v4960 = vsel %vm1409, %v4955, %v4959
        %v4961 = vshrl.u32 %v4900, 16
        %v4963 = vrot.slane %v4961, 4
        %v4964 = vor.u32 %v4963, %v4959
        %v4965 = vrot.slane %v4964, 4
        %v4967 = vshll.u32 %v4901, 16
        %v4969 = vrot.slane %v4967, 5
        %v4970 = vsel %vm1409, %v4965, %v4969
        %v4972 = vshrl.u32 %v4902, 16
        %v4974 = vrot.slane %v4972, 4
        %v4975 = vshll.u32 %v4902, 16
        %v4977 = vrot.slane %v4975, 5
        %v4978 = vor.u32 %v4974, %v4977
        %v4979 = vrot.slane %v4978, 4
        %v4981 = vshll.u32 %v4903, 16
        %v4983 = vrot.slane %v4981, 5
        %v4984 = vsel %vm1409, %v4979, %v4983
        %v4985 = vshrl.u32 %v4903, 16
        %v4987 = vrot.slane %v4985, 4
        %v4988 = vor.u32 %v4987, %v4983
        %v4989 = vrot.slane %v4988, 4
        %v4991 = vshll.u32 %v4904, 16
        %v4993 = vrot.slane %v4991, 5
        %v4994 = vsel %vm1409, %v4989, %v4993
        %v4996 = vshrl.u32 %v4905, 16
        %v4998 = vrot.slane %v4996, 4
        %v4999 = vshll.u32 %v4905, 16
        %v5001 = vrot.slane %v4999, 5
        %v5002 = vor.u32 %v4998, %v5001
        %v5003 = vrot.slane %v5002, 4
        %v5005 = vshll.u32 %v4906, 16
        %v5007 = vrot.slane %v5005, 5
        %v5008 = vsel %vm1409, %v5003, %v5007
        %v5009 = vshrl.u32 %v4906, 16
        %v5011 = vrot.slane %v5009, 4
        %v5012 = vor.u32 %v5011, %v5007
        %v5013 = vrot.slane %v5012, 4
        %v5015 = vshll.u32 %v4907, 16
        %v5017 = vrot.slane %v5015, 5
        %v5018 = vsel %vm1409, %v5013, %v5017
        %v5020 = vshrl.u32 %v4908, 16
        %v5022 = vrot.slane %v5020, 4
        %v5023 = vshll.u32 %v4908, 16
        %v5025 = vrot.slane %v5023, 5
        %v5026 = vor.u32 %v5022, %v5025
        %v5027 = vrot.slane %v5026, 4
        %v5029 = vshll.u32 %v4909, 16
        %v5031 = vrot.slane %v5029, 5
        %v5032 = vsel %vm1409, %v5027, %v5031
        %v5033 = vshrl.u32 %v4909, 16
        %v5035 = vrot.slane %v5033, 4
        %v5036 = vor.u32 %v5035, %v5031
        %v5037 = vrot.slane %v5036, 4
        %v5039 = vshll.u32 %v4910, 16
        %v5041 = vrot.slane %v5039, 5
        %v5042 = vsel %vm1409, %v5037, %v5041
        %v5044 = vshrl.u32 %v4911, 16
        %v5046 = vrot.slane %v5044, 4
        %v5047 = vshll.u32 %v4911, 16
        %v5049 = vrot.slane %v5047, 5
        %v5050 = vor.u32 %v5046, %v5049
        %v5051 = vrot.slane %v5050, 4
        %v5053 = vshll.u32 %v4912, 16
        %v5055 = vrot.slane %v5053, 5
        %v5056 = vsel %vm1409, %v5051, %v5055
        %v5057 = vshrl.u32 %v4912, 16
        %v5059 = vrot.slane %v5057, 4
        %v5060 = vor.u32 %v5059, %v5055
        %v5061 = vrot.slane %v5060, 4
        %v5063 = vshll.u32 %v4913, 16
        %v5065 = vrot.slane %v5063, 5
        %v5066 = vsel %vm1409, %v5061, %v5065
        %v5068 = vshrl.u32 %v4914, 16
        %v5070 = vrot.slane %v5068, 4
        %v5071 = vshll.u32 %v4914, 16
        %v5073 = vrot.slane %v5071, 5
        %v5074 = vor.u32 %v5070, %v5073
        %v5075 = vrot.slane %v5074, 4
        %v5077 = vshll.u32 %v4915, 16
        %v5079 = vrot.slane %v5077, 5
        %v5080 = vsel %vm1409, %v5075, %v5079
        %v5081 = vshrl.u32 %v4915, 16
        %v5083 = vrot.slane %v5081, 4
        %v5084 = vor.u32 %v5083, %v5079
        %v5085 = vrot.slane %v5084, 4
        %v5087 = vshll.u32 %v4916, 16
        %v5089 = vrot.slane %v5087, 5
        %v5090 = vsel %vm1409, %v5085, %v5089
        %v5092 = vshrl.u32 %v4917, 16
        %v5094 = vrot.slane %v5092, 4
        %v5095 = vshll.u32 %v4917, 16
        %v5097 = vrot.slane %v5095, 5
        %v5098 = vor.u32 %v5094, %v5097
        %v5099 = vrot.slane %v5098, 4
        %v5101 = vshll.u32 %v4918, 16
        %v5103 = vrot.slane %v5101, 5
        %v5104 = vsel %vm1409, %v5099, %v5103
        %v5105 = vshrl.u32 %v4918, 16
        %v5107 = vrot.slane %v5105, 4
        %v5108 = vor.u32 %v5107, %v5103
        %v5109 = vrot.slane %v5108, 4
        %v5111 = vshll.u32 %v4919, 16
        %v5113 = vrot.slane %v5111, 5
        %v5114 = vsel %vm1409, %v5109, %v5113
        %v5116 = vshrl.u32 %v4920, 16
        %v5118 = vrot.slane %v5116, 4
        %v5119 = vshll.u32 %v4920, 16
        %v5121 = vrot.slane %v5119, 5
        %v5122 = vor.u32 %v5118, %v5121
        %v5123 = vrot.slane %v5122, 4
        %v5125 = vshll.u32 %v4921, 16
        %v5127 = vrot.slane %v5125, 5
        %v5128 = vsel %vm1409, %v5123, %v5127
        %v5129 = vshrl.u32 %v4921, 16
        %v5131 = vrot.slane %v5129, 4
        %v5132 = vor.u32 %v5131, %v5127
        %v5133 = vrot.slane %v5132, 4
        %v5135 = vshll.u32 %v4922, 16
        %v5137 = vrot.slane %v5135, 5
        %v5138 = vsel %vm1409, %v5133, %v5137
        %v5140 = vshrl.u32 %v4923, 16
        %v5142 = vrot.slane %v5140, 4
        %v5143 = vshll.u32 %v4923, 16
        %v5145 = vrot.slane %v5143, 5
        %v5146 = vor.u32 %v5142, %v5145
        %v5147 = vrot.slane %v5146, 4
        %v5149 = vshll.u32 %v4924, 16
        %v5151 = vrot.slane %v5149, 5
        %v5152 = vsel %vm1409, %v5147, %v5151
        %v5153 = vshrl.u32 %v4924, 16
        %v5155 = vrot.slane %v5153, 4
        %v5156 = vor.u32 %v5155, %v5151
        %v5157 = vrot.slane %v5156, 4
        %v5159 = vshll.u32 %v4925, 16
        %v5161 = vrot.slane %v5159, 5
        %v5162 = vsel %vm1409, %v5157, %v5161
        %v5164 = vshrl.u32 %v4926, 16
        %v5166 = vrot.slane %v5164, 4
        %v5167 = vshll.u32 %v4926, 16
        %v5169 = vrot.slane %v5167, 5
        %v5170 = vor.u32 %v5166, %v5169
        %v5171 = vrot.slane %v5170, 4
        %v5173 = vshll.u32 %v4927, 16
        %v5175 = vrot.slane %v5173, 5
        %v5176 = vsel %vm1409, %v5171, %v5175
        %v5177 = vshrl.u32 %v4927, 16
        %v5179 = vrot.slane %v5177, 4
        %v5180 = vor.u32 %v5179, %v5175
        %v5181 = vrot.slane %v5180, 4
        %v5183 = vshll.u32 %v4928, 16
        %v5185 = vrot.slane %v5183, 5
        %v5186 = vsel %vm1409, %v5181, %v5185
        %v5188 = vshrl.u32 %v4929, 16
        %v5190 = vrot.slane %v5188, 4
        %v5191 = vshll.u32 %v4929, 16
        %v5193 = vrot.slane %v5191, 5
        %v5194 = vor.u32 %v5190, %v5193
        %v5195 = vrot.slane %v5194, 4
        %v5197 = vshll.u32 %v4930, 16
        %v5199 = vrot.slane %v5197, 5
        %v5200 = vsel %vm1409, %v5195, %v5199
        %v5201 = vshrl.u32 %v4930, 16
        %v5203 = vrot.slane %v5201, 4
        %v5204 = vor.u32 %v5203, %v5199
        %v5205 = vrot.slane %v5204, 4
        %v5207 = vshll.u32 %v4931, 16
        %v5209 = vrot.slane %v5207, 5
        %v5210 = vsel %vm1409, %v5205, %v5209
        %v5212 = vshrl.u32 %v4932, 16
        %v5214 = vrot.slane %v5212, 4
        %v5215 = vshll.u32 %v4932, 16
        %v5217 = vrot.slane %v5215, 5
        %v5218 = vor.u32 %v5214, %v5217
        %v5219 = vrot.slane %v5218, 4
        %v5221 = vshll.u32 %v4933, 16
        %v5223 = vrot.slane %v5221, 5
        %v5224 = vsel %vm1409, %v5219, %v5223
        %v5225 = vshrl.u32 %v4933, 16
        %v5227 = vrot.slane %v5225, 4
        %v5228 = vor.u32 %v5227, %v5223
        %v5229 = vrot.slane %v5228, 4
        %v5231 = vshll.u32 %v4934, 16
        %v5233 = vrot.slane %v5231, 5
        %v5234 = vsel %vm1409, %v5229, %v5233
        %v5236 = vshrl.u32 %v4935, 16
        %v5238 = vrot.slane %v5236, 4
        %v5239 = vshll.u32 %v4935, 16
        %v5241 = vrot.slane %v5239, 5
        %v5242 = vor.u32 %v5238, %v5241
        %v5243 = vrot.slane %v5242, 4
        %v5245 = vshll.u32 %v4936, 16
        %v5247 = vrot.slane %v5245, 5
        %v5248 = vsel %vm1409, %v5243, %v5247
        %v5249 = vshrl.u32 %v4936, 16
        %v5251 = vrot.slane %v5249, 4
        %v5252 = vor.u32 %v5251, %v5247
        %v5253 = vrot.slane %v5252, 4
        %v5255 = vshll.u32 %v4937, 16
        %v5257 = vrot.slane %v5255, 5
        %v5258 = vsel %vm1409, %v5253, %v5257
        %v5260 = vshrl.u32 %v4938, 16
        %v5262 = vrot.slane %v5260, 4
        %v5263 = vshll.u32 %v4938, 16
        %v5265 = vrot.slane %v5263, 5
        %v5266 = vor.u32 %v5262, %v5265
        %v5267 = vrot.slane %v5266, 4
        %v5269 = vshll.u32 %v4939, 16
        %v5271 = vrot.slane %v5269, 5
        %v5272 = vsel %vm1409, %v5267, %v5271
        %v5273 = vshrl.u32 %v4939, 16
        %v5275 = vrot.slane %v5273, 4
        %v5276 = vor.u32 %v5275, %v5271
        %v5277 = vrot.slane %v5276, 4
        %v5279 = vshll.u32 %v4940, 16
        %v5281 = vrot.slane %v5279, 5
        %v5282 = vsel %vm1409, %v5277, %v5281
        %v5284 = vshrl.u32 %v4941, 16
        %v5286 = vrot.slane %v5284, 4
        %v5287 = vshll.u32 %v4941, 16
        %v5289 = vrot.slane %v5287, 5
        %v5290 = vor.u32 %v5286, %v5289
        %v5291 = vrot.slane %v5290, 4
        %v5293 = vshll.u32 %v4942, 16
        %v5295 = vrot.slane %v5293, 5
        %v5296 = vsel %vm1409, %v5291, %v5295
        %v5297 = vshrl.u32 %v4942, 16
        %v5299 = vrot.slane %v5297, 4
        %v5300 = vor.u32 %v5299, %v5295
        %v5301 = vrot.slane %v5300, 4
        %v5303 = vshll.u32 %v4943, 16
        %v5305 = vrot.slane %v5303, 5
        %v5306 = vsel %vm1409, %v5301, %v5305
        %v5308 = vshrl.u32 %v4944, 16
        %v5310 = vrot.slane %v5308, 4
        %v5311 = vshll.u32 %v4944, 16
        %v5313 = vrot.slane %v5311, 5
        %v5314 = vor.u32 %v5310, %v5313
        %v5315 = vrot.slane %v5314, 4
        %v5317 = vshll.u32 %v4945, 16
        %v5319 = vrot.slane %v5317, 5
        %v5320 = vsel %vm1409, %v5315, %v5319
        %v5321 = vshrl.u32 %v4945, 16
        %v5323 = vrot.slane %v5321, 4
        %v5324 = vor.u32 %v5323, %v5319
        %v5325 = vrot.slane %v5324, 4
        %v5327 = vshll.u32 %v4946, 16
        %v5329 = vrot.slane %v5327, 5
        %v5330 = vsel %vm1409, %v5325, %v5329
        %s5331 = scalar_lea.vmem [#allocation8], 448
        %v5332 = vld [vmem:[%s5331] sm:$0xf]
        %v5333 = vld [vmem:[%s5331 + $0x4] sm:$0xf]
        %v5334 = vld [vmem:[%s5331 + $0x8] sm:$0xf]
        %v5335 = vld [vmem:[%s5331 + $0xc] sm:$0xf]
        %v5336 = vld [vmem:[%s5331 + $0x10] sm:$0xf]
        %v5337 = vld [vmem:[%s5331 + $0x14] sm:$0xf]
        %v5338 = vld [vmem:[%s5331 + $0x18] sm:$0xf]
        %v5339 = vld [vmem:[%s5331 + $0x1c] sm:$0xf]
        %v5340 = vld [vmem:[%s5331 + $0x20] sm:$0xf]
        %v5341 = vld [vmem:[%s5331 + $0x24] sm:$0xf]
        %v5342 = vld [vmem:[%s5331 + $0x28] sm:$0xf]
        %v5343 = vld [vmem:[%s5331 + $0x2c] sm:$0xf]
        %v5344 = vld [vmem:[%s5331 + $0x30] sm:$0xf]
        %v5345 = vld [vmem:[%s5331 + $0x34] sm:$0xf]
        %v5346 = vld [vmem:[%s5331 + $0x38] sm:$0xf]
        %v5347 = vld [vmem:[%s5331 + $0x3c] sm:$0xf]
        %v5348 = vunpack.c.l.b16 %v4960
        %v5349 = vunpack.c.l.b16 %v4970
        %v5350 = vunpack.c.l.b16 %v4984
        %v5351 = vunpack.c.l.b16 %v4994
        %v5352 = vunpack.c.l.b16 %v5008
        %v5353 = vunpack.c.l.b16 %v5018
        %v5354 = vunpack.c.l.b16 %v5032
        %v5355 = vunpack.c.l.b16 %v5042
        %v5356 = vunpack.c.l.b16 %v5056
        %v5357 = vunpack.c.l.b16 %v5066
        %v5358 = vunpack.c.l.b16 %v5080
        %v5359 = vunpack.c.l.b16 %v5090
        %v5360 = vunpack.c.l.b16 %v5104
        %v5361 = vunpack.c.l.b16 %v5114
        %v5362 = vunpack.c.l.b16 %v5128
        %v5363 = vunpack.c.l.b16 %v5138
        %v5364 = vunpack.c.l.b16 %v5152
        %v5365 = vunpack.c.l.b16 %v5162
        %v5366 = vunpack.c.l.b16 %v5176
        %v5367 = vunpack.c.l.b16 %v5186
        %v5368 = vunpack.c.l.b16 %v5200
        %v5369 = vunpack.c.l.b16 %v5210
        %v5370 = vunpack.c.l.b16 %v5224
        %v5371 = vunpack.c.l.b16 %v5234
        %v5372 = vunpack.c.l.b16 %v5248
        %v5373 = vunpack.c.l.b16 %v5258
        %v5374 = vunpack.c.l.b16 %v5272
        %v5375 = vunpack.c.l.b16 %v5282
        %v5376 = vunpack.c.l.b16 %v5296
        %v5377 = vunpack.c.l.b16 %v5306
        %v5378 = vunpack.c.l.b16 %v5320
        %v5379 = vunpack.c.l.b16 %v5330
        %v5380 = vpack.c.b16 %v5349, %v5348
        %v5381 = vpack.c.b16 %v5351, %v5350
        %v5382 = vpack.c.b16 %v5353, %v5352
        %v5383 = vpack.c.b16 %v5355, %v5354
        %v5384 = vpack.c.b16 %v5357, %v5356
        %v5385 = vpack.c.b16 %v5359, %v5358
        %v5386 = vpack.c.b16 %v5361, %v5360
        %v5387 = vpack.c.b16 %v5363, %v5362
        %v5388 = vpack.c.b16 %v5365, %v5364
        %v5389 = vpack.c.b16 %v5367, %v5366
        %v5390 = vpack.c.b16 %v5369, %v5368
        %v5391 = vpack.c.b16 %v5371, %v5370
        %v5392 = vpack.c.b16 %v5373, %v5372
        %v5393 = vpack.c.b16 %v5375, %v5374
        %v5394 = vpack.c.b16 %v5377, %v5376
        %v5395 = vpack.c.b16 %v5379, %v5378
        %v5428 = vunpack.c.l.b16 %v5332
        %v5429 = vunpack.c.l.b16 %v5333
        %v5430 = vunpack.c.l.b16 %v5334
        %v5431 = vunpack.c.l.b16 %v5335
        %v5432 = vunpack.c.l.b16 %v5336
        %v5433 = vunpack.c.l.b16 %v5337
        %v5434 = vunpack.c.l.b16 %v5338
        %v5435 = vunpack.c.l.b16 %v5339
        %v5436 = vunpack.c.l.b16 %v5340
        %v5437 = vunpack.c.l.b16 %v5341
        %v5438 = vunpack.c.l.b16 %v5342
        %v5439 = vunpack.c.l.b16 %v5343
        %v5440 = vunpack.c.l.b16 %v5344
        %v5441 = vunpack.c.l.b16 %v5345
        %v5442 = vunpack.c.l.b16 %v5346
        %v5443 = vunpack.c.l.b16 %v5347
        %v5444 = vpack.c.b16 %v5429, %v5428
        %v5445 = vpack.c.b16 %v5431, %v5430
        %v5446 = vpack.c.b16 %v5433, %v5432
        %v5447 = vpack.c.b16 %v5435, %v5434
        %v5448 = vpack.c.b16 %v5437, %v5436
        %v5449 = vpack.c.b16 %v5439, %v5438
        %v5450 = vpack.c.b16 %v5441, %v5440
        %v5451 = vpack.c.b16 %v5443, %v5442
        %5460 = vmatprep.subr.bf16.mxu0 0
        %5461 = vmatpush1.bf16.msra.mxu0 %v5444
        %5462 = vmatprep.subr.bf16.mxu0 0
        %5463 = vmatpush1.bf16.msra.mxu0 %v5445
        %5464 = vmatprep.subr.bf16.mxu0 0
        %5465 = vmatpush1.bf16.msra.mxu0 %v5446
        %5466 = vmatprep.subr.bf16.mxu0 0
        %5467 = vmatpush1.bf16.msra.mxu0 %v5447
        %5468 = vmatprep.subr.bf16.mxu0 0
        %5469 = vmatpush1.bf16.msra.mxu0 %v5448
        %5470 = vmatprep.subr.bf16.mxu0 0
        %5471 = vmatpush1.bf16.msra.mxu0 %v5449
        %5472 = vmatprep.subr.bf16.mxu0 0
        %5473 = vmatpush1.bf16.msra.mxu0 %v5450
        %5474 = vmatprep.subr.bf16.mxu0 0
        %5475 = vmatpush1.bf16.msra.mxu0 %v5451
        %5476 = vmatprep.subr.bf16.mxu0 0
        %5477 = vmatpush1.bf16.msra.mxu0 0
        %5478 = vmatprep.subr.bf16.mxu0 0
        %5479 = vmatpush1.bf16.msra.mxu0 0
        %5480 = vmatprep.subr.bf16.mxu0 0
        %5481 = vmatpush1.bf16.msra.mxu0 0
        %5482 = vmatprep.subr.bf16.mxu0 0
        %5483 = vmatpush1.bf16.msra.mxu0 0
        %5484 = vmatprep.subr.bf16.mxu0 0
        %5485 = vmatpush1.bf16.msra.mxu0 0
        %5486 = vmatprep.subr.bf16.mxu0 0
        %5487 = vmatpush1.bf16.msra.mxu0 0
        %5488 = vmatprep.subr.bf16.mxu0 0
        %5489 = vmatpush1.bf16.msra.mxu0 0
        %5490 = vmatprep.subr.bf16.mxu0 0
        %5491 = vmatpush1.bf16.msra.mxu0 0
        %5492 = vmatprep.mubr.bf16.mxu0 0
        %5493 = vmatmul.mubr.bf16.gmra.mrb[0].mxu0 %v5380
        %v5494 = vpop.f32.mrb[0].mxu0
        %v5495 = vadd.f32 0.0, %v5494
        %v5496 = vpop.f32.mrb[0].mxu0
        %v5497 = vpop.f32.mrb[0].mxu0
        %v5498 = vadd.f32 0.0, %v5497
        %v5499 = vpop.f32.mrb[0].mxu0
        %5500 = vmatprep.mubr.bf16.mxu0 0
        %5501 = vmatmul.mubr.bf16.gmra.mrb[0].mxu0 %v5381
        %v5502 = vpop.f32.mrb[0].mxu0
        %v5503 = vadd.f32 0.0, %v5502
        %v5504 = vpop.f32.mrb[0].mxu0
        %v5505 = vpop.f32.mrb[0].mxu0
        %v5506 = vadd.f32 0.0, %v5505
        %v5507 = vpop.f32.mrb[0].mxu0
        %5508 = vmatprep.mubr.bf16.mxu0 0
        %5509 = vmatmul.mubr.bf16.gmra.mrb[0].mxu0 %v5382
        %v5510 = vpop.f32.mrb[0].mxu0
        %v5511 = vadd.f32 0.0, %v5510
        %v5512 = vpop.f32.mrb[0].mxu0
        %v5513 = vpop.f32.mrb[0].mxu0
        %v5514 = vadd.f32 0.0, %v5513
        %v5515 = vpop.f32.mrb[0].mxu0
        %5516 = vmatprep.mubr.bf16.mxu0 0
        %5517 = vmatmul.mubr.bf16.gmra.mrb[0].mxu0 %v5383
        %v5518 = vpop.f32.mrb[0].mxu0
        %v5519 = vadd.f32 0.0, %v5518
        %v5520 = vpop.f32.mrb[0].mxu0
        %v5521 = vpop.f32.mrb[0].mxu0
        %v5522 = vadd.f32 0.0, %v5521
        %v5523 = vpop.f32.mrb[0].mxu0
        %5524 = vmatprep.mubr.bf16.mxu0 0
        %5525 = vmatmul.mubr.bf16.gmra.mrb[0].mxu0 %v5384
        %v5526 = vpop.f32.mrb[0].mxu0
        %v5527 = vadd.f32 0.0, %v5526
        %v5528 = vpop.f32.mrb[0].mxu0
        %v5529 = vpop.f32.mrb[0].mxu0
        %v5530 = vadd.f32 0.0, %v5529
        %v5531 = vpop.f32.mrb[0].mxu0
        %5532 = vmatprep.mubr.bf16.mxu0 0
        %5533 = vmatmul.mubr.bf16.gmra.mrb[0].mxu0 %v5385
        %v5534 = vpop.f32.mrb[0].mxu0
        %v5535 = vadd.f32 0.0, %v5534
        %v5536 = vpop.f32.mrb[0].mxu0
        %v5537 = vpop.f32.mrb[0].mxu0
        %v5538 = vadd.f32 0.0, %v5537
        %v5539 = vpop.f32.mrb[0].mxu0
        %5540 = vmatprep.mubr.bf16.mxu0 0
        %5541 = vmatmul.mubr.bf16.gmra.mrb[0].mxu0 %v5386
        %v5542 = vpop.f32.mrb[0].mxu0
        %v5543 = vadd.f32 0.0, %v5542
        %v5544 = vpop.f32.mrb[0].mxu0
        %v5545 = vpop.f32.mrb[0].mxu0
        %v5546 = vadd.f32 0.0, %v5545
        %v5547 = vpop.f32.mrb[0].mxu0
        %5548 = vmatprep.mubr.bf16.mxu0 0
        %5549 = vmatmul.mubr.bf16.gmra.mrb[0].mxu0 %v5387
        %v5550 = vpop.f32.mrb[0].mxu0
        %v5551 = vadd.f32 0.0, %v5550
        %v5552 = vpop.f32.mrb[0].mxu0
        %v5553 = vpop.f32.mrb[0].mxu0
        %v5554 = vadd.f32 0.0, %v5553
        %v5555 = vpop.f32.mrb[0].mxu0
        %5556 = vmatprep.mubr.bf16.mxu0 0
        %5557 = vmatmul.mubr.bf16.gmra.mrb[0].mxu0 %v5388
        %v5558 = vpop.f32.mrb[0].mxu0
        %v5559 = vadd.f32 0.0, %v5558
        %v5560 = vpop.f32.mrb[0].mxu0
        %v5561 = vpop.f32.mrb[0].mxu0
        %v5562 = vadd.f32 0.0, %v5561
        %v5563 = vpop.f32.mrb[0].mxu0
        %5564 = vmatprep.mubr.bf16.mxu0 0
        %5565 = vmatmul.mubr.bf16.gmra.mrb[0].mxu0 %v5389
        %v5566 = vpop.f32.mrb[0].mxu0
        %v5567 = vadd.f32 0.0, %v5566
        %v5568 = vpop.f32.mrb[0].mxu0
        %v5569 = vpop.f32.mrb[0].mxu0
        %v5570 = vadd.f32 0.0, %v5569
        %v5571 = vpop.f32.mrb[0].mxu0
        %5572 = vmatprep.mubr.bf16.mxu0 0
        %5573 = vmatmul.mubr.bf16.gmra.mrb[0].mxu0 %v5390
        %v5574 = vpop.f32.mrb[0].mxu0
        %v5575 = vadd.f32 0.0, %v5574
        %v5576 = vpop.f32.mrb[0].mxu0
        %v5577 = vpop.f32.mrb[0].mxu0
        %v5578 = vadd.f32 0.0, %v5577
        %v5579 = vpop.f32.mrb[0].mxu0
        %5580 = vmatprep.mubr.bf16.mxu0 0
        %5581 = vmatmul.mubr.bf16.gmra.mrb[0].mxu0 %v5391
        %v5582 = vpop.f32.mrb[0].mxu0
        %v5583 = vadd.f32 0.0, %v5582
        %v5584 = vpop.f32.mrb[0].mxu0
        %v5585 = vpop.f32.mrb[0].mxu0
        %v5586 = vadd.f32 0.0, %v5585
        %v5587 = vpop.f32.mrb[0].mxu0
        %5588 = vmatprep.mubr.bf16.mxu0 0
        %5589 = vmatmul.mubr.bf16.gmra.mrb[0].mxu0 %v5392
        %v5590 = vpop.f32.mrb[0].mxu0
        %v5591 = vadd.f32 0.0, %v5590
        %v5592 = vpop.f32.mrb[0].mxu0
        %v5593 = vpop.f32.mrb[0].mxu0
        %v5594 = vadd.f32 0.0, %v5593
        %v5595 = vpop.f32.mrb[0].mxu0
        %5596 = vmatprep.mubr.bf16.mxu0 0
        %5597 = vmatmul.mubr.bf16.gmra.mrb[0].mxu0 %v5393
        %v5598 = vpop.f32.mrb[0].mxu0
        %v5599 = vadd.f32 0.0, %v5598
        %v5600 = vpop.f32.mrb[0].mxu0
        %v5601 = vpop.f32.mrb[0].mxu0
        %v5602 = vadd.f32 0.0, %v5601
        %v5603 = vpop.f32.mrb[0].mxu0
        %5604 = vmatprep.mubr.bf16.mxu0 0
        %5605 = vmatmul.mubr.bf16.gmra.mrb[0].mxu0 %v5394
        %v5606 = vpop.f32.mrb[0].mxu0
        %v5607 = vadd.f32 0.0, %v5606
        %v5608 = vpop.f32.mrb[0].mxu0
        %v5609 = vpop.f32.mrb[0].mxu0
        %v5610 = vadd.f32 0.0, %v5609
        %v5611 = vpop.f32.mrb[0].mxu0
        %5612 = vmatprep.mubr.bf16.mxu0 0
        %5613 = vmatmul.mubr.bf16.gmra.mrb[0].mxu0 %v5395
        %v5614 = vpop.f32.mrb[0].mxu0
        %v5615 = vadd.f32 0.0, %v5614
        %v5616 = vpop.f32.mrb[0].mxu0
        %v5617 = vpop.f32.mrb[0].mxu0
        %v5618 = vadd.f32 0.0, %v5617
        %v5619 = vpop.f32.mrb[0].mxu0
        %5620 = vdwg.mxu0
        %v5621 = vadd.f32 %v4867, %v5495
        %v5622 = vadd.f32 %v4868, %v5498
        %v5623 = vadd.f32 %v4869, %v5503
        %v5624 = vadd.f32 %v4870, %v5506
        %v5625 = vadd.f32 %v4871, %v5511
        %v5626 = vadd.f32 %v4872, %v5514
        %v5627 = vadd.f32 %v4873, %v5519
        %v5628 = vadd.f32 %v4874, %v5522
        %v5629 = vadd.f32 %v4875, %v5527
        %v5630 = vadd.f32 %v4876, %v5530
        %v5631 = vadd.f32 %v4877, %v5535
        %v5632 = vadd.f32 %v4878, %v5538
        %v5633 = vadd.f32 %v4879, %v5543
        %v5634 = vadd.f32 %v4880, %v5546
        %v5635 = vadd.f32 %v4881, %v5551
        %v5636 = vadd.f32 %v4882, %v5554
        %v5637 = vadd.f32 %v4883, %v5559
        %v5638 = vadd.f32 %v4884, %v5562
        %v5639 = vadd.f32 %v4885, %v5567
        %v5640 = vadd.f32 %v4886, %v5570
        %v5641 = vadd.f32 %v4887, %v5575
        %v5642 = vadd.f32 %v4888, %v5578
        %v5643 = vadd.f32 %v4889, %v5583
        %v5644 = vadd.f32 %v4890, %v5586
        %v5645 = vadd.f32 %v4891, %v5591
        %v5646 = vadd.f32 %v4892, %v5594
        %v5647 = vadd.f32 %v4893, %v5599
        %v5648 = vadd.f32 %v4894, %v5602
        %v5649 = vadd.f32 %v4895, %v5607
        %v5650 = vadd.f32 %v4896, %v5610
        %v5651 = vadd.f32 %v4897, %v5615
        %v5652 = vadd.f32 %v4898, %v5618
        %v5653 = vld [vmem:[%s4512] sm:$0xe]
        %v5654 = vld [vmem:[%s4512 + $0xc] sm:$0xe]
        %v5655 = vld [vmem:[%s4512 + $0x18] sm:$0xe]
        %v5656 = vld [vmem:[%s4512 + $0x24] sm:$0xe]
        %v5657 = vld [vmem:[%s4512 + $0x30] sm:$0xe]
        %v5658 = vld [vmem:[%s4512 + $0x3c] sm:$0xe]
        %v5659 = vld [vmem:[%s4512 + $0x48] sm:$0xe]
        %v5660 = vld [vmem:[%s4512 + $0x54] sm:$0xe]
        %v5661 = vld [vmem:[%s4512 + $0x60] sm:$0xe]
        %v5662 = vld [vmem:[%s4512 + $0x6c] sm:$0xe]
        %v5663 = vld [vmem:[%s4512 + $0x78] sm:$0xe]
        %v5664 = vld [vmem:[%s4512 + $0x84] sm:$0xe]
        %v5665 = vld [vmem:[%s4512 + $0x90] sm:$0xe]
        %v5666 = vld [vmem:[%s4512 + $0x9c] sm:$0xe]
        %v5667 = vld [vmem:[%s4512 + $0xa8] sm:$0xe]
        %v5668 = vld [vmem:[%s4512 + $0xb4] sm:$0xe]
        %v5717 = vrot.slane %v5653, 5
        %v5718 = vrot.slane %v5717, 4
        %v5719 = vrot.slane %v4900, 5
        %v5720 = vsel %vm2439, %v5718, %v5719
        %v5721 = vrot.slane %v5719, 4
        %v5722 = vrot.slane %v4901, 5
        %v5723 = vsel %vm2439, %v5721, %v5722
        %v5724 = vrot.slane %v5654, 5
        %v5725 = vrot.slane %v5724, 4
        %v5726 = vrot.slane %v4903, 5
        %v5727 = vsel %vm2439, %v5725, %v5726
        %v5728 = vrot.slane %v5726, 4
        %v5729 = vrot.slane %v4904, 5
        %v5730 = vsel %vm2439, %v5728, %v5729
        %v5731 = vrot.slane %v5655, 5
        %v5732 = vrot.slane %v5731, 4
        %v5733 = vrot.slane %v4906, 5
        %v5734 = vsel %vm2439, %v5732, %v5733
        %v5735 = vrot.slane %v5733, 4
        %v5736 = vrot.slane %v4907, 5
        %v5737 = vsel %vm2439, %v5735, %v5736
        %v5738 = vrot.slane %v5656, 5
        %v5739 = vrot.slane %v5738, 4
        %v5740 = vrot.slane %v4909, 5
        %v5741 = vsel %vm2439, %v5739, %v5740
        %v5742 = vrot.slane %v5740, 4
        %v5743 = vrot.slane %v4910, 5
        %v5744 = vsel %vm2439, %v5742, %v5743
        %v5745 = vrot.slane %v5657, 5
        %v5746 = vrot.slane %v5745, 4
        %v5747 = vrot.slane %v4912, 5
        %v5748 = vsel %vm2439, %v5746, %v5747
        %v5749 = vrot.slane %v5747, 4
        %v5750 = vrot.slane %v4913, 5
        %v5751 = vsel %vm2439, %v5749, %v5750
        %v5752 = vrot.slane %v5658, 5
        %v5753 = vrot.slane %v5752, 4
        %v5754 = vrot.slane %v4915, 5
        %v5755 = vsel %vm2439, %v5753, %v5754
        %v5756 = vrot.slane %v5754, 4
        %v5757 = vrot.slane %v4916, 5
        %v5758 = vsel %vm2439, %v5756, %v5757
        %v5759 = vrot.slane %v5659, 5
        %v5760 = vrot.slane %v5759, 4
        %v5761 = vrot.slane %v4918, 5
        %v5762 = vsel %vm2439, %v5760, %v5761
        %v5763 = vrot.slane %v5761, 4
        %v5764 = vrot.slane %v4919, 5
        %v5765 = vsel %vm2439, %v5763, %v5764
        %v5766 = vrot.slane %v5660, 5
        %v5767 = vrot.slane %v5766, 4
        %v5768 = vrot.slane %v4921, 5
        %v5769 = vsel %vm2439, %v5767, %v5768
        %v5770 = vrot.slane %v5768, 4
        %v5771 = vrot.slane %v4922, 5
        %v5772 = vsel %vm2439, %v5770, %v5771
        %v5773 = vrot.slane %v5661, 5
        %v5774 = vrot.slane %v5773, 4
        %v5775 = vrot.slane %v4924, 5
        %v5776 = vsel %vm2439, %v5774, %v5775
        %v5777 = vrot.slane %v5775, 4
        %v5778 = vrot.slane %v4925, 5
        %v5779 = vsel %vm2439, %v5777, %v5778
        %v5780 = vrot.slane %v5662, 5
        %v5781 = vrot.slane %v5780, 4
        %v5782 = vrot.slane %v4927, 5
        %v5783 = vsel %vm2439, %v5781, %v5782
        %v5784 = vrot.slane %v5782, 4
        %v5785 = vrot.slane %v4928, 5
        %v5786 = vsel %vm2439, %v5784, %v5785
        %v5787 = vrot.slane %v5663, 5
        %v5788 = vrot.slane %v5787, 4
        %v5789 = vrot.slane %v4930, 5
        %v5790 = vsel %vm2439, %v5788, %v5789
        %v5791 = vrot.slane %v5789, 4
        %v5792 = vrot.slane %v4931, 5
        %v5793 = vsel %vm2439, %v5791, %v5792
        %v5794 = vrot.slane %v5664, 5
        %v5795 = vrot.slane %v5794, 4
        %v5796 = vrot.slane %v4933, 5
        %v5797 = vsel %vm2439, %v5795, %v5796
        %v5798 = vrot.slane %v5796, 4
        %v5799 = vrot.slane %v4934, 5
        %v5800 = vsel %vm2439, %v5798, %v5799
        %v5801 = vrot.slane %v5665, 5
        %v5802 = vrot.slane %v5801, 4
        %v5803 = vrot.slane %v4936, 5
        %v5804 = vsel %vm2439, %v5802, %v5803
        %v5805 = vrot.slane %v5803, 4
        %v5806 = vrot.slane %v4937, 5
        %v5807 = vsel %vm2439, %v5805, %v5806
        %v5808 = vrot.slane %v5666, 5
        %v5809 = vrot.slane %v5808, 4
        %v5810 = vrot.slane %v4939, 5
        %v5811 = vsel %vm2439, %v5809, %v5810
        %v5812 = vrot.slane %v5810, 4
        %v5813 = vrot.slane %v4940, 5
        %v5814 = vsel %vm2439, %v5812, %v5813
        %v5815 = vrot.slane %v5667, 5
        %v5816 = vrot.slane %v5815, 4
        %v5817 = vrot.slane %v4942, 5
        %v5818 = vsel %vm2439, %v5816, %v5817
        %v5819 = vrot.slane %v5817, 4
        %v5820 = vrot.slane %v4943, 5
        %v5821 = vsel %vm2439, %v5819, %v5820
        %v5822 = vrot.slane %v5668, 5
        %v5823 = vrot.slane %v5822, 4
        %v5824 = vrot.slane %v4945, 5
        %v5825 = vsel %vm2439, %v5823, %v5824
        %v5826 = vrot.slane %v5824, 4
        %v5827 = vrot.slane %v4946, 5
        %v5828 = vsel %vm2439, %v5826, %v5827
        %s5829 = scalar_lea.vmem [#allocation8], 512
        %v5830 = vld [vmem:[%s5829] sm:$0xf]
        %v5831 = vld [vmem:[%s5829 + $0x4] sm:$0xf]
        %v5832 = vld [vmem:[%s5829 + $0x8] sm:$0xf]
        %v5833 = vld [vmem:[%s5829 + $0xc] sm:$0xf]
        %v5834 = vld [vmem:[%s5829 + $0x10] sm:$0xf]
        %v5835 = vld [vmem:[%s5829 + $0x14] sm:$0xf]
        %v5836 = vld [vmem:[%s5829 + $0x18] sm:$0xf]
        %v5837 = vld [vmem:[%s5829 + $0x1c] sm:$0xf]
        %v5838 = vld [vmem:[%s5829 + $0x20] sm:$0xf]
        %v5839 = vld [vmem:[%s5829 + $0x24] sm:$0xf]
        %v5840 = vld [vmem:[%s5829 + $0x28] sm:$0xf]
        %v5841 = vld [vmem:[%s5829 + $0x2c] sm:$0xf]
        %v5842 = vld [vmem:[%s5829 + $0x30] sm:$0xf]
        %v5843 = vld [vmem:[%s5829 + $0x34] sm:$0xf]
        %v5844 = vld [vmem:[%s5829 + $0x38] sm:$0xf]
        %v5845 = vld [vmem:[%s5829 + $0x3c] sm:$0xf]
        %v5846 = vunpack.c.l.b16 %v5720
        %v5847 = vunpack.c.l.b16 %v5723
        %v5848 = vunpack.c.l.b16 %v5727
        %v5849 = vunpack.c.l.b16 %v5730
        %v5850 = vunpack.c.l.b16 %v5734
        %v5851 = vunpack.c.l.b16 %v5737
        %v5852 = vunpack.c.l.b16 %v5741
        %v5853 = vunpack.c.l.b16 %v5744
        %v5854 = vunpack.c.l.b16 %v5748
        %v5855 = vunpack.c.l.b16 %v5751
        %v5856 = vunpack.c.l.b16 %v5755
        %v5857 = vunpack.c.l.b16 %v5758
        %v5858 = vunpack.c.l.b16 %v5762
        %v5859 = vunpack.c.l.b16 %v5765
        %v5860 = vunpack.c.l.b16 %v5769
        %v5861 = vunpack.c.l.b16 %v5772
        %v5862 = vunpack.c.l.b16 %v5776
        %v5863 = vunpack.c.l.b16 %v5779
        %v5864 = vunpack.c.l.b16 %v5783
        %v5865 = vunpack.c.l.b16 %v5786
        %v5866 = vunpack.c.l.b16 %v5790
        %v5867 = vunpack.c.l.b16 %v5793
        %v5868 = vunpack.c.l.b16 %v5797
        %v5869 = vunpack.c.l.b16 %v5800
        %v5870 = vunpack.c.l.b16 %v5804
        %v5871 = vunpack.c.l.b16 %v5807
        %v5872 = vunpack.c.l.b16 %v5811
        %v5873 = vunpack.c.l.b16 %v5814
        %v5874 = vunpack.c.l.b16 %v5818
        %v5875 = vunpack.c.l.b16 %v5821
        %v5876 = vunpack.c.l.b16 %v5825
        %v5877 = vunpack.c.l.b16 %v5828
        %v5878 = vpack.c.b16 %v5847, %v5846
        %v5879 = vpack.c.b16 %v5849, %v5848
        %v5880 = vpack.c.b16 %v5851, %v5850
        %v5881 = vpack.c.b16 %v5853, %v5852
        %v5882 = vpack.c.b16 %v5855, %v5854
        %v5883 = vpack.c.b16 %v5857, %v5856
        %v5884 = vpack.c.b16 %v5859, %v5858
        %v5885 = vpack.c.b16 %v5861, %v5860
        %v5886 = vpack.c.b16 %v5863, %v5862
        %v5887 = vpack.c.b16 %v5865, %v5864
        %v5888 = vpack.c.b16 %v5867, %v5866
        %v5889 = vpack.c.b16 %v5869, %v5868
        %v5890 = vpack.c.b16 %v5871, %v5870
        %v5891 = vpack.c.b16 %v5873, %v5872
        %v5892 = vpack.c.b16 %v5875, %v5874
        %v5893 = vpack.c.b16 %v5877, %v5876
        %v5926 = vunpack.c.l.b16 %v5830
        %v5927 = vunpack.c.l.b16 %v5831
        %v5928 = vunpack.c.l.b16 %v5832
        %v5929 = vunpack.c.l.b16 %v5833
        %v5930 = vunpack.c.l.b16 %v5834
        %v5931 = vunpack.c.l.b16 %v5835
        %v5932 = vunpack.c.l.b16 %v5836
        %v5933 = vunpack.c.l.b16 %v5837
        %v5934 = vunpack.c.l.b16 %v5838
        %v5935 = vunpack.c.l.b16 %v5839
        %v5936 = vunpack.c.l.b16 %v5840
        %v5937 = vunpack.c.l.b16 %v5841
        %v5938 = vunpack.c.l.b16 %v5842
        %v5939 = vunpack.c.l.b16 %v5843
        %v5940 = vunpack.c.l.b16 %v5844
        %v5941 = vunpack.c.l.b16 %v5845
        %v5942 = vpack.c.b16 %v5927, %v5926
        %v5943 = vpack.c.b16 %v5929, %v5928
        %v5944 = vpack.c.b16 %v5931, %v5930
        %v5945 = vpack.c.b16 %v5933, %v5932
        %v5946 = vpack.c.b16 %v5935, %v5934
        %v5947 = vpack.c.b16 %v5937, %v5936
        %v5948 = vpack.c.b16 %v5939, %v5938
        %v5949 = vpack.c.b16 %v5941, %v5940
        %5958 = vmatprep.subr.bf16.mxu0 0
        %5959 = vmatpush1.bf16.msra.mxu0 %v5942
        %5960 = vmatprep.subr.bf16.mxu0 0
        %5961 = vmatpush1.bf16.msra.mxu0 %v5943
        %5962 = vmatprep.subr.bf16.mxu0 0
        %5963 = vmatpush1.bf16.msra.mxu0 %v5944
        %5964 = vmatprep.subr.bf16.mxu0 0
        %5965 = vmatpush1.bf16.msra.mxu0 %v5945
        %5966 = vmatprep.subr.bf16.mxu0 0
        %5967 = vmatpush1.bf16.msra.mxu0 %v5946
        %5968 = vmatprep.subr.bf16.mxu0 0
        %5969 = vmatpush1.bf16.msra.mxu0 %v5947
        %5970 = vmatprep.subr.bf16.mxu0 0
        %5971 = vmatpush1.bf16.msra.mxu0 %v5948
        %5972 = vmatprep.subr.bf16.mxu0 0
        %5973 = vmatpush1.bf16.msra.mxu0 %v5949
        %5974 = vmatprep.subr.bf16.mxu0 0
        %5975 = vmatpush1.bf16.msra.mxu0 0
        %5976 = vmatprep.subr.bf16.mxu0 0
        %5977 = vmatpush1.bf16.msra.mxu0 0
        %5978 = vmatprep.subr.bf16.mxu0 0
        %5979 = vmatpush1.bf16.msra.mxu0 0
        %5980 = vmatprep.subr.bf16.mxu0 0
        %5981 = vmatpush1.bf16.msra.mxu0 0
        %5982 = vmatprep.subr.bf16.mxu0 0
        %5983 = vmatpush1.bf16.msra.mxu0 0
        %5984 = vmatprep.subr.bf16.mxu0 0
        %5985 = vmatpush1.bf16.msra.mxu0 0
        %5986 = vmatprep.subr.bf16.mxu0 0
        %5987 = vmatpush1.bf16.msra.mxu0 0
        %5988 = vmatprep.subr.bf16.mxu0 0
        %5989 = vmatpush1.bf16.msra.mxu0 0
        %5990 = vmatprep.mubr.bf16.mxu0 0
        %5991 = vmatmul.mubr.bf16.gmra.mrb[0].mxu0 %v5878
        %v5992 = vpop.f32.mrb[0].mxu0
        %v5993 = vadd.f32 0.0, %v5992
        %v5994 = vpop.f32.mrb[0].mxu0
        %v5995 = vpop.f32.mrb[0].mxu0
        %v5996 = vadd.f32 0.0, %v5995
        %v5997 = vpop.f32.mrb[0].mxu0
        %5998 = vmatprep.mubr.bf16.mxu0 0
        %5999 = vmatmul.mubr.bf16.gmra.mrb[0].mxu0 %v5879
        %v6000 = vpop.f32.mrb[0].mxu0
        %v6001 = vadd.f32 0.0, %v6000
        %v6002 = vpop.f32.mrb[0].mxu0
        %v6003 = vpop.f32.mrb[0].mxu0
        %v6004 = vadd.f32 0.0, %v6003
        %v6005 = vpop.f32.mrb[0].mxu0
        %6006 = vmatprep.mubr.bf16.mxu0 0
        %6007 = vmatmul.mubr.bf16.gmra.mrb[0].mxu0 %v5880
        %v6008 = vpop.f32.mrb[0].mxu0
        %v6009 = vadd.f32 0.0, %v6008
        %v6010 = vpop.f32.mrb[0].mxu0
        %v6011 = vpop.f32.mrb[0].mxu0
        %v6012 = vadd.f32 0.0, %v6011
        %v6013 = vpop.f32.mrb[0].mxu0
        %6014 = vmatprep.mubr.bf16.mxu0 0
        %6015 = vmatmul.mubr.bf16.gmra.mrb[0].mxu0 %v5881
        %v6016 = vpop.f32.mrb[0].mxu0
        %v6017 = vadd.f32 0.0, %v6016
        %v6018 = vpop.f32.mrb[0].mxu0
        %v6019 = vpop.f32.mrb[0].mxu0
        %v6020 = vadd.f32 0.0, %v6019
        %v6021 = vpop.f32.mrb[0].mxu0
        %6022 = vmatprep.mubr.bf16.mxu0 0
        %6023 = vmatmul.mubr.bf16.gmra.mrb[0].mxu0 %v5882
        %v6024 = vpop.f32.mrb[0].mxu0
        %v6025 = vadd.f32 0.0, %v6024
        %v6026 = vpop.f32.mrb[0].mxu0
        %v6027 = vpop.f32.mrb[0].mxu0
        %v6028 = vadd.f32 0.0, %v6027
        %v6029 = vpop.f32.mrb[0].mxu0
        %6030 = vmatprep.mubr.bf16.mxu0 0
        %6031 = vmatmul.mubr.bf16.gmra.mrb[0].mxu0 %v5883
        %v6032 = vpop.f32.mrb[0].mxu0
        %v6033 = vadd.f32 0.0, %v6032
        %v6034 = vpop.f32.mrb[0].mxu0
        %v6035 = vpop.f32.mrb[0].mxu0
        %v6036 = vadd.f32 0.0, %v6035
        %v6037 = vpop.f32.mrb[0].mxu0
        %6038 = vmatprep.mubr.bf16.mxu0 0
        %6039 = vmatmul.mubr.bf16.gmra.mrb[0].mxu0 %v5884
        %v6040 = vpop.f32.mrb[0].mxu0
        %v6041 = vadd.f32 0.0, %v6040
        %v6042 = vpop.f32.mrb[0].mxu0
        %v6043 = vpop.f32.mrb[0].mxu0
        %v6044 = vadd.f32 0.0, %v6043
        %v6045 = vpop.f32.mrb[0].mxu0
        %6046 = vmatprep.mubr.bf16.mxu0 0
        %6047 = vmatmul.mubr.bf16.gmra.mrb[0].mxu0 %v5885
        %v6048 = vpop.f32.mrb[0].mxu0
        %v6049 = vadd.f32 0.0, %v6048
        %v6050 = vpop.f32.mrb[0].mxu0
        %v6051 = vpop.f32.mrb[0].mxu0
        %v6052 = vadd.f32 0.0, %v6051
        %v6053 = vpop.f32.mrb[0].mxu0
        %6054 = vmatprep.mubr.bf16.mxu0 0
        %6055 = vmatmul.mubr.bf16.gmra.mrb[0].mxu0 %v5886
        %v6056 = vpop.f32.mrb[0].mxu0
        %v6057 = vadd.f32 0.0, %v6056
        %v6058 = vpop.f32.mrb[0].mxu0
        %v6059 = vpop.f32.mrb[0].mxu0
        %v6060 = vadd.f32 0.0, %v6059
        %v6061 = vpop.f32.mrb[0].mxu0
        %6062 = vmatprep.mubr.bf16.mxu0 0
        %6063 = vmatmul.mubr.bf16.gmra.mrb[0].mxu0 %v5887
        %v6064 = vpop.f32.mrb[0].mxu0
        %v6065 = vadd.f32 0.0, %v6064
        %v6066 = vpop.f32.mrb[0].mxu0
        %v6067 = vpop.f32.mrb[0].mxu0
        %v6068 = vadd.f32 0.0, %v6067
        %v6069 = vpop.f32.mrb[0].mxu0
        %6070 = vmatprep.mubr.bf16.mxu0 0
        %6071 = vmatmul.mubr.bf16.gmra.mrb[0].mxu0 %v5888
        %v6072 = vpop.f32.mrb[0].mxu0
        %v6073 = vadd.f32 0.0, %v6072
        %v6074 = vpop.f32.mrb[0].mxu0
        %v6075 = vpop.f32.mrb[0].mxu0
        %v6076 = vadd.f32 0.0, %v6075
        %v6077 = vpop.f32.mrb[0].mxu0
        %6078 = vmatprep.mubr.bf16.mxu0 0
        %6079 = vmatmul.mubr.bf16.gmra.mrb[0].mxu0 %v5889
        %v6080 = vpop.f32.mrb[0].mxu0
        %v6081 = vadd.f32 0.0, %v6080
        %v6082 = vpop.f32.mrb[0].mxu0
        %v6083 = vpop.f32.mrb[0].mxu0
        %v6084 = vadd.f32 0.0, %v6083
        %v6085 = vpop.f32.mrb[0].mxu0
        %6086 = vmatprep.mubr.bf16.mxu0 0
        %6087 = vmatmul.mubr.bf16.gmra.mrb[0].mxu0 %v5890
        %v6088 = vpop.f32.mrb[0].mxu0
        %v6089 = vadd.f32 0.0, %v6088
        %v6090 = vpop.f32.mrb[0].mxu0
        %v6091 = vpop.f32.mrb[0].mxu0
        %v6092 = vadd.f32 0.0, %v6091
        %v6093 = vpop.f32.mrb[0].mxu0
        %6094 = vmatprep.mubr.bf16.mxu0 0
        %6095 = vmatmul.mubr.bf16.gmra.mrb[0].mxu0 %v5891
        %v6096 = vpop.f32.mrb[0].mxu0
        %v6097 = vadd.f32 0.0, %v6096
        %v6098 = vpop.f32.mrb[0].mxu0
        %v6099 = vpop.f32.mrb[0].mxu0
        %v6100 = vadd.f32 0.0, %v6099
        %v6101 = vpop.f32.mrb[0].mxu0
        %6102 = vmatprep.mubr.bf16.mxu0 0
        %6103 = vmatmul.mubr.bf16.gmra.mrb[0].mxu0 %v5892
        %v6104 = vpop.f32.mrb[0].mxu0
        %v6105 = vadd.f32 0.0, %v6104
        %v6106 = vpop.f32.mrb[0].mxu0
        %v6107 = vpop.f32.mrb[0].mxu0
        %v6108 = vadd.f32 0.0, %v6107
        %v6109 = vpop.f32.mrb[0].mxu0
        %6110 = vmatprep.mubr.bf16.mxu0 0
        %6111 = vmatmul.mubr.bf16.gmra.mrb[0].mxu0 %v5893
        %v6112 = vpop.f32.mrb[0].mxu0
        %v6113 = vadd.f32 0.0, %v6112
        %v6114 = vpop.f32.mrb[0].mxu0
        %v6115 = vpop.f32.mrb[0].mxu0
        %v6116 = vadd.f32 0.0, %v6115
        %v6117 = vpop.f32.mrb[0].mxu0
        %6118 = vdwg.mxu0
        %v6119 = vadd.f32 %v5621, %v5993
        %v6120 = vadd.f32 %v5622, %v5996
        %v6121 = vadd.f32 %v5623, %v6001
        %v6122 = vadd.f32 %v5624, %v6004
        %v6123 = vadd.f32 %v5625, %v6009
        %v6124 = vadd.f32 %v5626, %v6012
        %v6125 = vadd.f32 %v5627, %v6017
        %v6126 = vadd.f32 %v5628, %v6020
        %v6127 = vadd.f32 %v5629, %v6025
        %v6128 = vadd.f32 %v5630, %v6028
        %v6129 = vadd.f32 %v5631, %v6033
        %v6130 = vadd.f32 %v5632, %v6036
        %v6131 = vadd.f32 %v5633, %v6041
        %v6132 = vadd.f32 %v5634, %v6044
        %v6133 = vadd.f32 %v5635, %v6049
        %v6134 = vadd.f32 %v5636, %v6052
        %v6135 = vadd.f32 %v5637, %v6057
        %v6136 = vadd.f32 %v5638, %v6060
        %v6137 = vadd.f32 %v5639, %v6065
        %v6138 = vadd.f32 %v5640, %v6068
        %v6139 = vadd.f32 %v5641, %v6073
        %v6140 = vadd.f32 %v5642, %v6076
        %v6141 = vadd.f32 %v5643, %v6081
        %v6142 = vadd.f32 %v5644, %v6084
        %v6143 = vadd.f32 %v5645, %v6089
        %v6144 = vadd.f32 %v5646, %v6092
        %v6145 = vadd.f32 %v5647, %v6097
        %v6146 = vadd.f32 %v5648, %v6100
        %v6147 = vadd.f32 %v5649, %v6105
        %v6148 = vadd.f32 %v5650, %v6108
        %v6149 = vadd.f32 %v5651, %v6113
        %v6150 = vadd.f32 %v5652, %v6116
        %v6151 = vld [vmem:[%s7] sm:$0x1]
        %v6153 = vlaneseq
        %v6154 = vshrl.u32 %v6153, 7
        %v6155 = vsub.s32 0, %v6154
        %v6156 = vrot.slane %v6151, %v6155
        %v6158 = vmul.f32 %v6119, %v6156
        %v6159 = vmul.f32 %v6120, %v6156
        %v6160 = vmul.f32 %v6121, %v6156
        %v6161 = vmul.f32 %v6122, %v6156
        %v6162 = vmul.f32 %v6123, %v6156
        %v6163 = vmul.f32 %v6124, %v6156
        %v6164 = vmul.f32 %v6125, %v6156
        %v6165 = vmul.f32 %v6126, %v6156
        %v6166 = vmul.f32 %v6127, %v6156
        %v6167 = vmul.f32 %v6128, %v6156
        %v6168 = vmul.f32 %v6129, %v6156
        %v6169 = vmul.f32 %v6130, %v6156
        %v6170 = vmul.f32 %v6131, %v6156
        %v6171 = vmul.f32 %v6132, %v6156
        %v6172 = vmul.f32 %v6133, %v6156
        %v6173 = vmul.f32 %v6134, %v6156
        %v6174 = vmul.f32 %v6135, %v6156
        %v6175 = vmul.f32 %v6136, %v6156
        %v6176 = vmul.f32 %v6137, %v6156
        %v6177 = vmul.f32 %v6138, %v6156
        %v6178 = vmul.f32 %v6139, %v6156
        %v6179 = vmul.f32 %v6140, %v6156
        %v6180 = vmul.f32 %v6141, %v6156
        %v6181 = vmul.f32 %v6142, %v6156
        %v6182 = vmul.f32 %v6143, %v6156
        %v6183 = vmul.f32 %v6144, %v6156
        %v6184 = vmul.f32 %v6145, %v6156
        %v6185 = vmul.f32 %v6146, %v6156
        %v6186 = vmul.f32 %v6147, %v6156
        %v6187 = vmul.f32 %v6148, %v6156
        %v6188 = vmul.f32 %v6149, %v6156
        %v6189 = vmul.f32 %v6150, %v6156
        %v6190 = vld [vmem:[%s8] sm:$0x1]
        %v6192 = vlaneseq
        %v6193 = vshrl.u32 %v6192, 7
        %v6194 = vsub.s32 0, %v6193
        %v6195 = vrot.slane %v6190, %v6194
        %v6197 = vadd.f32 %v6158, %v6195
        %v6198 = vadd.f32 %v6159, %v6195
        %v6199 = vadd.f32 %v6160, %v6195
        %v6200 = vadd.f32 %v6161, %v6195
        %v6201 = vadd.f32 %v6162, %v6195
        %v6202 = vadd.f32 %v6163, %v6195
        %v6203 = vadd.f32 %v6164, %v6195
        %v6204 = vadd.f32 %v6165, %v6195
        %v6205 = vadd.f32 %v6166, %v6195
        %v6206 = vadd.f32 %v6167, %v6195
        %v6207 = vadd.f32 %v6168, %v6195
        %v6208 = vadd.f32 %v6169, %v6195
        %v6209 = vadd.f32 %v6170, %v6195
        %v6210 = vadd.f32 %v6171, %v6195
        %v6211 = vadd.f32 %v6172, %v6195
        %v6212 = vadd.f32 %v6173, %v6195
        %v6213 = vadd.f32 %v6174, %v6195
        %v6214 = vadd.f32 %v6175, %v6195
        %v6215 = vadd.f32 %v6176, %v6195
        %v6216 = vadd.f32 %v6177, %v6195
        %v6217 = vadd.f32 %v6178, %v6195
        %v6218 = vadd.f32 %v6179, %v6195
        %v6219 = vadd.f32 %v6180, %v6195
        %v6220 = vadd.f32 %v6181, %v6195
        %v6221 = vadd.f32 %v6182, %v6195
        %v6222 = vadd.f32 %v6183, %v6195
        %v6223 = vadd.f32 %v6184, %v6195
        %v6224 = vadd.f32 %v6185, %v6195
        %v6225 = vadd.f32 %v6186, %v6195
        %v6226 = vadd.f32 %v6187, %v6195
        %v6227 = vadd.f32 %v6188, %v6195
        %v6228 = vadd.f32 %v6189, %v6195
        %v6229 = vmax.f32 %v6197, 0.0
        %v6230 = vmax.f32 %v6198, 0.0
        %v6231 = vmax.f32 %v6199, 0.0
        %v6232 = vmax.f32 %v6200, 0.0
        %v6233 = vmax.f32 %v6201, 0.0
        %v6234 = vmax.f32 %v6202, 0.0
        %v6235 = vmax.f32 %v6203, 0.0
        %v6236 = vmax.f32 %v6204, 0.0
        %v6237 = vmax.f32 %v6205, 0.0
        %v6238 = vmax.f32 %v6206, 0.0
        %v6239 = vmax.f32 %v6207, 0.0
        %v6240 = vmax.f32 %v6208, 0.0
        %v6241 = vmax.f32 %v6209, 0.0
        %v6242 = vmax.f32 %v6210, 0.0
        %v6243 = vmax.f32 %v6211, 0.0
        %v6244 = vmax.f32 %v6212, 0.0
        %v6245 = vmax.f32 %v6213, 0.0
        %v6246 = vmax.f32 %v6214, 0.0
        %v6247 = vmax.f32 %v6215, 0.0
        %v6248 = vmax.f32 %v6216, 0.0
        %v6249 = vmax.f32 %v6217, 0.0
        %v6250 = vmax.f32 %v6218, 0.0
        %v6251 = vmax.f32 %v6219, 0.0
        %v6252 = vmax.f32 %v6220, 0.0
        %v6253 = vmax.f32 %v6221, 0.0
        %v6254 = vmax.f32 %v6222, 0.0
        %v6255 = vmax.f32 %v6223, 0.0
        %v6256 = vmax.f32 %v6224, 0.0
        %v6257 = vmax.f32 %v6225, 0.0
        %v6258 = vmax.f32 %v6226, 0.0
        %v6259 = vmax.f32 %v6227, 0.0
        %v6260 = vmax.f32 %v6228, 0.0
        %v6261 = vpack.c.bf16 %v6230, %v6229
        %v6262 = vpack.c.bf16 %v6232, %v6231
        %v6263 = vpack.c.bf16 %v6234, %v6233
        %v6264 = vpack.c.bf16 %v6236, %v6235
        %v6265 = vpack.c.bf16 %v6238, %v6237
        %v6266 = vpack.c.bf16 %v6240, %v6239
        %v6267 = vpack.c.bf16 %v6242, %v6241
        %v6268 = vpack.c.bf16 %v6244, %v6243
        %v6269 = vpack.c.bf16 %v6246, %v6245
        %v6270 = vpack.c.bf16 %v6248, %v6247
        %v6271 = vpack.c.bf16 %v6250, %v6249
        %v6272 = vpack.c.bf16 %v6252, %v6251
        %v6273 = vpack.c.bf16 %v6254, %v6253
        %v6274 = vpack.c.bf16 %v6256, %v6255
        %v6275 = vpack.c.bf16 %v6258, %v6257
        %v6276 = vpack.c.bf16 %v6260, %v6259
        %v6277 = vld [vmem:[#allocation9] sm:$0xf]
        %v6278 = vld [vmem:[#allocation9 + $0x4] sm:$0xf]
        %v6279 = vld [vmem:[#allocation9 + $0x8] sm:$0xf]
        %v6280 = vld [vmem:[#allocation9 + $0xc] sm:$0xf]
        %v6281 = vld [vmem:[#allocation9 + $0x10] sm:$0xf]
        %v6282 = vld [vmem:[#allocation9 + $0x14] sm:$0xf]
        %v6283 = vld [vmem:[#allocation9 + $0x18] sm:$0xf]
        %v6284 = vld [vmem:[#allocation9 + $0x1c] sm:$0xf]
        %v6285 = vld [vmem:[#allocation9 + $0x20] sm:$0xf]
        %v6286 = vld [vmem:[#allocation9 + $0x24] sm:$0xf]
        %v6287 = vld [vmem:[#allocation9 + $0x28] sm:$0xf]
        %v6288 = vld [vmem:[#allocation9 + $0x2c] sm:$0xf]
        %v6289 = vld [vmem:[#allocation9 + $0x30] sm:$0xf]
        %v6290 = vld [vmem:[#allocation9 + $0x34] sm:$0xf]
        %v6291 = vld [vmem:[#allocation9 + $0x38] sm:$0xf]
        %v6292 = vld [vmem:[#allocation9 + $0x3c] sm:$0xf]
        %v6309 = vunpack.c.l.b16 %v6277
        %v6310 = vunpack.c.l.b16 %v6278
        %v6311 = vunpack.c.l.b16 %v6279
        %v6312 = vunpack.c.l.b16 %v6280
        %v6313 = vunpack.c.l.b16 %v6281
        %v6314 = vunpack.c.l.b16 %v6282
        %v6315 = vunpack.c.l.b16 %v6283
        %v6316 = vunpack.c.l.b16 %v6284
        %v6317 = vunpack.c.l.b16 %v6285
        %v6318 = vunpack.c.l.b16 %v6286
        %v6319 = vunpack.c.l.b16 %v6287
        %v6320 = vunpack.c.l.b16 %v6288
        %v6321 = vunpack.c.l.b16 %v6289
        %v6322 = vunpack.c.l.b16 %v6290
        %v6323 = vunpack.c.l.b16 %v6291
        %v6324 = vunpack.c.l.b16 %v6292
        %v6325 = vpack.c.b16 %v6310, %v6309
        %v6326 = vpack.c.b16 %v6312, %v6311
        %v6327 = vpack.c.b16 %v6314, %v6313
        %v6328 = vpack.c.b16 %v6316, %v6315
        %v6329 = vpack.c.b16 %v6318, %v6317
        %v6330 = vpack.c.b16 %v6320, %v6319
        %v6331 = vpack.c.b16 %v6322, %v6321
        %v6332 = vpack.c.b16 %v6324, %v6323
        %6341 = vmatprep.subr.bf16.mxu0 0
        %6342 = vmatpush1.bf16.msra.mxu0 %v6325
        %6343 = vmatprep.subr.bf16.mxu0 0
        %6344 = vmatpush1.bf16.msra.mxu0 %v6326
        %6345 = vmatprep.subr.bf16.mxu0 0
        %6346 = vmatpush1.bf16.msra.mxu0 %v6327
        %6347 = vmatprep.subr.bf16.mxu0 0
        %6348 = vmatpush1.bf16.msra.mxu0 %v6328
        %6349 = vmatprep.subr.bf16.mxu0 0
        %6350 = vmatpush1.bf16.msra.mxu0 %v6329
        %6351 = vmatprep.subr.bf16.mxu0 0
        %6352 = vmatpush1.bf16.msra.mxu0 %v6330
        %6353 = vmatprep.subr.bf16.mxu0 0
        %6354 = vmatpush1.bf16.msra.mxu0 %v6331
        %6355 = vmatprep.subr.bf16.mxu0 0
        %6356 = vmatpush1.bf16.msra.mxu0 %v6332
        %6357 = vmatprep.subr.bf16.mxu0 0
        %6358 = vmatpush1.bf16.msra.mxu0 0
        %6359 = vmatprep.subr.bf16.mxu0 0
        %6360 = vmatpush1.bf16.msra.mxu0 0
        %6361 = vmatprep.subr.bf16.mxu0 0
        %6362 = vmatpush1.bf16.msra.mxu0 0
        %6363 = vmatprep.subr.bf16.mxu0 0
        %6364 = vmatpush1.bf16.msra.mxu0 0
        %6365 = vmatprep.subr.bf16.mxu0 0
        %6366 = vmatpush1.bf16.msra.mxu0 0
        %6367 = vmatprep.subr.bf16.mxu0 0
        %6368 = vmatpush1.bf16.msra.mxu0 0
        %6369 = vmatprep.subr.bf16.mxu0 0
        %6370 = vmatpush1.bf16.msra.mxu0 0
        %6371 = vmatprep.subr.bf16.mxu0 0
        %6372 = vmatpush1.bf16.msra.mxu0 0
        %6373 = vmatprep.mubr.bf16.mxu0 0
        %6374 = vmatmul.mubr.bf16.gmra.mrb[0].mxu0 %v6261
        %v6375 = vpop.f32.mrb[0].mxu0
        %v6376 = vadd.f32 0.0, %v6375
        %v6377 = vpop.f32.mrb[0].mxu0
        %v6378 = vpop.f32.mrb[0].mxu0
        %v6379 = vadd.f32 0.0, %v6378
        %v6380 = vpop.f32.mrb[0].mxu0
        %6381 = vmatprep.mubr.bf16.mxu0 0
        %6382 = vmatmul.mubr.bf16.gmra.mrb[0].mxu0 %v6262
        %v6383 = vpop.f32.mrb[0].mxu0
        %v6384 = vadd.f32 0.0, %v6383
        %v6385 = vpop.f32.mrb[0].mxu0
        %v6386 = vpop.f32.mrb[0].mxu0
        %v6387 = vadd.f32 0.0, %v6386
        %v6388 = vpop.f32.mrb[0].mxu0
        %6389 = vmatprep.mubr.bf16.mxu0 0
        %6390 = vmatmul.mubr.bf16.gmra.mrb[0].mxu0 %v6263
        %v6391 = vpop.f32.mrb[0].mxu0
        %v6392 = vadd.f32 0.0, %v6391
        %v6393 = vpop.f32.mrb[0].mxu0
        %v6394 = vpop.f32.mrb[0].mxu0
        %v6395 = vadd.f32 0.0, %v6394
        %v6396 = vpop.f32.mrb[0].mxu0
        %6397 = vmatprep.mubr.bf16.mxu0 0
        %6398 = vmatmul.mubr.bf16.gmra.mrb[0].mxu0 %v6264
        %v6399 = vpop.f32.mrb[0].mxu0
        %v6400 = vadd.f32 0.0, %v6399
        %v6401 = vpop.f32.mrb[0].mxu0
        %v6402 = vpop.f32.mrb[0].mxu0
        %v6403 = vadd.f32 0.0, %v6402
        %v6404 = vpop.f32.mrb[0].mxu0
        %6405 = vmatprep.mubr.bf16.mxu0 0
        %6406 = vmatmul.mubr.bf16.gmra.mrb[0].mxu0 %v6265
        %v6407 = vpop.f32.mrb[0].mxu0
        %v6408 = vadd.f32 0.0, %v6407
        %v6409 = vpop.f32.mrb[0].mxu0
        %v6410 = vpop.f32.mrb[0].mxu0
        %v6411 = vadd.f32 0.0, %v6410
        %v6412 = vpop.f32.mrb[0].mxu0
        %6413 = vmatprep.mubr.bf16.mxu0 0
        %6414 = vmatmul.mubr.bf16.gmra.mrb[0].mxu0 %v6266
        %v6415 = vpop.f32.mrb[0].mxu0
        %v6416 = vadd.f32 0.0, %v6415
        %v6417 = vpop.f32.mrb[0].mxu0
        %v6418 = vpop.f32.mrb[0].mxu0
        %v6419 = vadd.f32 0.0, %v6418
        %v6420 = vpop.f32.mrb[0].mxu0
        %6421 = vmatprep.mubr.bf16.mxu0 0
        %6422 = vmatmul.mubr.bf16.gmra.mrb[0].mxu0 %v6267
        %v6423 = vpop.f32.mrb[0].mxu0
        %v6424 = vadd.f32 0.0, %v6423
        %v6425 = vpop.f32.mrb[0].mxu0
        %v6426 = vpop.f32.mrb[0].mxu0
        %v6427 = vadd.f32 0.0, %v6426
        %v6428 = vpop.f32.mrb[0].mxu0
        %6429 = vmatprep.mubr.bf16.mxu0 0
        %6430 = vmatmul.mubr.bf16.gmra.mrb[0].mxu0 %v6268
        %v6431 = vpop.f32.mrb[0].mxu0
        %v6432 = vadd.f32 0.0, %v6431
        %v6433 = vpop.f32.mrb[0].mxu0
        %v6434 = vpop.f32.mrb[0].mxu0
        %v6435 = vadd.f32 0.0, %v6434
        %v6436 = vpop.f32.mrb[0].mxu0
        %6437 = vmatprep.mubr.bf16.mxu0 0
        %6438 = vmatmul.mubr.bf16.gmra.mrb[0].mxu0 %v6269
        %v6439 = vpop.f32.mrb[0].mxu0
        %v6440 = vadd.f32 0.0, %v6439
        %v6441 = vpop.f32.mrb[0].mxu0
        %v6442 = vpop.f32.mrb[0].mxu0
        %v6443 = vadd.f32 0.0, %v6442
        %v6444 = vpop.f32.mrb[0].mxu0
        %6445 = vmatprep.mubr.bf16.mxu0 0
        %6446 = vmatmul.mubr.bf16.gmra.mrb[0].mxu0 %v6270
        %v6447 = vpop.f32.mrb[0].mxu0
        %v6448 = vadd.f32 0.0, %v6447
        %v6449 = vpop.f32.mrb[0].mxu0
        %v6450 = vpop.f32.mrb[0].mxu0
        %v6451 = vadd.f32 0.0, %v6450
        %v6452 = vpop.f32.mrb[0].mxu0
        %6453 = vmatprep.mubr.bf16.mxu0 0
        %6454 = vmatmul.mubr.bf16.gmra.mrb[0].mxu0 %v6271
        %v6455 = vpop.f32.mrb[0].mxu0
        %v6456 = vadd.f32 0.0, %v6455
        %v6457 = vpop.f32.mrb[0].mxu0
        %v6458 = vpop.f32.mrb[0].mxu0
        %v6459 = vadd.f32 0.0, %v6458
        %v6460 = vpop.f32.mrb[0].mxu0
        %6461 = vmatprep.mubr.bf16.mxu0 0
        %6462 = vmatmul.mubr.bf16.gmra.mrb[0].mxu0 %v6272
        %v6463 = vpop.f32.mrb[0].mxu0
        %v6464 = vadd.f32 0.0, %v6463
        %v6465 = vpop.f32.mrb[0].mxu0
        %v6466 = vpop.f32.mrb[0].mxu0
        %v6467 = vadd.f32 0.0, %v6466
        %v6468 = vpop.f32.mrb[0].mxu0
        %6469 = vmatprep.mubr.bf16.mxu0 0
        %6470 = vmatmul.mubr.bf16.gmra.mrb[0].mxu0 %v6273
        %v6471 = vpop.f32.mrb[0].mxu0
        %v6472 = vadd.f32 0.0, %v6471
        %v6473 = vpop.f32.mrb[0].mxu0
        %v6474 = vpop.f32.mrb[0].mxu0
        %v6475 = vadd.f32 0.0, %v6474
        %v6476 = vpop.f32.mrb[0].mxu0
        %6477 = vmatprep.mubr.bf16.mxu0 0
        %6478 = vmatmul.mubr.bf16.gmra.mrb[0].mxu0 %v6274
        %v6479 = vpop.f32.mrb[0].mxu0
        %v6480 = vadd.f32 0.0, %v6479
        %v6481 = vpop.f32.mrb[0].mxu0
        %v6482 = vpop.f32.mrb[0].mxu0
        %v6483 = vadd.f32 0.0, %v6482
        %v6484 = vpop.f32.mrb[0].mxu0
        %6485 = vmatprep.mubr.bf16.mxu0 0
        %6486 = vmatmul.mubr.bf16.gmra.mrb[0].mxu0 %v6275
        %v6487 = vpop.f32.mrb[0].mxu0
        %v6488 = vadd.f32 0.0, %v6487
        %v6489 = vpop.f32.mrb[0].mxu0
        %v6490 = vpop.f32.mrb[0].mxu0
        %v6491 = vadd.f32 0.0, %v6490
        %v6492 = vpop.f32.mrb[0].mxu0
        %6493 = vmatprep.mubr.bf16.mxu0 0
        %6494 = vmatmul.mubr.bf16.gmra.mrb[0].mxu0 %v6276
        %v6495 = vpop.f32.mrb[0].mxu0
        %v6496 = vadd.f32 0.0, %v6495
        %v6497 = vpop.f32.mrb[0].mxu0
        %v6498 = vpop.f32.mrb[0].mxu0
        %v6499 = vadd.f32 0.0, %v6498
        %v6500 = vpop.f32.mrb[0].mxu0
        %6501 = vdwg.mxu0
        %6502 = vst [vmem:[%s421] sm:$0xff] %v6376
        %6503 = vst [vmem:[%s421 + $0x8] sm:$0xff] %v6379
        %6504 = vst [vmem:[%s421 + $0x10] sm:$0xff] %v6384
        %6505 = vst [vmem:[%s421 + $0x18] sm:$0xff] %v6387
        %6506 = vst [vmem:[%s421 + $0x20] sm:$0xff] %v6392
        %6507 = vst [vmem:[%s421 + $0x28] sm:$0xff] %v6395
        %6508 = vst [vmem:[%s421 + $0x30] sm:$0xff] %v6400
        %6509 = vst [vmem:[%s421 + $0x38] sm:$0xff] %v6403
        %6510 = vst [vmem:[%s421 + $0x40] sm:$0xff] %v6408
        %6511 = vst [vmem:[%s421 + $0x48] sm:$0xff] %v6411
        %6512 = vst [vmem:[%s421 + $0x50] sm:$0xff] %v6416
        %6513 = vst [vmem:[%s421 + $0x58] sm:$0xff] %v6419
        %6514 = vst [vmem:[%s421 + $0x60] sm:$0xff] %v6424
        %6515 = vst [vmem:[%s421 + $0x68] sm:$0xff] %v6427
        %6516 = vst [vmem:[%s421 + $0x70] sm:$0xff] %v6432
        %6517 = vst [vmem:[%s421 + $0x78] sm:$0xff] %v6435
        %6518 = vst [vmem:[%s421 + $0x80] sm:$0xff] %v6440
        %6519 = vst [vmem:[%s421 + $0x88] sm:$0xff] %v6443
        %6520 = vst [vmem:[%s421 + $0x90] sm:$0xff] %v6448
        %6521 = vst [vmem:[%s421 + $0x98] sm:$0xff] %v6451
        %6522 = vst [vmem:[%s421 + $0xa0] sm:$0xff] %v6456
        %6523 = vst [vmem:[%s421 + $0xa8] sm:$0xff] %v6459
        %6524 = vst [vmem:[%s421 + $0xb0] sm:$0xff] %v6464
        %6525 = vst [vmem:[%s421 + $0xb8] sm:$0xff] %v6467
        %6526 = vst [vmem:[%s421 + $0xc0] sm:$0xff] %v6472
        %6527 = vst [vmem:[%s421 + $0xc8] sm:$0xff] %v6475
        %6528 = vst [vmem:[%s421 + $0xd0] sm:$0xff] %v6480
        %6529 = vst [vmem:[%s421 + $0xd8] sm:$0xff] %v6483
        %6530 = vst [vmem:[%s421 + $0xe0] sm:$0xff] %v6488
        %6531 = vst [vmem:[%s421 + $0xe8] sm:$0xff] %v6491
        %6532 = vst [vmem:[%s421 + $0xf0] sm:$0xff] %v6496
        %6533 = vst [vmem:[%s421 + $0xf8] sm:$0xff] %v6499
        %s6534 = sand.u32 %s252, 1
        %s6535 = scalar_lea.sflag [#allocation5], %s6534
        %s6536 = sand.u32 %s252, 1
        %s6537 = smul.addr %s6536, 256
        %s6538 = scalar_lea.vmem [#allocation11], %s6537
        // Predicated region
        $region77: #{tpu_custom_call.1} parent=59 // pred_check
          %p6539 = pneg %p262
        $region78: #{tpu_custom_call.1} parent=59 // pred_check_branch
          %6541 = sbr.rel (%p6539) target = $region80
        $region79: #{tpu_custom_call.1} parent=59 // pred_region
          %s6543 = ssub.s32 4096, 4096
          %6544 = vsyncadd %s6535, %s6543
          %s6545 = smul.addr %s29, 32
          %s6546 = smul.addr %s6545, 128
          %s6547 = scalar_lea.hbm %s10, %s6546
          %s6548 = sshll.u32 %s6538, 4
          %s6549 = int_to_ptr.vmem [resolvable:$true] %s6548
          %6554 = dma.vmem_to_hbm [thread:$0]  %s6549, 4096, %s6547, %s6535, 128, 128, 8
        $region80: #{tpu_custom_call.1} parent=59 // pred_fallthru
          _
      $region60: #{tpu_custom_call.1} parent=5 // pred_fallthru
        _
      %p6555 = scmp.le.s32.totalorder 2, %s24
      // Predicated region
      $region81: #{tpu_custom_call.1} parent=5 // pred_check
        %p6556 = pneg %p6555
      $region82: #{tpu_custom_call.1} parent=5 // pred_check_branch
        %6558 = sbr.rel (%p6556) target = $region84
      $region83: #{tpu_custom_call.1} parent=5 // pred_region
        %s6559 = ssub.s32 %s24, 2
        // Predicated region
        $region85: #{tpu_custom_call.1} parent=83 // pred_check
          %p6560 = pneg %p268
        $region86: #{tpu_custom_call.1} parent=83 // pred_check_branch
          %6562 = sbr.rel (%p6560) target = $region88
        $region87: #{tpu_custom_call.1} parent=83 // pred_region
          %s6563 = sand.u32 %s253, 1
          %s6564 = scalar_lea.sflag [#allocation5], %s6563
          %s6565 = sand.u32 %s253, 1
          %s6566 = smul.addr %s6565, 256
          %s6567 = scalar_lea.vmem [#allocation11], %s6566
          %6568 = dma.done %s6564, 4096
        $region88: #{tpu_custom_call.1} parent=83 // pred_fallthru
          _
      $region84: #{tpu_custom_call.1} parent=5 // pred_fallthru
        _
    $region6: #{tpu_custom_call.1} parent=1 // loop_footer
      %s28 = sadd.s32 1, %s24
    $region7: #{tpu_custom_call.1} parent=1 // loop_footer_branch
      %23 = sbr.rel target = $region3
    $region8: #{tpu_custom_call.1} parent=1 // loop_exit
      _
    %6569 = vsyncpa [#allocation4], 1
    %s6570 = scalar_lea.sflag [#allocation4], 1
    %6571 = vsyncpa %s6570, 1
    %6572 = vsyncpa [#allocation7], 1
    %6573 = vsyncpa [#allocation10], 1
    %6574 = vsyncpa [#allocation5], 1
    %s6575 = scalar_lea.sflag [#allocation5], 1
    %6576 = vsyncpa %s6575, 1

</llo_original>
